<compile_context>
chip_gen: v5e
topology: v5e:2x2
jax: 0.10.0
libtpu: 0.0.40
codegen_flags: <defaults>
</compile_context>

<pallas_src>
import math
import functools

import jax
import jax.numpy as jnp
from jax.experimental import pallas as pl
from jax.experimental.pallas import tpu as pltpu

VMEM_SPEC = pl.BlockSpec(memory_space=pltpu.MemorySpace.VMEM)


# ---------------------------------------------------------------------------
# Fused whole-model kernel
# ---------------------------------------------------------------------------
def _fused_forward_kernel(
    x0_ref, emb_w_ref, emb_b_ref, pe_ref,
    wq_ref, bq_ref, wk_ref, bk_ref, wv_ref, bv_ref,
    wo_ref, bo_ref,
    w1_ref, b1_ref, w2_ref, b2_ref,
    ln1_g_ref, ln1_b_ref, ln2_g_ref, ln2_b_ref,
    sel_ref, lin_w_ref, lin_b_ref, proj_w_ref, proj_b_ref,
    out_ref,
    *, B, S, H, Dh, nlayers, eps,
):
    D = H * Dh
    f32 = jnp.float32

    def mm(a, b):
        return jnp.dot(a, b, preferred_element_type=f32)

    def layernorm(y, g, b):
        mu = jnp.mean(y, axis=-1, keepdims=True)
        var = jnp.mean((y - mu) ** 2, axis=-1, keepdims=True)
        return (y - mu) * jax.lax.rsqrt(var + eps) * g + b

    # Embedding (sqrt(d_model) pre-folded into emb_w / emb_b) + positional encoding.
    # Rows are batch-major: row = b*S + s.   TODO(synk): dropout is identity (eval mode).
    x = mm(x0_ref[...], emb_w_ref[...]) + emb_b_ref[...] + pe_ref[...]      # (B*S, D)

    for l in range(nlayers):
        # ----- multi-head self-attention (per-head weight blocks; softmax scale
        #       already folded into wq/bq; heads accumulated through Wo rows) -----
        attn = jnp.zeros((B * S, D), f32)
        for h in range(H):
            i = l * H + h
            q = mm(x, wq_ref[i]) + bq_ref[i]                                # (B*S, Dh)
            k = mm(x, wk_ref[i]) + bk_ref[i]
            v = mm(x, wv_ref[i]) + bv_ref[i]
            qh = q.reshape(B, S, Dh)        # tile-aligned leading-dim split (no relayout)
            kh = k.reshape(B, S, Dh)
            vh = v.reshape(B, S, Dh)
            scores = jnp.einsum("bqd,bkd->bqk", qh, kh, preferred_element_type=f32)
            m = jnp.max(scores, axis=-1, keepdims=True)
            p = jnp.exp(scores - m)
            p = p * pl.reciprocal(jnp.sum(p, axis=-1, keepdims=True), approx=True)
            o = jnp.einsum("bqk,bkd->bqd", p, vh, preferred_element_type=f32)
            attn = attn + mm(o.reshape(B * S, Dh), wo_ref[i])               # (B*S, D)
        attn = attn + bo_ref[l]
        x = layernorm(x + attn, ln1_g_ref[l], ln1_b_ref[l])

        # ----- feed-forward (ReLU) -----
        ff = jnp.maximum(mm(x, w1_ref[l]) + b1_ref[l], 0.0)
        ff = mm(ff, w2_ref[l]) + b2_ref[l]
        x = layernorm(x + ff, ln2_g_ref[l], ln2_b_ref[l])

    # ----- epilogue: (B, S*D) flatten + Linear + ReLU + Linear, fully in VMEM.
    # flatten(x)[b, s*D:(s+1)*D] @ lin_w[s*D:(s+1)*D, :]  is computed as
    # (sel[s] @ x) @ lin_w3[s]  — sel[s] is a one-hot (B, B*S) row selector, so the
    # flatten/transpose never leaves the kernel and only 2-D matmuls are used. -----
    d_lin = lin_b_ref.shape[-1]
    hacc = jnp.zeros((B, d_lin), f32)
    for si in range(S):
        xs = mm(sel_ref[si], x)                 # (B, D) = rows {b*S + si} of x
        hacc = hacc + mm(xs, lin_w_ref[si])     # += (B, D) @ (D, d_lin)
    hidden = jnp.maximum(hacc + lin_b_ref[...], 0.0)
    out = mm(hidden, proj_w_ref[...]) + proj_b_ref[...]
    out_ref[...] = out.astype(out_ref.dtype)


# ---------------------------------------------------------------------------
# Parameter construction / one-time re-packing (wrapper side)
# ---------------------------------------------------------------------------
def make_positional_encoding(max_len, d_model):
    position = jnp.arange(max_len, dtype=jnp.float32)[:, None]
    div_term = jnp.exp(
        jnp.arange(0, d_model, 2, dtype=jnp.float32) * (-math.log(10000.0) / d_model)
    )
    pe = jnp.zeros((max_len, d_model), dtype=jnp.float32)
    pe = pe.at[:, 0::2].set(jnp.sin(position * div_term))
    pe = pe.at[:, 1::2].set(jnp.cos(position * div_term))
    return pe  # (max_len, d_model)


def init_params(key, cfg):
    d_in, d_model, d_hid = cfg["d_in"], cfg["d_model"], cfg["d_hid"]
    nlayers, d_lin, d_out, seq_len = cfg["nlayers"], cfg["d_lin"], cfg["d_out"], cfg["seq_len"]

    def uni(k, shape):
        return jax.random.uniform(k, shape, jnp.float32, -0.1, 0.1)

    keys = jax.random.split(key, 3 + 6 * nlayers)
    ki = iter(keys)

    params = {
        "embedding_w": uni(next(ki), (d_in, d_model)),
        "embedding_b": jnp.zeros((d_model,), jnp.float32),
        "linear_w": uni(next(ki), (d_model * seq_len, d_lin)),
        "linear_b": jnp.zeros((d_lin,), jnp.float32),
        "project_w": uni(next(ki), (d_lin, d_out)),
        "project_b": jnp.zeros((d_out,), jnp.float32),
        "layers": [],
    }
    for _ in range(nlayers):
        layer = {
            "wq": uni(next(ki), (d_model, d_model)), "bq": jnp.zeros((d_model,), jnp.float32),
            "wk": uni(next(ki), (d_model, d_model)), "bk": jnp.zeros((d_model,), jnp.float32),
            "wv": uni(next(ki), (d_model, d_model)), "bv": jnp.zeros((d_model,), jnp.float32),
            "wo": uni(next(ki), (d_model, d_model)), "bo": jnp.zeros((d_model,), jnp.float32),
            "w1": uni(next(ki), (d_model, d_hid)),   "b1": jnp.zeros((d_hid,), jnp.float32),
            "w2": uni(next(ki), (d_hid, d_model)),   "b2": jnp.zeros((d_model,), jnp.float32),
            "ln1_g": jnp.ones((d_model,), jnp.float32), "ln1_b": jnp.zeros((d_model,), jnp.float32),
            "ln2_g": jnp.ones((d_model,), jnp.float32), "ln2_b": jnp.zeros((d_model,), jnp.float32),
        }
        params["layers"].append(layer)
    return params


def prepare_fused_inputs(params, cfg, batch):
    """One-time weight re-packing for the fused kernel (done outside the kernel)."""
    S, D, H, L = cfg["seq_len"], cfg["d_model"], cfg["nhead"], cfg["nlayers"]
    Dh = D // H
    B = batch
    scale = 1.0 / math.sqrt(Dh)
    sqrt_d = math.sqrt(D)
    layers = params["layers"]

    # Embedding with sqrt(d_model) folded in.
    emb_w = params["embedding_w"] * sqrt_d
    emb_b = (params["embedding_b"] * sqrt_d).reshape(1, D)

    # Positional encoding, precomputed once and tiled to batch-major rows (b*S + s).
    pe = make_positional_encoding(500, D)[:S]           # (S, D)
    pe_bm = jnp.tile(pe, (B, 1))                        # (B*S, D)

    def head_cols(w):   # (D, D) -> (H, D, Dh): column blocks per head
        return w.reshape(D, H, Dh).transpose(1, 0, 2)

    def head_rows(w):   # (D, D) -> (H, Dh, D): row blocks per head (output proj)
        return w.reshape(H, Dh, D)

    wq = jnp.stack([head_cols(ly["wq"]) * scale for ly in layers]).reshape(L * H, D, Dh)
    wk = jnp.stack([head_cols(ly["wk"]) for ly in layers]).reshape(L * H, D, Dh)
    wv = jnp.stack([head_cols(ly["wv"]) for ly in layers]).reshape(L * H, D, Dh)
    bq = jnp.stack([(ly["bq"] * scale).reshape(H, 1, Dh) for ly in layers]).reshape(L * H, 1, Dh)
    bk = jnp.stack([ly["bk"].reshape(H, 1, Dh) for ly in layers]).reshape(L * H, 1, Dh)
    bv = jnp.stack([ly["bv"].reshape(H, 1, Dh) for ly in layers]).reshape(L * H, 1, Dh)
    wo = jnp.stack([head_rows(ly["wo"]) for ly in layers]).reshape(L * H, Dh, D)
    bo = jnp.stack([ly["bo"].reshape(1, D) for ly in layers])                 # (L, 1, D)
    w1 = jnp.stack([ly["w1"] for ly in layers])                               # (L, D, d_hid)
    b1 = jnp.stack([ly["b1"].reshape(1, -1) for ly in layers])
    w2 = jnp.stack([ly["w2"] for ly in layers])                               # (L, d_hid, D)
    b2 = jnp.stack([ly["b2"].reshape(1, -1) for ly in layers])
    ln1_g = jnp.stack([ly["ln1_g"].reshape(1, D) for ly in layers])
    ln1_b = jnp.stack([ly["ln1_b"].reshape(1, D) for ly in layers])
    ln2_g = jnp.stack([ly["ln2_g"].reshape(1, D) for ly in layers])
    ln2_b = jnp.stack([ly["ln2_b"].reshape(1, D) for ly in layers])

    # One-hot row selectors: sel[s, b, b*S + s] = 1  (used for the in-kernel flatten).
    flat_idx = jnp.arange(B)[None, :] * S + jnp.arange(S)[:, None]            # (S, B)
    sel = jax.nn.one_hot(flat_idx, B * S, dtype=jnp.float32)                  # (S, B, B*S)

    lin_w3 = params["linear_w"].reshape(S, D, cfg["d_lin"])                   # block per seq pos
    lin_b = params["linear_b"].reshape(1, cfg["d_lin"])
    proj_w = params["project_w"]
    proj_b = params["project_b"].reshape(1, cfg["d_out"])

    return (emb_w, emb_b, pe_bm,
            wq, bq, wk, bk, wv, bv, wo, bo,
            w1, b1, w2, b2, ln1_g, ln1_b, ln2_g, ln2_b,
            sel, lin_w3, lin_b, proj_w, proj_b)


# ---------------------------------------------------------------------------
# Forward pass: a single fused pallas_call
# ---------------------------------------------------------------------------
def transformer_triplet_forward(prepared, src, *, cfg):
    """src: (seq_len, batch, d_in) -> (batch, d_out)."""
    S, B, d_in = src.shape
    D, H = cfg["d_model"], cfg["nhead"]
    Dh = D // H

    # Batch-major rows (row = b*S + s): makes per-batch attention and the final
    # flatten contiguous, so no in-kernel transposes are needed.
    x0 = jnp.transpose(src, (1, 0, 2)).reshape(B * S, d_in)

    kernel = functools.partial(
        _fused_forward_kernel,
        B=B, S=S, H=H, Dh=Dh, nlayers=cfg["nlayers"], eps=1e-5,
    )
    n_inputs = 1 + len(prepared)
    return pl.pallas_call(
        kernel,
        out_shape=jax.ShapeDtypeStruct((B, cfg["d_out"]), jnp.float32),
        in_specs=[VMEM_SPEC] * n_inputs,
        out_specs=VMEM_SPEC,
    )(x0, *prepared)


# ---------------------------------------------------------------------------
if __name__ == "__main__":
    cfg = dict(d_in=4, d_model=32, nhead=4, d_hid=64,
               nlayers=2, d_lin=16, d_out=8, seq_len=8)
    batch = 2

    key = jax.random.PRNGKey(0)
    k_param, k_data = jax.random.split(key)
    params = init_params(k_param, cfg)
    src = jax.random.normal(k_data, (cfg["seq_len"], batch, cfg["d_in"]), jnp.float32)

    prepared = prepare_fused_inputs(params, cfg, batch)   # one-time weight packing
    fwd = jax.jit(functools.partial(transformer_triplet_forward, cfg=cfg))

    out = fwd(prepared, src)
    out = jax.block_until_ready(out)
    assert out.shape == (batch, cfg["d_out"])
    assert bool(jnp.all(jnp.isfinite(out)))
    print("KERNEL_OK")
</pallas_src>

<mosaic_0001>
module attributes {stable_mosaic.version = 11 : i64} {
  func.func @_fused_forward_kernel(%arg0: memref<16x4xf32, #tpu.memory_space<vmem>>, %arg1: memref<4x32xf32, #tpu.memory_space<vmem>>, %arg2: memref<1x32xf32, #tpu.memory_space<vmem>>, %arg3: memref<16x32xf32, #tpu.memory_space<vmem>>, %arg4: memref<8x32x8xf32, #tpu.memory_space<vmem>>, %arg5: memref<8x1x8xf32, #tpu.memory_space<vmem>>, %arg6: memref<8x32x8xf32, #tpu.memory_space<vmem>>, %arg7: memref<8x1x8xf32, #tpu.memory_space<vmem>>, %arg8: memref<8x32x8xf32, #tpu.memory_space<vmem>>, %arg9: memref<8x1x8xf32, #tpu.memory_space<vmem>>, %arg10: memref<8x8x32xf32, #tpu.memory_space<vmem>>, %arg11: memref<2x1x32xf32, #tpu.memory_space<vmem>>, %arg12: memref<2x32x64xf32, #tpu.memory_space<vmem>>, %arg13: memref<2x1x64xf32, #tpu.memory_space<vmem>>, %arg14: memref<2x64x32xf32, #tpu.memory_space<vmem>>, %arg15: memref<2x1x32xf32, #tpu.memory_space<vmem>>, %arg16: memref<2x1x32xf32, #tpu.memory_space<vmem>>, %arg17: memref<2x1x32xf32, #tpu.memory_space<vmem>>, %arg18: memref<2x1x32xf32, #tpu.memory_space<vmem>>, %arg19: memref<2x1x32xf32, #tpu.memory_space<vmem>>, %arg20: memref<8x2x16xf32, #tpu.memory_space<vmem>>, %arg21: memref<8x32x16xf32, #tpu.memory_space<vmem>>, %arg22: memref<1x16xf32, #tpu.memory_space<vmem>>, %arg23: memref<16x8xf32, #tpu.memory_space<vmem>>, %arg24: memref<1x8xf32, #tpu.memory_space<vmem>>, %arg25: memref<2x8xf32, #tpu.memory_space<vmem>>) attributes {dimension_semantics = [], scalar_prefetch = 0 : i64, scratch_operands = 0 : i64, tpu.core_type = #tpu.core_type<tc>} {
    %c0 = arith.constant 0 : index
    %c0_0 = arith.constant 0 : index
    %0 = vector.load %arg0[%c0, %c0_0] : memref<16x4xf32, #tpu.memory_space<vmem>>, vector<16x4xf32>
    %c0_1 = arith.constant 0 : index
    %c0_2 = arith.constant 0 : index
    %1 = vector.load %arg1[%c0_1, %c0_2] : memref<4x32xf32, #tpu.memory_space<vmem>>, vector<4x32xf32>
    %cst = arith.constant dense<0.000000e+00> : vector<16x32xf32>
    %2 = tpu.matmul %0, %1, %cst {dimension_numbers = #tpu.dot_dimension_numbers<[1], [0], [0], [1], [0, 0, 1, 1], [], []>} : vector<16x4xf32>, vector<4x32xf32>, vector<16x32xf32> -> vector<16x32xf32>
    %c0_3 = arith.constant 0 : index
    %c0_4 = arith.constant 0 : index
    %3 = vector.load %arg2[%c0_3, %c0_4] : memref<1x32xf32, #tpu.memory_space<vmem>>, vector<1x32xf32>
    %4 = vector.broadcast %3 : vector<1x32xf32> to vector<16x32xf32>
    %5 = arith.addf %2, %4 : vector<16x32xf32>
    %c0_5 = arith.constant 0 : index
    %c0_6 = arith.constant 0 : index
    %6 = vector.load %arg3[%c0_5, %c0_6] : memref<16x32xf32, #tpu.memory_space<vmem>>, vector<16x32xf32>
    %7 = arith.addf %5, %6 : vector<16x32xf32>
    %cst_7 = arith.constant 0.000000e+00 : f32
    %8 = vector.broadcast %cst_7 : f32 to vector<16x32xf32>
    %c0_8 = arith.constant 0 : index
    %c0_9 = arith.constant 0 : index
    %c0_10 = arith.constant 0 : index
    %9 = vector.load %arg4[%c0_8, %c0_9, %c0_10] : memref<8x32x8xf32, #tpu.memory_space<vmem>>, vector<1x32x8xf32>
    %10 = vector.shape_cast %9 : vector<1x32x8xf32> to vector<32x8xf32>
    %cst_11 = arith.constant dense<0.000000e+00> : vector<16x8xf32>
    %11 = tpu.matmul %7, %10, %cst_11 {dimension_numbers = #tpu.dot_dimension_numbers<[1], [0], [0], [1], [0, 0, 1, 1], [], []>} : vector<16x32xf32>, vector<32x8xf32>, vector<16x8xf32> -> vector<16x8xf32>
    %c0_12 = arith.constant 0 : index
    %c0_13 = arith.constant 0 : index
    %c0_14 = arith.constant 0 : index
    %12 = vector.load %arg5[%c0_12, %c0_13, %c0_14] : memref<8x1x8xf32, #tpu.memory_space<vmem>>, vector<1x1x8xf32>
    %13 = vector.shape_cast %12 : vector<1x1x8xf32> to vector<1x8xf32>
    %14 = vector.broadcast %13 : vector<1x8xf32> to vector<16x8xf32>
    %15 = arith.addf %11, %14 : vector<16x8xf32>
    %c0_15 = arith.constant 0 : index
    %c0_16 = arith.constant 0 : index
    %c0_17 = arith.constant 0 : index
    %16 = vector.load %arg6[%c0_15, %c0_16, %c0_17] : memref<8x32x8xf32, #tpu.memory_space<vmem>>, vector<1x32x8xf32>
    %17 = vector.shape_cast %16 : vector<1x32x8xf32> to vector<32x8xf32>
    %cst_18 = arith.constant dense<0.000000e+00> : vector<16x8xf32>
    %18 = tpu.matmul %7, %17, %cst_18 {dimension_numbers = #tpu.dot_dimension_numbers<[1], [0], [0], [1], [0, 0, 1, 1], [], []>} : vector<16x32xf32>, vector<32x8xf32>, vector<16x8xf32> -> vector<16x8xf32>
    %c0_19 = arith.constant 0 : index
    %c0_20 = arith.constant 0 : index
    %c0_21 = arith.constant 0 : index
    %19 = vector.load %arg7[%c0_19, %c0_20, %c0_21] : memref<8x1x8xf32, #tpu.memory_space<vmem>>, vector<1x1x8xf32>
    %20 = vector.shape_cast %19 : vector<1x1x8xf32> to vector<1x8xf32>
    %21 = vector.broadcast %20 : vector<1x8xf32> to vector<16x8xf32>
    %22 = arith.addf %18, %21 : vector<16x8xf32>
    %c0_22 = arith.constant 0 : index
    %c0_23 = arith.constant 0 : index
    %c0_24 = arith.constant 0 : index
    %23 = vector.load %arg8[%c0_22, %c0_23, %c0_24] : memref<8x32x8xf32, #tpu.memory_space<vmem>>, vector<1x32x8xf32>
    %24 = vector.shape_cast %23 : vector<1x32x8xf32> to vector<32x8xf32>
    %cst_25 = arith.constant dense<0.000000e+00> : vector<16x8xf32>
    %25 = tpu.matmul %7, %24, %cst_25 {dimension_numbers = #tpu.dot_dimension_numbers<[1], [0], [0], [1], [0, 0, 1, 1], [], []>} : vector<16x32xf32>, vector<32x8xf32>, vector<16x8xf32> -> vector<16x8xf32>
    %c0_26 = arith.constant 0 : index
    %c0_27 = arith.constant 0 : index
    %c0_28 = arith.constant 0 : index
    %26 = vector.load %arg9[%c0_26, %c0_27, %c0_28] : memref<8x1x8xf32, #tpu.memory_space<vmem>>, vector<1x1x8xf32>
    %27 = vector.shape_cast %26 : vector<1x1x8xf32> to vector<1x8xf32>
    %28 = vector.broadcast %27 : vector<1x8xf32> to vector<16x8xf32>
    %29 = arith.addf %25, %28 : vector<16x8xf32>
    %30 = vector.shape_cast %15 : vector<16x8xf32> to vector<2x8x8xf32>
    %31 = vector.shape_cast %22 : vector<16x8xf32> to vector<2x8x8xf32>
    %32 = vector.shape_cast %29 : vector<16x8xf32> to vector<2x8x8xf32>
    "tpu.trace_start"() <{level = 10 : i32, message = "bqd,bkd->bqk"}> : () -> ()
    %cst_29 = arith.constant dense<0.000000e+00> : vector<2x8x8xf32>
    %33 = tpu.matmul %30, %31, %cst_29 {dimension_numbers = #tpu.dot_dimension_numbers<[2], [2], [1], [1], [0, 0, 0, 1, 1, 1], [0], [0]>} : vector<2x8x8xf32>, vector<2x8x8xf32>, vector<2x8x8xf32> -> vector<2x8x8xf32>
    "tpu.trace_stop"() : () -> ()
    %cst_30 = arith.constant dense<0xFF800000> : vector<2x8xf32>
    %34 = vector.multi_reduction <maximumf>, %33, %cst_30 [2] : vector<2x8x8xf32> to vector<2x8xf32>
    %35 = vector.shape_cast %34 : vector<2x8xf32> to vector<2x8x1xf32>
    %36 = vector.broadcast %35 : vector<2x8x1xf32> to vector<2x8x8xf32>
    %37 = arith.subf %33, %36 : vector<2x8x8xf32>
    %38 = math.exp %37 : vector<2x8x8xf32>
    %cst_31 = arith.constant dense<0.000000e+00> : vector<2x8xf32>
    %39 = vector.multi_reduction <add>, %38, %cst_31 [2] : vector<2x8x8xf32> to vector<2x8xf32>
    %40 = vector.shape_cast %39 : vector<2x8xf32> to vector<2x8x1xf32>
    %41 = tpu.reciprocal %40 {approx = true} : vector<2x8x1xf32> -> vector<2x8x1xf32>
    %42 = vector.broadcast %41 : vector<2x8x1xf32> to vector<2x8x8xf32>
    %43 = arith.mulf %38, %42 : vector<2x8x8xf32>
    "tpu.trace_start"() <{level = 10 : i32, message = "bqk,bkd->bqd"}> : () -> ()
    %cst_32 = arith.constant dense<0.000000e+00> : vector<2x8x8xf32>
    %44 = tpu.matmul %43, %32, %cst_32 {dimension_numbers = #tpu.dot_dimension_numbers<[2], [1], [1], [2], [0, 0, 0, 1, 1, 2], [0], [0]>} : vector<2x8x8xf32>, vector<2x8x8xf32>, vector<2x8x8xf32> -> vector<2x8x8xf32>
    "tpu.trace_stop"() : () -> ()
    %45 = vector.shape_cast %44 : vector<2x8x8xf32> to vector<16x8xf32>
    %c0_33 = arith.constant 0 : index
    %c0_34 = arith.constant 0 : index
    %c0_35 = arith.constant 0 : index
    %46 = vector.load %arg10[%c0_33, %c0_34, %c0_35] : memref<8x8x32xf32, #tpu.memory_space<vmem>>, vector<1x8x32xf32>
    %47 = vector.shape_cast %46 : vector<1x8x32xf32> to vector<8x32xf32>
    %cst_36 = arith.constant dense<0.000000e+00> : vector<16x32xf32>
    %48 = tpu.matmul %45, %47, %cst_36 {dimension_numbers = #tpu.dot_dimension_numbers<[1], [0], [0], [1], [0, 0, 1, 1], [], []>} : vector<16x8xf32>, vector<8x32xf32>, vector<16x32xf32> -> vector<16x32xf32>
    %49 = arith.addf %8, %48 : vector<16x32xf32>
    %c1 = arith.constant 1 : index
    %c0_37 = arith.constant 0 : index
    %c0_38 = arith.constant 0 : index
    %50 = vector.load %arg4[%c1, %c0_37, %c0_38] : memref<8x32x8xf32, #tpu.memory_space<vmem>>, vector<1x32x8xf32>
    %51 = vector.shape_cast %50 : vector<1x32x8xf32> to vector<32x8xf32>
    %cst_39 = arith.constant dense<0.000000e+00> : vector<16x8xf32>
    %52 = tpu.matmul %7, %51, %cst_39 {dimension_numbers = #tpu.dot_dimension_numbers<[1], [0], [0], [1], [0, 0, 1, 1], [], []>} : vector<16x32xf32>, vector<32x8xf32>, vector<16x8xf32> -> vector<16x8xf32>
    %c1_40 = arith.constant 1 : index
    %c0_41 = arith.constant 0 : index
    %c0_42 = arith.constant 0 : index
    %53 = vector.load %arg5[%c1_40, %c0_41, %c0_42] : memref<8x1x8xf32, #tpu.memory_space<vmem>>, vector<1x1x8xf32>
    %54 = vector.shape_cast %53 : vector<1x1x8xf32> to vector<1x8xf32>
    %55 = vector.broadcast %54 : vector<1x8xf32> to vector<16x8xf32>
    %56 = arith.addf %52, %55 : vector<16x8xf32>
    %c1_43 = arith.constant 1 : index
    %c0_44 = arith.constant 0 : index
    %c0_45 = arith.constant 0 : index
    %57 = vector.load %arg6[%c1_43, %c0_44, %c0_45] : memref<8x32x8xf32, #tpu.memory_space<vmem>>, vector<1x32x8xf32>
    %58 = vector.shape_cast %57 : vector<1x32x8xf32> to vector<32x8xf32>
    %cst_46 = arith.constant dense<0.000000e+00> : vector<16x8xf32>
    %59 = tpu.matmul %7, %58, %cst_46 {dimension_numbers = #tpu.dot_dimension_numbers<[1], [0], [0], [1], [0, 0, 1, 1], [], []>} : vector<16x32xf32>, vector<32x8xf32>, vector<16x8xf32> -> vector<16x8xf32>
    %c1_47 = arith.constant 1 : index
    %c0_48 = arith.constant 0 : index
    %c0_49 = arith.constant 0 : index
    %60 = vector.load %arg7[%c1_47, %c0_48, %c0_49] : memref<8x1x8xf32, #tpu.memory_space<vmem>>, vector<1x1x8xf32>
    %61 = vector.shape_cast %60 : vector<1x1x8xf32> to vector<1x8xf32>
    %62 = vector.broadcast %61 : vector<1x8xf32> to vector<16x8xf32>
    %63 = arith.addf %59, %62 : vector<16x8xf32>
    %c1_50 = arith.constant 1 : index
    %c0_51 = arith.constant 0 : index
    %c0_52 = arith.constant 0 : index
    %64 = vector.load %arg8[%c1_50, %c0_51, %c0_52] : memref<8x32x8xf32, #tpu.memory_space<vmem>>, vector<1x32x8xf32>
    %65 = vector.shape_cast %64 : vector<1x32x8xf32> to vector<32x8xf32>
    %cst_53 = arith.constant dense<0.000000e+00> : vector<16x8xf32>
    %66 = tpu.matmul %7, %65, %cst_53 {dimension_numbers = #tpu.dot_dimension_numbers<[1], [0], [0], [1], [0, 0, 1, 1], [], []>} : vector<16x32xf32>, vector<32x8xf32>, vector<16x8xf32> -> vector<16x8xf32>
    %c1_54 = arith.constant 1 : index
    %c0_55 = arith.constant 0 : index
    %c0_56 = arith.constant 0 : index
    %67 = vector.load %arg9[%c1_54, %c0_55, %c0_56] : memref<8x1x8xf32, #tpu.memory_space<vmem>>, vector<1x1x8xf32>
    %68 = vector.shape_cast %67 : vector<1x1x8xf32> to vector<1x8xf32>
    %69 = vector.broadcast %68 : vector<1x8xf32> to vector<16x8xf32>
    %70 = arith.addf %66, %69 : vector<16x8xf32>
    %71 = vector.shape_cast %56 : vector<16x8xf32> to vector<2x8x8xf32>
    %72 = vector.shape_cast %63 : vector<16x8xf32> to vector<2x8x8xf32>
    %73 = vector.shape_cast %70 : vector<16x8xf32> to vector<2x8x8xf32>
    "tpu.trace_start"() <{level = 10 : i32, message = "bqd,bkd->bqk"}> : () -> ()
    %cst_57 = arith.constant dense<0.000000e+00> : vector<2x8x8xf32>
    %74 = tpu.matmul %71, %72, %cst_57 {dimension_numbers = #tpu.dot_dimension_numbers<[2], [2], [1], [1], [0, 0, 0, 1, 1, 1], [0], [0]>} : vector<2x8x8xf32>, vector<2x8x8xf32>, vector<2x8x8xf32> -> vector<2x8x8xf32>
    "tpu.trace_stop"() : () -> ()
    %cst_58 = arith.constant dense<0xFF800000> : vector<2x8xf32>
    %75 = vector.multi_reduction <maximumf>, %74, %cst_58 [2] : vector<2x8x8xf32> to vector<2x8xf32>
    %76 = vector.shape_cast %75 : vector<2x8xf32> to vector<2x8x1xf32>
    %77 = vector.broadcast %76 : vector<2x8x1xf32> to vector<2x8x8xf32>
    %78 = arith.subf %74, %77 : vector<2x8x8xf32>
    %79 = math.exp %78 : vector<2x8x8xf32>
    %cst_59 = arith.constant dense<0.000000e+00> : vector<2x8xf32>
    %80 = vector.multi_reduction <add>, %79, %cst_59 [2] : vector<2x8x8xf32> to vector<2x8xf32>
    %81 = vector.shape_cast %80 : vector<2x8xf32> to vector<2x8x1xf32>
    %82 = tpu.reciprocal %81 {approx = true} : vector<2x8x1xf32> -> vector<2x8x1xf32>
    %83 = vector.broadcast %82 : vector<2x8x1xf32> to vector<2x8x8xf32>
    %84 = arith.mulf %79, %83 : vector<2x8x8xf32>
    "tpu.trace_start"() <{level = 10 : i32, message = "bqk,bkd->bqd"}> : () -> ()
    %cst_60 = arith.constant dense<0.000000e+00> : vector<2x8x8xf32>
    %85 = tpu.matmul %84, %73, %cst_60 {dimension_numbers = #tpu.dot_dimension_numbers<[2], [1], [1], [2], [0, 0, 0, 1, 1, 2], [0], [0]>} : vector<2x8x8xf32>, vector<2x8x8xf32>, vector<2x8x8xf32> -> vector<2x8x8xf32>
    "tpu.trace_stop"() : () -> ()
    %86 = vector.shape_cast %85 : vector<2x8x8xf32> to vector<16x8xf32>
    %c1_61 = arith.constant 1 : index
    %c0_62 = arith.constant 0 : index
    %c0_63 = arith.constant 0 : index
    %87 = vector.load %arg10[%c1_61, %c0_62, %c0_63] : memref<8x8x32xf32, #tpu.memory_space<vmem>>, vector<1x8x32xf32>
    %88 = vector.shape_cast %87 : vector<1x8x32xf32> to vector<8x32xf32>
    %cst_64 = arith.constant dense<0.000000e+00> : vector<16x32xf32>
    %89 = tpu.matmul %86, %88, %cst_64 {dimension_numbers = #tpu.dot_dimension_numbers<[1], [0], [0], [1], [0, 0, 1, 1], [], []>} : vector<16x8xf32>, vector<8x32xf32>, vector<16x32xf32> -> vector<16x32xf32>
    %90 = arith.addf %49, %89 : vector<16x32xf32>
    %c2 = arith.constant 2 : index
    %c0_65 = arith.constant 0 : index
    %c0_66 = arith.constant 0 : index
    %91 = vector.load %arg4[%c2, %c0_65, %c0_66] : memref<8x32x8xf32, #tpu.memory_space<vmem>>, vector<1x32x8xf32>
    %92 = vector.shape_cast %91 : vector<1x32x8xf32> to vector<32x8xf32>
    %cst_67 = arith.constant dense<0.000000e+00> : vector<16x8xf32>
    %93 = tpu.matmul %7, %92, %cst_67 {dimension_numbers = #tpu.dot_dimension_numbers<[1], [0], [0], [1], [0, 0, 1, 1], [], []>} : vector<16x32xf32>, vector<32x8xf32>, vector<16x8xf32> -> vector<16x8xf32>
    %c2_68 = arith.constant 2 : index
    %c0_69 = arith.constant 0 : index
    %c0_70 = arith.constant 0 : index
    %94 = vector.load %arg5[%c2_68, %c0_69, %c0_70] : memref<8x1x8xf32, #tpu.memory_space<vmem>>, vector<1x1x8xf32>
    %95 = vector.shape_cast %94 : vector<1x1x8xf32> to vector<1x8xf32>
    %96 = vector.broadcast %95 : vector<1x8xf32> to vector<16x8xf32>
    %97 = arith.addf %93, %96 : vector<16x8xf32>
    %c2_71 = arith.constant 2 : index
    %c0_72 = arith.constant 0 : index
    %c0_73 = arith.constant 0 : index
    %98 = vector.load %arg6[%c2_71, %c0_72, %c0_73] : memref<8x32x8xf32, #tpu.memory_space<vmem>>, vector<1x32x8xf32>
    %99 = vector.shape_cast %98 : vector<1x32x8xf32> to vector<32x8xf32>
    %cst_74 = arith.constant dense<0.000000e+00> : vector<16x8xf32>
    %100 = tpu.matmul %7, %99, %cst_74 {dimension_numbers = #tpu.dot_dimension_numbers<[1], [0], [0], [1], [0, 0, 1, 1], [], []>} : vector<16x32xf32>, vector<32x8xf32>, vector<16x8xf32> -> vector<16x8xf32>
    %c2_75 = arith.constant 2 : index
    %c0_76 = arith.constant 0 : index
    %c0_77 = arith.constant 0 : index
    %101 = vector.load %arg7[%c2_75, %c0_76, %c0_77] : memref<8x1x8xf32, #tpu.memory_space<vmem>>, vector<1x1x8xf32>
    %102 = vector.shape_cast %101 : vector<1x1x8xf32> to vector<1x8xf32>
    %103 = vector.broadcast %102 : vector<1x8xf32> to vector<16x8xf32>
    %104 = arith.addf %100, %103 : vector<16x8xf32>
    %c2_78 = arith.constant 2 : index
    %c0_79 = arith.constant 0 : index
    %c0_80 = arith.constant 0 : index
    %105 = vector.load %arg8[%c2_78, %c0_79, %c0_80] : memref<8x32x8xf32, #tpu.memory_space<vmem>>, vector<1x32x8xf32>
    %106 = vector.shape_cast %105 : vector<1x32x8xf32> to vector<32x8xf32>
    %cst_81 = arith.constant dense<0.000000e+00> : vector<16x8xf32>
    %107 = tpu.matmul %7, %106, %cst_81 {dimension_numbers = #tpu.dot_dimension_numbers<[1], [0], [0], [1], [0, 0, 1, 1], [], []>} : vector<16x32xf32>, vector<32x8xf32>, vector<16x8xf32> -> vector<16x8xf32>
    %c2_82 = arith.constant 2 : index
    %c0_83 = arith.constant 0 : index
    %c0_84 = arith.constant 0 : index
    %108 = vector.load %arg9[%c2_82, %c0_83, %c0_84] : memref<8x1x8xf32, #tpu.memory_space<vmem>>, vector<1x1x8xf32>
    %109 = vector.shape_cast %108 : vector<1x1x8xf32> to vector<1x8xf32>
    %110 = vector.broadcast %109 : vector<1x8xf32> to vector<16x8xf32>
    %111 = arith.addf %107, %110 : vector<16x8xf32>
    %112 = vector.shape_cast %97 : vector<16x8xf32> to vector<2x8x8xf32>
    %113 = vector.shape_cast %104 : vector<16x8xf32> to vector<2x8x8xf32>
    %114 = vector.shape_cast %111 : vector<16x8xf32> to vector<2x8x8xf32>
    "tpu.trace_start"() <{level = 10 : i32, message = "bqd,bkd->bqk"}> : () -> ()
    %cst_85 = arith.constant dense<0.000000e+00> : vector<2x8x8xf32>
    %115 = tpu.matmul %112, %113, %cst_85 {dimension_numbers = #tpu.dot_dimension_numbers<[2], [2], [1], [1], [0, 0, 0, 1, 1, 1], [0], [0]>} : vector<2x8x8xf32>, vector<2x8x8xf32>, vector<2x8x8xf32> -> vector<2x8x8xf32>
    "tpu.trace_stop"() : () -> ()
    %cst_86 = arith.constant dense<0xFF800000> : vector<2x8xf32>
    %116 = vector.multi_reduction <maximumf>, %115, %cst_86 [2] : vector<2x8x8xf32> to vector<2x8xf32>
    %117 = vector.shape_cast %116 : vector<2x8xf32> to vector<2x8x1xf32>
    %118 = vector.broadcast %117 : vector<2x8x1xf32> to vector<2x8x8xf32>
    %119 = arith.subf %115, %118 : vector<2x8x8xf32>
    %120 = math.exp %119 : vector<2x8x8xf32>
    %cst_87 = arith.constant dense<0.000000e+00> : vector<2x8xf32>
    %121 = vector.multi_reduction <add>, %120, %cst_87 [2] : vector<2x8x8xf32> to vector<2x8xf32>
    %122 = vector.shape_cast %121 : vector<2x8xf32> to vector<2x8x1xf32>
    %123 = tpu.reciprocal %122 {approx = true} : vector<2x8x1xf32> -> vector<2x8x1xf32>
    %124 = vector.broadcast %123 : vector<2x8x1xf32> to vector<2x8x8xf32>
    %125 = arith.mulf %120, %124 : vector<2x8x8xf32>
    "tpu.trace_start"() <{level = 10 : i32, message = "bqk,bkd->bqd"}> : () -> ()
    %cst_88 = arith.constant dense<0.000000e+00> : vector<2x8x8xf32>
    %126 = tpu.matmul %125, %114, %cst_88 {dimension_numbers = #tpu.dot_dimension_numbers<[2], [1], [1], [2], [0, 0, 0, 1, 1, 2], [0], [0]>} : vector<2x8x8xf32>, vector<2x8x8xf32>, vector<2x8x8xf32> -> vector<2x8x8xf32>
    "tpu.trace_stop"() : () -> ()
    %127 = vector.shape_cast %126 : vector<2x8x8xf32> to vector<16x8xf32>
    %c2_89 = arith.constant 2 : index
    %c0_90 = arith.constant 0 : index
    %c0_91 = arith.constant 0 : index
    %128 = vector.load %arg10[%c2_89, %c0_90, %c0_91] : memref<8x8x32xf32, #tpu.memory_space<vmem>>, vector<1x8x32xf32>
    %129 = vector.shape_cast %128 : vector<1x8x32xf32> to vector<8x32xf32>
    %cst_92 = arith.constant dense<0.000000e+00> : vector<16x32xf32>
    %130 = tpu.matmul %127, %129, %cst_92 {dimension_numbers = #tpu.dot_dimension_numbers<[1], [0], [0], [1], [0, 0, 1, 1], [], []>} : vector<16x8xf32>, vector<8x32xf32>, vector<16x32xf32> -> vector<16x32xf32>
    %131 = arith.addf %90, %130 : vector<16x32xf32>
    %c3 = arith.constant 3 : index
    %c0_93 = arith.constant 0 : index
    %c0_94 = arith.constant 0 : index
    %132 = vector.load %arg4[%c3, %c0_93, %c0_94] : memref<8x32x8xf32, #tpu.memory_space<vmem>>, vector<1x32x8xf32>
    %133 = vector.shape_cast %132 : vector<1x32x8xf32> to vector<32x8xf32>
    %cst_95 = arith.constant dense<0.000000e+00> : vector<16x8xf32>
    %134 = tpu.matmul %7, %133, %cst_95 {dimension_numbers = #tpu.dot_dimension_numbers<[1], [0], [0], [1], [0, 0, 1, 1], [], []>} : vector<16x32xf32>, vector<32x8xf32>, vector<16x8xf32> -> vector<16x8xf32>
    %c3_96 = arith.constant 3 : index
    %c0_97 = arith.constant 0 : index
    %c0_98 = arith.constant 0 : index
    %135 = vector.load %arg5[%c3_96, %c0_97, %c0_98] : memref<8x1x8xf32, #tpu.memory_space<vmem>>, vector<1x1x8xf32>
    %136 = vector.shape_cast %135 : vector<1x1x8xf32> to vector<1x8xf32>
    %137 = vector.broadcast %136 : vector<1x8xf32> to vector<16x8xf32>
    %138 = arith.addf %134, %137 : vector<16x8xf32>
    %c3_99 = arith.constant 3 : index
    %c0_100 = arith.constant 0 : index
    %c0_101 = arith.constant 0 : index
    %139 = vector.load %arg6[%c3_99, %c0_100, %c0_101] : memref<8x32x8xf32, #tpu.memory_space<vmem>>, vector<1x32x8xf32>
    %140 = vector.shape_cast %139 : vector<1x32x8xf32> to vector<32x8xf32>
    %cst_102 = arith.constant dense<0.000000e+00> : vector<16x8xf32>
    %141 = tpu.matmul %7, %140, %cst_102 {dimension_numbers = #tpu.dot_dimension_numbers<[1], [0], [0], [1], [0, 0, 1, 1], [], []>} : vector<16x32xf32>, vector<32x8xf32>, vector<16x8xf32> -> vector<16x8xf32>
    %c3_103 = arith.constant 3 : index
    %c0_104 = arith.constant 0 : index
    %c0_105 = arith.constant 0 : index
    %142 = vector.load %arg7[%c3_103, %c0_104, %c0_105] : memref<8x1x8xf32, #tpu.memory_space<vmem>>, vector<1x1x8xf32>
    %143 = vector.shape_cast %142 : vector<1x1x8xf32> to vector<1x8xf32>
    %144 = vector.broadcast %143 : vector<1x8xf32> to vector<16x8xf32>
    %145 = arith.addf %141, %144 : vector<16x8xf32>
    %c3_106 = arith.constant 3 : index
    %c0_107 = arith.constant 0 : index
    %c0_108 = arith.constant 0 : index
    %146 = vector.load %arg8[%c3_106, %c0_107, %c0_108] : memref<8x32x8xf32, #tpu.memory_space<vmem>>, vector<1x32x8xf32>
    %147 = vector.shape_cast %146 : vector<1x32x8xf32> to vector<32x8xf32>
    %cst_109 = arith.constant dense<0.000000e+00> : vector<16x8xf32>
    %148 = tpu.matmul %7, %147, %cst_109 {dimension_numbers = #tpu.dot_dimension_numbers<[1], [0], [0], [1], [0, 0, 1, 1], [], []>} : vector<16x32xf32>, vector<32x8xf32>, vector<16x8xf32> -> vector<16x8xf32>
    %c3_110 = arith.constant 3 : index
    %c0_111 = arith.constant 0 : index
    %c0_112 = arith.constant 0 : index
    %149 = vector.load %arg9[%c3_110, %c0_111, %c0_112] : memref<8x1x8xf32, #tpu.memory_space<vmem>>, vector<1x1x8xf32>
    %150 = vector.shape_cast %149 : vector<1x1x8xf32> to vector<1x8xf32>
    %151 = vector.broadcast %150 : vector<1x8xf32> to vector<16x8xf32>
    %152 = arith.addf %148, %151 : vector<16x8xf32>
    %153 = vector.shape_cast %138 : vector<16x8xf32> to vector<2x8x8xf32>
    %154 = vector.shape_cast %145 : vector<16x8xf32> to vector<2x8x8xf32>
    %155 = vector.shape_cast %152 : vector<16x8xf32> to vector<2x8x8xf32>
    "tpu.trace_start"() <{level = 10 : i32, message = "bqd,bkd->bqk"}> : () -> ()
    %cst_113 = arith.constant dense<0.000000e+00> : vector<2x8x8xf32>
    %156 = tpu.matmul %153, %154, %cst_113 {dimension_numbers = #tpu.dot_dimension_numbers<[2], [2], [1], [1], [0, 0, 0, 1, 1, 1], [0], [0]>} : vector<2x8x8xf32>, vector<2x8x8xf32>, vector<2x8x8xf32> -> vector<2x8x8xf32>
    "tpu.trace_stop"() : () -> ()
    %cst_114 = arith.constant dense<0xFF800000> : vector<2x8xf32>
    %157 = vector.multi_reduction <maximumf>, %156, %cst_114 [2] : vector<2x8x8xf32> to vector<2x8xf32>
    %158 = vector.shape_cast %157 : vector<2x8xf32> to vector<2x8x1xf32>
    %159 = vector.broadcast %158 : vector<2x8x1xf32> to vector<2x8x8xf32>
    %160 = arith.subf %156, %159 : vector<2x8x8xf32>
    %161 = math.exp %160 : vector<2x8x8xf32>
    %cst_115 = arith.constant dense<0.000000e+00> : vector<2x8xf32>
    %162 = vector.multi_reduction <add>, %161, %cst_115 [2] : vector<2x8x8xf32> to vector<2x8xf32>
    %163 = vector.shape_cast %162 : vector<2x8xf32> to vector<2x8x1xf32>
    %164 = tpu.reciprocal %163 {approx = true} : vector<2x8x1xf32> -> vector<2x8x1xf32>
    %165 = vector.broadcast %164 : vector<2x8x1xf32> to vector<2x8x8xf32>
    %166 = arith.mulf %161, %165 : vector<2x8x8xf32>
    "tpu.trace_start"() <{level = 10 : i32, message = "bqk,bkd->bqd"}> : () -> ()
    %cst_116 = arith.constant dense<0.000000e+00> : vector<2x8x8xf32>
    %167 = tpu.matmul %166, %155, %cst_116 {dimension_numbers = #tpu.dot_dimension_numbers<[2], [1], [1], [2], [0, 0, 0, 1, 1, 2], [0], [0]>} : vector<2x8x8xf32>, vector<2x8x8xf32>, vector<2x8x8xf32> -> vector<2x8x8xf32>
    "tpu.trace_stop"() : () -> ()
    %168 = vector.shape_cast %167 : vector<2x8x8xf32> to vector<16x8xf32>
    %c3_117 = arith.constant 3 : index
    %c0_118 = arith.constant 0 : index
    %c0_119 = arith.constant 0 : index
    %169 = vector.load %arg10[%c3_117, %c0_118, %c0_119] : memref<8x8x32xf32, #tpu.memory_space<vmem>>, vector<1x8x32xf32>
    %170 = vector.shape_cast %169 : vector<1x8x32xf32> to vector<8x32xf32>
    %cst_120 = arith.constant dense<0.000000e+00> : vector<16x32xf32>
    %171 = tpu.matmul %168, %170, %cst_120 {dimension_numbers = #tpu.dot_dimension_numbers<[1], [0], [0], [1], [0, 0, 1, 1], [], []>} : vector<16x8xf32>, vector<8x32xf32>, vector<16x32xf32> -> vector<16x32xf32>
    %172 = arith.addf %131, %171 : vector<16x32xf32>
    %c0_121 = arith.constant 0 : index
    %c0_122 = arith.constant 0 : index
    %c0_123 = arith.constant 0 : index
    %173 = vector.load %arg11[%c0_121, %c0_122, %c0_123] : memref<2x1x32xf32, #tpu.memory_space<vmem>>, vector<1x1x32xf32>
    %174 = vector.shape_cast %173 : vector<1x1x32xf32> to vector<1x32xf32>
    %175 = vector.broadcast %174 : vector<1x32xf32> to vector<16x32xf32>
    %176 = arith.addf %172, %175 : vector<16x32xf32>
    %177 = arith.addf %7, %176 : vector<16x32xf32>
    %c0_124 = arith.constant 0 : index
    %c0_125 = arith.constant 0 : index
    %c0_126 = arith.constant 0 : index
    %178 = vector.load %arg16[%c0_124, %c0_125, %c0_126] : memref<2x1x32xf32, #tpu.memory_space<vmem>>, vector<1x1x32xf32>
    %179 = vector.shape_cast %178 : vector<1x1x32xf32> to vector<1x32xf32>
    %c0_127 = arith.constant 0 : index
    %c0_128 = arith.constant 0 : index
    %c0_129 = arith.constant 0 : index
    %180 = vector.load %arg17[%c0_127, %c0_128, %c0_129] : memref<2x1x32xf32, #tpu.memory_space<vmem>>, vector<1x1x32xf32>
    %181 = vector.shape_cast %180 : vector<1x1x32xf32> to vector<1x32xf32>
    %cst_130 = arith.constant dense<0.000000e+00> : vector<16xf32>
    %182 = vector.multi_reduction <add>, %177, %cst_130 [1] : vector<16x32xf32> to vector<16xf32>
    %183 = vector.shape_cast %182 : vector<16xf32> to vector<16x1xf32>
    %cst_131 = arith.constant 3.200000e+01 : f32
    %184 = vector.broadcast %cst_131 : f32 to vector<16x1xf32>
    %185 = arith.divf %183, %184 : vector<16x1xf32>
    %186 = vector.broadcast %185 : vector<16x1xf32> to vector<16x32xf32>
    %187 = arith.subf %177, %186 : vector<16x32xf32>
    %188 = arith.mulf %187, %187 : vector<16x32xf32>
    %cst_132 = arith.constant dense<0.000000e+00> : vector<16xf32>
    %189 = vector.multi_reduction <add>, %188, %cst_132 [1] : vector<16x32xf32> to vector<16xf32>
    %190 = vector.shape_cast %189 : vector<16xf32> to vector<16x1xf32>
    %cst_133 = arith.constant 3.200000e+01 : f32
    %191 = vector.broadcast %cst_133 : f32 to vector<16x1xf32>
    %192 = arith.divf %190, %191 : vector<16x1xf32>
    %193 = vector.broadcast %185 : vector<16x1xf32> to vector<16x32xf32>
    %194 = arith.subf %177, %193 : vector<16x32xf32>
    %cst_134 = arith.constant 9.99999974E-6 : f32
    %195 = vector.broadcast %cst_134 : f32 to vector<16x1xf32>
    %196 = arith.addf %192, %195 : vector<16x1xf32>
    %197 = math.rsqrt %196 : vector<16x1xf32>
    %198 = vector.broadcast %197 : vector<16x1xf32> to vector<16x32xf32>
    %199 = arith.mulf %194, %198 : vector<16x32xf32>
    %200 = vector.broadcast %179 : vector<1x32xf32> to vector<16x32xf32>
    %201 = arith.mulf %199, %200 : vector<16x32xf32>
    %202 = vector.broadcast %181 : vector<1x32xf32> to vector<16x32xf32>
    %203 = arith.addf %201, %202 : vector<16x32xf32>
    %c0_135 = arith.constant 0 : index
    %c0_136 = arith.constant 0 : index
    %c0_137 = arith.constant 0 : index
    %204 = vector.load %arg12[%c0_135, %c0_136, %c0_137] : memref<2x32x64xf32, #tpu.memory_space<vmem>>, vector<1x32x64xf32>
    %205 = vector.shape_cast %204 : vector<1x32x64xf32> to vector<32x64xf32>
    %cst_138 = arith.constant dense<0.000000e+00> : vector<16x64xf32>
    %206 = tpu.matmul %203, %205, %cst_138 {dimension_numbers = #tpu.dot_dimension_numbers<[1], [0], [0], [1], [0, 0, 1, 1], [], []>} : vector<16x32xf32>, vector<32x64xf32>, vector<16x64xf32> -> vector<16x64xf32>
    %c0_139 = arith.constant 0 : index
    %c0_140 = arith.constant 0 : index
    %c0_141 = arith.constant 0 : index
    %207 = vector.load %arg13[%c0_139, %c0_140, %c0_141] : memref<2x1x64xf32, #tpu.memory_space<vmem>>, vector<1x1x64xf32>
    %208 = vector.shape_cast %207 : vector<1x1x64xf32> to vector<1x64xf32>
    %209 = vector.broadcast %208 : vector<1x64xf32> to vector<16x64xf32>
    %210 = arith.addf %206, %209 : vector<16x64xf32>
    %cst_142 = arith.constant 0.000000e+00 : f32
    %211 = vector.broadcast %cst_142 : f32 to vector<16x64xf32>
    %212 = arith.maximumf %210, %211 : vector<16x64xf32>
    %c0_143 = arith.constant 0 : index
    %c0_144 = arith.constant 0 : index
    %c0_145 = arith.constant 0 : index
    %213 = vector.load %arg14[%c0_143, %c0_144, %c0_145] : memref<2x64x32xf32, #tpu.memory_space<vmem>>, vector<1x64x32xf32>
    %214 = vector.shape_cast %213 : vector<1x64x32xf32> to vector<64x32xf32>
    %cst_146 = arith.constant dense<0.000000e+00> : vector<16x32xf32>
    %215 = tpu.matmul %212, %214, %cst_146 {dimension_numbers = #tpu.dot_dimension_numbers<[1], [0], [0], [1], [0, 0, 1, 1], [], []>} : vector<16x64xf32>, vector<64x32xf32>, vector<16x32xf32> -> vector<16x32xf32>
    %c0_147 = arith.constant 0 : index
    %c0_148 = arith.constant 0 : index
    %c0_149 = arith.constant 0 : index
    %216 = vector.load %arg15[%c0_147, %c0_148, %c0_149] : memref<2x1x32xf32, #tpu.memory_space<vmem>>, vector<1x1x32xf32>
    %217 = vector.shape_cast %216 : vector<1x1x32xf32> to vector<1x32xf32>
    %218 = vector.broadcast %217 : vector<1x32xf32> to vector<16x32xf32>
    %219 = arith.addf %215, %218 : vector<16x32xf32>
    %220 = arith.addf %203, %219 : vector<16x32xf32>
    %c0_150 = arith.constant 0 : index
    %c0_151 = arith.constant 0 : index
    %c0_152 = arith.constant 0 : index
    %221 = vector.load %arg18[%c0_150, %c0_151, %c0_152] : memref<2x1x32xf32, #tpu.memory_space<vmem>>, vector<1x1x32xf32>
    %222 = vector.shape_cast %221 : vector<1x1x32xf32> to vector<1x32xf32>
    %c0_153 = arith.constant 0 : index
    %c0_154 = arith.constant 0 : index
    %c0_155 = arith.constant 0 : index
    %223 = vector.load %arg19[%c0_153, %c0_154, %c0_155] : memref<2x1x32xf32, #tpu.memory_space<vmem>>, vector<1x1x32xf32>
    %224 = vector.shape_cast %223 : vector<1x1x32xf32> to vector<1x32xf32>
    %cst_156 = arith.constant dense<0.000000e+00> : vector<16xf32>
    %225 = vector.multi_reduction <add>, %220, %cst_156 [1] : vector<16x32xf32> to vector<16xf32>
    %226 = vector.shape_cast %225 : vector<16xf32> to vector<16x1xf32>
    %cst_157 = arith.constant 3.200000e+01 : f32
    %227 = vector.broadcast %cst_157 : f32 to vector<16x1xf32>
    %228 = arith.divf %226, %227 : vector<16x1xf32>
    %229 = vector.broadcast %228 : vector<16x1xf32> to vector<16x32xf32>
    %230 = arith.subf %220, %229 : vector<16x32xf32>
    %231 = arith.mulf %230, %230 : vector<16x32xf32>
    %cst_158 = arith.constant dense<0.000000e+00> : vector<16xf32>
    %232 = vector.multi_reduction <add>, %231, %cst_158 [1] : vector<16x32xf32> to vector<16xf32>
    %233 = vector.shape_cast %232 : vector<16xf32> to vector<16x1xf32>
    %cst_159 = arith.constant 3.200000e+01 : f32
    %234 = vector.broadcast %cst_159 : f32 to vector<16x1xf32>
    %235 = arith.divf %233, %234 : vector<16x1xf32>
    %236 = vector.broadcast %228 : vector<16x1xf32> to vector<16x32xf32>
    %237 = arith.subf %220, %236 : vector<16x32xf32>
    %cst_160 = arith.constant 9.99999974E-6 : f32
    %238 = vector.broadcast %cst_160 : f32 to vector<16x1xf32>
    %239 = arith.addf %235, %238 : vector<16x1xf32>
    %240 = math.rsqrt %239 : vector<16x1xf32>
    %241 = vector.broadcast %240 : vector<16x1xf32> to vector<16x32xf32>
    %242 = arith.mulf %237, %241 : vector<16x32xf32>
    %243 = vector.broadcast %222 : vector<1x32xf32> to vector<16x32xf32>
    %244 = arith.mulf %242, %243 : vector<16x32xf32>
    %245 = vector.broadcast %224 : vector<1x32xf32> to vector<16x32xf32>
    %246 = arith.addf %244, %245 : vector<16x32xf32>
    %cst_161 = arith.constant 0.000000e+00 : f32
    %247 = vector.broadcast %cst_161 : f32 to vector<16x32xf32>
    %c4 = arith.constant 4 : index
    %c0_162 = arith.constant 0 : index
    %c0_163 = arith.constant 0 : index
    %248 = vector.load %arg4[%c4, %c0_162, %c0_163] : memref<8x32x8xf32, #tpu.memory_space<vmem>>, vector<1x32x8xf32>
    %249 = vector.shape_cast %248 : vector<1x32x8xf32> to vector<32x8xf32>
    %cst_164 = arith.constant dense<0.000000e+00> : vector<16x8xf32>
    %250 = tpu.matmul %246, %249, %cst_164 {dimension_numbers = #tpu.dot_dimension_numbers<[1], [0], [0], [1], [0, 0, 1, 1], [], []>} : vector<16x32xf32>, vector<32x8xf32>, vector<16x8xf32> -> vector<16x8xf32>
    %c4_165 = arith.constant 4 : index
    %c0_166 = arith.constant 0 : index
    %c0_167 = arith.constant 0 : index
    %251 = vector.load %arg5[%c4_165, %c0_166, %c0_167] : memref<8x1x8xf32, #tpu.memory_space<vmem>>, vector<1x1x8xf32>
    %252 = vector.shape_cast %251 : vector<1x1x8xf32> to vector<1x8xf32>
    %253 = vector.broadcast %252 : vector<1x8xf32> to vector<16x8xf32>
    %254 = arith.addf %250, %253 : vector<16x8xf32>
    %c4_168 = arith.constant 4 : index
    %c0_169 = arith.constant 0 : index
    %c0_170 = arith.constant 0 : index
    %255 = vector.load %arg6[%c4_168, %c0_169, %c0_170] : memref<8x32x8xf32, #tpu.memory_space<vmem>>, vector<1x32x8xf32>
    %256 = vector.shape_cast %255 : vector<1x32x8xf32> to vector<32x8xf32>
    %cst_171 = arith.constant dense<0.000000e+00> : vector<16x8xf32>
    %257 = tpu.matmul %246, %256, %cst_171 {dimension_numbers = #tpu.dot_dimension_numbers<[1], [0], [0], [1], [0, 0, 1, 1], [], []>} : vector<16x32xf32>, vector<32x8xf32>, vector<16x8xf32> -> vector<16x8xf32>
    %c4_172 = arith.constant 4 : index
    %c0_173 = arith.constant 0 : index
    %c0_174 = arith.constant 0 : index
    %258 = vector.load %arg7[%c4_172, %c0_173, %c0_174] : memref<8x1x8xf32, #tpu.memory_space<vmem>>, vector<1x1x8xf32>
    %259 = vector.shape_cast %258 : vector<1x1x8xf32> to vector<1x8xf32>
    %260 = vector.broadcast %259 : vector<1x8xf32> to vector<16x8xf32>
    %261 = arith.addf %257, %260 : vector<16x8xf32>
    %c4_175 = arith.constant 4 : index
    %c0_176 = arith.constant 0 : index
    %c0_177 = arith.constant 0 : index
    %262 = vector.load %arg8[%c4_175, %c0_176, %c0_177] : memref<8x32x8xf32, #tpu.memory_space<vmem>>, vector<1x32x8xf32>
    %263 = vector.shape_cast %262 : vector<1x32x8xf32> to vector<32x8xf32>
    %cst_178 = arith.constant dense<0.000000e+00> : vector<16x8xf32>
    %264 = tpu.matmul %246, %263, %cst_178 {dimension_numbers = #tpu.dot_dimension_numbers<[1], [0], [0], [1], [0, 0, 1, 1], [], []>} : vector<16x32xf32>, vector<32x8xf32>, vector<16x8xf32> -> vector<16x8xf32>
    %c4_179 = arith.constant 4 : index
    %c0_180 = arith.constant 0 : index
    %c0_181 = arith.constant 0 : index
    %265 = vector.load %arg9[%c4_179, %c0_180, %c0_181] : memref<8x1x8xf32, #tpu.memory_space<vmem>>, vector<1x1x8xf32>
    %266 = vector.shape_cast %265 : vector<1x1x8xf32> to vector<1x8xf32>
    %267 = vector.broadcast %266 : vector<1x8xf32> to vector<16x8xf32>
    %268 = arith.addf %264, %267 : vector<16x8xf32>
    %269 = vector.shape_cast %254 : vector<16x8xf32> to vector<2x8x8xf32>
    %270 = vector.shape_cast %261 : vector<16x8xf32> to vector<2x8x8xf32>
    %271 = vector.shape_cast %268 : vector<16x8xf32> to vector<2x8x8xf32>
    "tpu.trace_start"() <{level = 10 : i32, message = "bqd,bkd->bqk"}> : () -> ()
    %cst_182 = arith.constant dense<0.000000e+00> : vector<2x8x8xf32>
    %272 = tpu.matmul %269, %270, %cst_182 {dimension_numbers = #tpu.dot_dimension_numbers<[2], [2], [1], [1], [0, 0, 0, 1, 1, 1], [0], [0]>} : vector<2x8x8xf32>, vector<2x8x8xf32>, vector<2x8x8xf32> -> vector<2x8x8xf32>
    "tpu.trace_stop"() : () -> ()
    %cst_183 = arith.constant dense<0xFF800000> : vector<2x8xf32>
    %273 = vector.multi_reduction <maximumf>, %272, %cst_183 [2] : vector<2x8x8xf32> to vector<2x8xf32>
    %274 = vector.shape_cast %273 : vector<2x8xf32> to vector<2x8x1xf32>
    %275 = vector.broadcast %274 : vector<2x8x1xf32> to vector<2x8x8xf32>
    %276 = arith.subf %272, %275 : vector<2x8x8xf32>
    %277 = math.exp %276 : vector<2x8x8xf32>
    %cst_184 = arith.constant dense<0.000000e+00> : vector<2x8xf32>
    %278 = vector.multi_reduction <add>, %277, %cst_184 [2] : vector<2x8x8xf32> to vector<2x8xf32>
    %279 = vector.shape_cast %278 : vector<2x8xf32> to vector<2x8x1xf32>
    %280 = tpu.reciprocal %279 {approx = true} : vector<2x8x1xf32> -> vector<2x8x1xf32>
    %281 = vector.broadcast %280 : vector<2x8x1xf32> to vector<2x8x8xf32>
    %282 = arith.mulf %277, %281 : vector<2x8x8xf32>
    "tpu.trace_start"() <{level = 10 : i32, message = "bqk,bkd->bqd"}> : () -> ()
    %cst_185 = arith.constant dense<0.000000e+00> : vector<2x8x8xf32>
    %283 = tpu.matmul %282, %271, %cst_185 {dimension_numbers = #tpu.dot_dimension_numbers<[2], [1], [1], [2], [0, 0, 0, 1, 1, 2], [0], [0]>} : vector<2x8x8xf32>, vector<2x8x8xf32>, vector<2x8x8xf32> -> vector<2x8x8xf32>
    "tpu.trace_stop"() : () -> ()
    %284 = vector.shape_cast %283 : vector<2x8x8xf32> to vector<16x8xf32>
    %c4_186 = arith.constant 4 : index
    %c0_187 = arith.constant 0 : index
    %c0_188 = arith.constant 0 : index
    %285 = vector.load %arg10[%c4_186, %c0_187, %c0_188] : memref<8x8x32xf32, #tpu.memory_space<vmem>>, vector<1x8x32xf32>
    %286 = vector.shape_cast %285 : vector<1x8x32xf32> to vector<8x32xf32>
    %cst_189 = arith.constant dense<0.000000e+00> : vector<16x32xf32>
    %287 = tpu.matmul %284, %286, %cst_189 {dimension_numbers = #tpu.dot_dimension_numbers<[1], [0], [0], [1], [0, 0, 1, 1], [], []>} : vector<16x8xf32>, vector<8x32xf32>, vector<16x32xf32> -> vector<16x32xf32>
    %288 = arith.addf %247, %287 : vector<16x32xf32>
    %c5 = arith.constant 5 : index
    %c0_190 = arith.constant 0 : index
    %c0_191 = arith.constant 0 : index
    %289 = vector.load %arg4[%c5, %c0_190, %c0_191] : memref<8x32x8xf32, #tpu.memory_space<vmem>>, vector<1x32x8xf32>
    %290 = vector.shape_cast %289 : vector<1x32x8xf32> to vector<32x8xf32>
    %cst_192 = arith.constant dense<0.000000e+00> : vector<16x8xf32>
    %291 = tpu.matmul %246, %290, %cst_192 {dimension_numbers = #tpu.dot_dimension_numbers<[1], [0], [0], [1], [0, 0, 1, 1], [], []>} : vector<16x32xf32>, vector<32x8xf32>, vector<16x8xf32> -> vector<16x8xf32>
    %c5_193 = arith.constant 5 : index
    %c0_194 = arith.constant 0 : index
    %c0_195 = arith.constant 0 : index
    %292 = vector.load %arg5[%c5_193, %c0_194, %c0_195] : memref<8x1x8xf32, #tpu.memory_space<vmem>>, vector<1x1x8xf32>
    %293 = vector.shape_cast %292 : vector<1x1x8xf32> to vector<1x8xf32>
    %294 = vector.broadcast %293 : vector<1x8xf32> to vector<16x8xf32>
    %295 = arith.addf %291, %294 : vector<16x8xf32>
    %c5_196 = arith.constant 5 : index
    %c0_197 = arith.constant 0 : index
    %c0_198 = arith.constant 0 : index
    %296 = vector.load %arg6[%c5_196, %c0_197, %c0_198] : memref<8x32x8xf32, #tpu.memory_space<vmem>>, vector<1x32x8xf32>
    %297 = vector.shape_cast %296 : vector<1x32x8xf32> to vector<32x8xf32>
    %cst_199 = arith.constant dense<0.000000e+00> : vector<16x8xf32>
    %298 = tpu.matmul %246, %297, %cst_199 {dimension_numbers = #tpu.dot_dimension_numbers<[1], [0], [0], [1], [0, 0, 1, 1], [], []>} : vector<16x32xf32>, vector<32x8xf32>, vector<16x8xf32> -> vector<16x8xf32>
    %c5_200 = arith.constant 5 : index
    %c0_201 = arith.constant 0 : index
    %c0_202 = arith.constant 0 : index
    %299 = vector.load %arg7[%c5_200, %c0_201, %c0_202] : memref<8x1x8xf32, #tpu.memory_space<vmem>>, vector<1x1x8xf32>
    %300 = vector.shape_cast %299 : vector<1x1x8xf32> to vector<1x8xf32>
    %301 = vector.broadcast %300 : vector<1x8xf32> to vector<16x8xf32>
    %302 = arith.addf %298, %301 : vector<16x8xf32>
    %c5_203 = arith.constant 5 : index
    %c0_204 = arith.constant 0 : index
    %c0_205 = arith.constant 0 : index
    %303 = vector.load %arg8[%c5_203, %c0_204, %c0_205] : memref<8x32x8xf32, #tpu.memory_space<vmem>>, vector<1x32x8xf32>
    %304 = vector.shape_cast %303 : vector<1x32x8xf32> to vector<32x8xf32>
    %cst_206 = arith.constant dense<0.000000e+00> : vector<16x8xf32>
    %305 = tpu.matmul %246, %304, %cst_206 {dimension_numbers = #tpu.dot_dimension_numbers<[1], [0], [0], [1], [0, 0, 1, 1], [], []>} : vector<16x32xf32>, vector<32x8xf32>, vector<16x8xf32> -> vector<16x8xf32>
    %c5_207 = arith.constant 5 : index
    %c0_208 = arith.constant 0 : index
    %c0_209 = arith.constant 0 : index
    %306 = vector.load %arg9[%c5_207, %c0_208, %c0_209] : memref<8x1x8xf32, #tpu.memory_space<vmem>>, vector<1x1x8xf32>
    %307 = vector.shape_cast %306 : vector<1x1x8xf32> to vector<1x8xf32>
    %308 = vector.broadcast %307 : vector<1x8xf32> to vector<16x8xf32>
    %309 = arith.addf %305, %308 : vector<16x8xf32>
    %310 = vector.shape_cast %295 : vector<16x8xf32> to vector<2x8x8xf32>
    %311 = vector.shape_cast %302 : vector<16x8xf32> to vector<2x8x8xf32>
    %312 = vector.shape_cast %309 : vector<16x8xf32> to vector<2x8x8xf32>
    "tpu.trace_start"() <{level = 10 : i32, message = "bqd,bkd->bqk"}> : () -> ()
    %cst_210 = arith.constant dense<0.000000e+00> : vector<2x8x8xf32>
    %313 = tpu.matmul %310, %311, %cst_210 {dimension_numbers = #tpu.dot_dimension_numbers<[2], [2], [1], [1], [0, 0, 0, 1, 1, 1], [0], [0]>} : vector<2x8x8xf32>, vector<2x8x8xf32>, vector<2x8x8xf32> -> vector<2x8x8xf32>
    "tpu.trace_stop"() : () -> ()
    %cst_211 = arith.constant dense<0xFF800000> : vector<2x8xf32>
    %314 = vector.multi_reduction <maximumf>, %313, %cst_211 [2] : vector<2x8x8xf32> to vector<2x8xf32>
    %315 = vector.shape_cast %314 : vector<2x8xf32> to vector<2x8x1xf32>
    %316 = vector.broadcast %315 : vector<2x8x1xf32> to vector<2x8x8xf32>
    %317 = arith.subf %313, %316 : vector<2x8x8xf32>
    %318 = math.exp %317 : vector<2x8x8xf32>
    %cst_212 = arith.constant dense<0.000000e+00> : vector<2x8xf32>
    %319 = vector.multi_reduction <add>, %318, %cst_212 [2] : vector<2x8x8xf32> to vector<2x8xf32>
    %320 = vector.shape_cast %319 : vector<2x8xf32> to vector<2x8x1xf32>
    %321 = tpu.reciprocal %320 {approx = true} : vector<2x8x1xf32> -> vector<2x8x1xf32>
    %322 = vector.broadcast %321 : vector<2x8x1xf32> to vector<2x8x8xf32>
    %323 = arith.mulf %318, %322 : vector<2x8x8xf32>
    "tpu.trace_start"() <{level = 10 : i32, message = "bqk,bkd->bqd"}> : () -> ()
    %cst_213 = arith.constant dense<0.000000e+00> : vector<2x8x8xf32>
    %324 = tpu.matmul %323, %312, %cst_213 {dimension_numbers = #tpu.dot_dimension_numbers<[2], [1], [1], [2], [0, 0, 0, 1, 1, 2], [0], [0]>} : vector<2x8x8xf32>, vector<2x8x8xf32>, vector<2x8x8xf32> -> vector<2x8x8xf32>
    "tpu.trace_stop"() : () -> ()
    %325 = vector.shape_cast %324 : vector<2x8x8xf32> to vector<16x8xf32>
    %c5_214 = arith.constant 5 : index
    %c0_215 = arith.constant 0 : index
    %c0_216 = arith.constant 0 : index
    %326 = vector.load %arg10[%c5_214, %c0_215, %c0_216] : memref<8x8x32xf32, #tpu.memory_space<vmem>>, vector<1x8x32xf32>
    %327 = vector.shape_cast %326 : vector<1x8x32xf32> to vector<8x32xf32>
    %cst_217 = arith.constant dense<0.000000e+00> : vector<16x32xf32>
    %328 = tpu.matmul %325, %327, %cst_217 {dimension_numbers = #tpu.dot_dimension_numbers<[1], [0], [0], [1], [0, 0, 1, 1], [], []>} : vector<16x8xf32>, vector<8x32xf32>, vector<16x32xf32> -> vector<16x32xf32>
    %329 = arith.addf %288, %328 : vector<16x32xf32>
    %c6 = arith.constant 6 : index
    %c0_218 = arith.constant 0 : index
    %c0_219 = arith.constant 0 : index
    %330 = vector.load %arg4[%c6, %c0_218, %c0_219] : memref<8x32x8xf32, #tpu.memory_space<vmem>>, vector<1x32x8xf32>
    %331 = vector.shape_cast %330 : vector<1x32x8xf32> to vector<32x8xf32>
    %cst_220 = arith.constant dense<0.000000e+00> : vector<16x8xf32>
    %332 = tpu.matmul %246, %331, %cst_220 {dimension_numbers = #tpu.dot_dimension_numbers<[1], [0], [0], [1], [0, 0, 1, 1], [], []>} : vector<16x32xf32>, vector<32x8xf32>, vector<16x8xf32> -> vector<16x8xf32>
    %c6_221 = arith.constant 6 : index
    %c0_222 = arith.constant 0 : index
    %c0_223 = arith.constant 0 : index
    %333 = vector.load %arg5[%c6_221, %c0_222, %c0_223] : memref<8x1x8xf32, #tpu.memory_space<vmem>>, vector<1x1x8xf32>
    %334 = vector.shape_cast %333 : vector<1x1x8xf32> to vector<1x8xf32>
    %335 = vector.broadcast %334 : vector<1x8xf32> to vector<16x8xf32>
    %336 = arith.addf %332, %335 : vector<16x8xf32>
    %c6_224 = arith.constant 6 : index
    %c0_225 = arith.constant 0 : index
    %c0_226 = arith.constant 0 : index
    %337 = vector.load %arg6[%c6_224, %c0_225, %c0_226] : memref<8x32x8xf32, #tpu.memory_space<vmem>>, vector<1x32x8xf32>
    %338 = vector.shape_cast %337 : vector<1x32x8xf32> to vector<32x8xf32>
    %cst_227 = arith.constant dense<0.000000e+00> : vector<16x8xf32>
    %339 = tpu.matmul %246, %338, %cst_227 {dimension_numbers = #tpu.dot_dimension_numbers<[1], [0], [0], [1], [0, 0, 1, 1], [], []>} : vector<16x32xf32>, vector<32x8xf32>, vector<16x8xf32> -> vector<16x8xf32>
    %c6_228 = arith.constant 6 : index
    %c0_229 = arith.constant 0 : index
    %c0_230 = arith.constant 0 : index
    %340 = vector.load %arg7[%c6_228, %c0_229, %c0_230] : memref<8x1x8xf32, #tpu.memory_space<vmem>>, vector<1x1x8xf32>
    %341 = vector.shape_cast %340 : vector<1x1x8xf32> to vector<1x8xf32>
    %342 = vector.broadcast %341 : vector<1x8xf32> to vector<16x8xf32>
    %343 = arith.addf %339, %342 : vector<16x8xf32>
    %c6_231 = arith.constant 6 : index
    %c0_232 = arith.constant 0 : index
    %c0_233 = arith.constant 0 : index
    %344 = vector.load %arg8[%c6_231, %c0_232, %c0_233] : memref<8x32x8xf32, #tpu.memory_space<vmem>>, vector<1x32x8xf32>
    %345 = vector.shape_cast %344 : vector<1x32x8xf32> to vector<32x8xf32>
    %cst_234 = arith.constant dense<0.000000e+00> : vector<16x8xf32>
    %346 = tpu.matmul %246, %345, %cst_234 {dimension_numbers = #tpu.dot_dimension_numbers<[1], [0], [0], [1], [0, 0, 1, 1], [], []>} : vector<16x32xf32>, vector<32x8xf32>, vector<16x8xf32> -> vector<16x8xf32>
    %c6_235 = arith.constant 6 : index
    %c0_236 = arith.constant 0 : index
    %c0_237 = arith.constant 0 : index
    %347 = vector.load %arg9[%c6_235, %c0_236, %c0_237] : memref<8x1x8xf32, #tpu.memory_space<vmem>>, vector<1x1x8xf32>
    %348 = vector.shape_cast %347 : vector<1x1x8xf32> to vector<1x8xf32>
    %349 = vector.broadcast %348 : vector<1x8xf32> to vector<16x8xf32>
    %350 = arith.addf %346, %349 : vector<16x8xf32>
    %351 = vector.shape_cast %336 : vector<16x8xf32> to vector<2x8x8xf32>
    %352 = vector.shape_cast %343 : vector<16x8xf32> to vector<2x8x8xf32>
    %353 = vector.shape_cast %350 : vector<16x8xf32> to vector<2x8x8xf32>
    "tpu.trace_start"() <{level = 10 : i32, message = "bqd,bkd->bqk"}> : () -> ()
    %cst_238 = arith.constant dense<0.000000e+00> : vector<2x8x8xf32>
    %354 = tpu.matmul %351, %352, %cst_238 {dimension_numbers = #tpu.dot_dimension_numbers<[2], [2], [1], [1], [0, 0, 0, 1, 1, 1], [0], [0]>} : vector<2x8x8xf32>, vector<2x8x8xf32>, vector<2x8x8xf32> -> vector<2x8x8xf32>
    "tpu.trace_stop"() : () -> ()
    %cst_239 = arith.constant dense<0xFF800000> : vector<2x8xf32>
    %355 = vector.multi_reduction <maximumf>, %354, %cst_239 [2] : vector<2x8x8xf32> to vector<2x8xf32>
    %356 = vector.shape_cast %355 : vector<2x8xf32> to vector<2x8x1xf32>
    %357 = vector.broadcast %356 : vector<2x8x1xf32> to vector<2x8x8xf32>
    %358 = arith.subf %354, %357 : vector<2x8x8xf32>
    %359 = math.exp %358 : vector<2x8x8xf32>
    %cst_240 = arith.constant dense<0.000000e+00> : vector<2x8xf32>
    %360 = vector.multi_reduction <add>, %359, %cst_240 [2] : vector<2x8x8xf32> to vector<2x8xf32>
    %361 = vector.shape_cast %360 : vector<2x8xf32> to vector<2x8x1xf32>
    %362 = tpu.reciprocal %361 {approx = true} : vector<2x8x1xf32> -> vector<2x8x1xf32>
    %363 = vector.broadcast %362 : vector<2x8x1xf32> to vector<2x8x8xf32>
    %364 = arith.mulf %359, %363 : vector<2x8x8xf32>
    "tpu.trace_start"() <{level = 10 : i32, message = "bqk,bkd->bqd"}> : () -> ()
    %cst_241 = arith.constant dense<0.000000e+00> : vector<2x8x8xf32>
    %365 = tpu.matmul %364, %353, %cst_241 {dimension_numbers = #tpu.dot_dimension_numbers<[2], [1], [1], [2], [0, 0, 0, 1, 1, 2], [0], [0]>} : vector<2x8x8xf32>, vector<2x8x8xf32>, vector<2x8x8xf32> -> vector<2x8x8xf32>
    "tpu.trace_stop"() : () -> ()
    %366 = vector.shape_cast %365 : vector<2x8x8xf32> to vector<16x8xf32>
    %c6_242 = arith.constant 6 : index
    %c0_243 = arith.constant 0 : index
    %c0_244 = arith.constant 0 : index
    %367 = vector.load %arg10[%c6_242, %c0_243, %c0_244] : memref<8x8x32xf32, #tpu.memory_space<vmem>>, vector<1x8x32xf32>
    %368 = vector.shape_cast %367 : vector<1x8x32xf32> to vector<8x32xf32>
    %cst_245 = arith.constant dense<0.000000e+00> : vector<16x32xf32>
    %369 = tpu.matmul %366, %368, %cst_245 {dimension_numbers = #tpu.dot_dimension_numbers<[1], [0], [0], [1], [0, 0, 1, 1], [], []>} : vector<16x8xf32>, vector<8x32xf32>, vector<16x32xf32> -> vector<16x32xf32>
    %370 = arith.addf %329, %369 : vector<16x32xf32>
    %c7 = arith.constant 7 : index
    %c0_246 = arith.constant 0 : index
    %c0_247 = arith.constant 0 : index
    %371 = vector.load %arg4[%c7, %c0_246, %c0_247] : memref<8x32x8xf32, #tpu.memory_space<vmem>>, vector<1x32x8xf32>
    %372 = vector.shape_cast %371 : vector<1x32x8xf32> to vector<32x8xf32>
    %cst_248 = arith.constant dense<0.000000e+00> : vector<16x8xf32>
    %373 = tpu.matmul %246, %372, %cst_248 {dimension_numbers = #tpu.dot_dimension_numbers<[1], [0], [0], [1], [0, 0, 1, 1], [], []>} : vector<16x32xf32>, vector<32x8xf32>, vector<16x8xf32> -> vector<16x8xf32>
    %c7_249 = arith.constant 7 : index
    %c0_250 = arith.constant 0 : index
    %c0_251 = arith.constant 0 : index
    %374 = vector.load %arg5[%c7_249, %c0_250, %c0_251] : memref<8x1x8xf32, #tpu.memory_space<vmem>>, vector<1x1x8xf32>
    %375 = vector.shape_cast %374 : vector<1x1x8xf32> to vector<1x8xf32>
    %376 = vector.broadcast %375 : vector<1x8xf32> to vector<16x8xf32>
    %377 = arith.addf %373, %376 : vector<16x8xf32>
    %c7_252 = arith.constant 7 : index
    %c0_253 = arith.constant 0 : index
    %c0_254 = arith.constant 0 : index
    %378 = vector.load %arg6[%c7_252, %c0_253, %c0_254] : memref<8x32x8xf32, #tpu.memory_space<vmem>>, vector<1x32x8xf32>
    %379 = vector.shape_cast %378 : vector<1x32x8xf32> to vector<32x8xf32>
    %cst_255 = arith.constant dense<0.000000e+00> : vector<16x8xf32>
    %380 = tpu.matmul %246, %379, %cst_255 {dimension_numbers = #tpu.dot_dimension_numbers<[1], [0], [0], [1], [0, 0, 1, 1], [], []>} : vector<16x32xf32>, vector<32x8xf32>, vector<16x8xf32> -> vector<16x8xf32>
    %c7_256 = arith.constant 7 : index
    %c0_257 = arith.constant 0 : index
    %c0_258 = arith.constant 0 : index
    %381 = vector.load %arg7[%c7_256, %c0_257, %c0_258] : memref<8x1x8xf32, #tpu.memory_space<vmem>>, vector<1x1x8xf32>
    %382 = vector.shape_cast %381 : vector<1x1x8xf32> to vector<1x8xf32>
    %383 = vector.broadcast %382 : vector<1x8xf32> to vector<16x8xf32>
    %384 = arith.addf %380, %383 : vector<16x8xf32>
    %c7_259 = arith.constant 7 : index
    %c0_260 = arith.constant 0 : index
    %c0_261 = arith.constant 0 : index
    %385 = vector.load %arg8[%c7_259, %c0_260, %c0_261] : memref<8x32x8xf32, #tpu.memory_space<vmem>>, vector<1x32x8xf32>
    %386 = vector.shape_cast %385 : vector<1x32x8xf32> to vector<32x8xf32>
    %cst_262 = arith.constant dense<0.000000e+00> : vector<16x8xf32>
    %387 = tpu.matmul %246, %386, %cst_262 {dimension_numbers = #tpu.dot_dimension_numbers<[1], [0], [0], [1], [0, 0, 1, 1], [], []>} : vector<16x32xf32>, vector<32x8xf32>, vector<16x8xf32> -> vector<16x8xf32>
    %c7_263 = arith.constant 7 : index
    %c0_264 = arith.constant 0 : index
    %c0_265 = arith.constant 0 : index
    %388 = vector.load %arg9[%c7_263, %c0_264, %c0_265] : memref<8x1x8xf32, #tpu.memory_space<vmem>>, vector<1x1x8xf32>
    %389 = vector.shape_cast %388 : vector<1x1x8xf32> to vector<1x8xf32>
    %390 = vector.broadcast %389 : vector<1x8xf32> to vector<16x8xf32>
    %391 = arith.addf %387, %390 : vector<16x8xf32>
    %392 = vector.shape_cast %377 : vector<16x8xf32> to vector<2x8x8xf32>
    %393 = vector.shape_cast %384 : vector<16x8xf32> to vector<2x8x8xf32>
    %394 = vector.shape_cast %391 : vector<16x8xf32> to vector<2x8x8xf32>
    "tpu.trace_start"() <{level = 10 : i32, message = "bqd,bkd->bqk"}> : () -> ()
    %cst_266 = arith.constant dense<0.000000e+00> : vector<2x8x8xf32>
    %395 = tpu.matmul %392, %393, %cst_266 {dimension_numbers = #tpu.dot_dimension_numbers<[2], [2], [1], [1], [0, 0, 0, 1, 1, 1], [0], [0]>} : vector<2x8x8xf32>, vector<2x8x8xf32>, vector<2x8x8xf32> -> vector<2x8x8xf32>
    "tpu.trace_stop"() : () -> ()
    %cst_267 = arith.constant dense<0xFF800000> : vector<2x8xf32>
    %396 = vector.multi_reduction <maximumf>, %395, %cst_267 [2] : vector<2x8x8xf32> to vector<2x8xf32>
    %397 = vector.shape_cast %396 : vector<2x8xf32> to vector<2x8x1xf32>
    %398 = vector.broadcast %397 : vector<2x8x1xf32> to vector<2x8x8xf32>
    %399 = arith.subf %395, %398 : vector<2x8x8xf32>
    %400 = math.exp %399 : vector<2x8x8xf32>
    %cst_268 = arith.constant dense<0.000000e+00> : vector<2x8xf32>
    %401 = vector.multi_reduction <add>, %400, %cst_268 [2] : vector<2x8x8xf32> to vector<2x8xf32>
    %402 = vector.shape_cast %401 : vector<2x8xf32> to vector<2x8x1xf32>
    %403 = tpu.reciprocal %402 {approx = true} : vector<2x8x1xf32> -> vector<2x8x1xf32>
    %404 = vector.broadcast %403 : vector<2x8x1xf32> to vector<2x8x8xf32>
    %405 = arith.mulf %400, %404 : vector<2x8x8xf32>
    "tpu.trace_start"() <{level = 10 : i32, message = "bqk,bkd->bqd"}> : () -> ()
    %cst_269 = arith.constant dense<0.000000e+00> : vector<2x8x8xf32>
    %406 = tpu.matmul %405, %394, %cst_269 {dimension_numbers = #tpu.dot_dimension_numbers<[2], [1], [1], [2], [0, 0, 0, 1, 1, 2], [0], [0]>} : vector<2x8x8xf32>, vector<2x8x8xf32>, vector<2x8x8xf32> -> vector<2x8x8xf32>
    "tpu.trace_stop"() : () -> ()
    %407 = vector.shape_cast %406 : vector<2x8x8xf32> to vector<16x8xf32>
    %c7_270 = arith.constant 7 : index
    %c0_271 = arith.constant 0 : index
    %c0_272 = arith.constant 0 : index
    %408 = vector.load %arg10[%c7_270, %c0_271, %c0_272] : memref<8x8x32xf32, #tpu.memory_space<vmem>>, vector<1x8x32xf32>
    %409 = vector.shape_cast %408 : vector<1x8x32xf32> to vector<8x32xf32>
    %cst_273 = arith.constant dense<0.000000e+00> : vector<16x32xf32>
    %410 = tpu.matmul %407, %409, %cst_273 {dimension_numbers = #tpu.dot_dimension_numbers<[1], [0], [0], [1], [0, 0, 1, 1], [], []>} : vector<16x8xf32>, vector<8x32xf32>, vector<16x32xf32> -> vector<16x32xf32>
    %411 = arith.addf %370, %410 : vector<16x32xf32>
    %c1_274 = arith.constant 1 : index
    %c0_275 = arith.constant 0 : index
    %c0_276 = arith.constant 0 : index
    %412 = vector.load %arg11[%c1_274, %c0_275, %c0_276] : memref<2x1x32xf32, #tpu.memory_space<vmem>>, vector<1x1x32xf32>
    %413 = vector.shape_cast %412 : vector<1x1x32xf32> to vector<1x32xf32>
    %414 = vector.broadcast %413 : vector<1x32xf32> to vector<16x32xf32>
    %415 = arith.addf %411, %414 : vector<16x32xf32>
    %416 = arith.addf %246, %415 : vector<16x32xf32>
    %c1_277 = arith.constant 1 : index
    %c0_278 = arith.constant 0 : index
    %c0_279 = arith.constant 0 : index
    %417 = vector.load %arg16[%c1_277, %c0_278, %c0_279] : memref<2x1x32xf32, #tpu.memory_space<vmem>>, vector<1x1x32xf32>
    %418 = vector.shape_cast %417 : vector<1x1x32xf32> to vector<1x32xf32>
    %c1_280 = arith.constant 1 : index
    %c0_281 = arith.constant 0 : index
    %c0_282 = arith.constant 0 : index
    %419 = vector.load %arg17[%c1_280, %c0_281, %c0_282] : memref<2x1x32xf32, #tpu.memory_space<vmem>>, vector<1x1x32xf32>
    %420 = vector.shape_cast %419 : vector<1x1x32xf32> to vector<1x32xf32>
    %cst_283 = arith.constant dense<0.000000e+00> : vector<16xf32>
    %421 = vector.multi_reduction <add>, %416, %cst_283 [1] : vector<16x32xf32> to vector<16xf32>
    %422 = vector.shape_cast %421 : vector<16xf32> to vector<16x1xf32>
    %cst_284 = arith.constant 3.200000e+01 : f32
    %423 = vector.broadcast %cst_284 : f32 to vector<16x1xf32>
    %424 = arith.divf %422, %423 : vector<16x1xf32>
    %425 = vector.broadcast %424 : vector<16x1xf32> to vector<16x32xf32>
    %426 = arith.subf %416, %425 : vector<16x32xf32>
    %427 = arith.mulf %426, %426 : vector<16x32xf32>
    %cst_285 = arith.constant dense<0.000000e+00> : vector<16xf32>
    %428 = vector.multi_reduction <add>, %427, %cst_285 [1] : vector<16x32xf32> to vector<16xf32>
    %429 = vector.shape_cast %428 : vector<16xf32> to vector<16x1xf32>
    %cst_286 = arith.constant 3.200000e+01 : f32
    %430 = vector.broadcast %cst_286 : f32 to vector<16x1xf32>
    %431 = arith.divf %429, %430 : vector<16x1xf32>
    %432 = vector.broadcast %424 : vector<16x1xf32> to vector<16x32xf32>
    %433 = arith.subf %416, %432 : vector<16x32xf32>
    %cst_287 = arith.constant 9.99999974E-6 : f32
    %434 = vector.broadcast %cst_287 : f32 to vector<16x1xf32>
    %435 = arith.addf %431, %434 : vector<16x1xf32>
    %436 = math.rsqrt %435 : vector<16x1xf32>
    %437 = vector.broadcast %436 : vector<16x1xf32> to vector<16x32xf32>
    %438 = arith.mulf %433, %437 : vector<16x32xf32>
    %439 = vector.broadcast %418 : vector<1x32xf32> to vector<16x32xf32>
    %440 = arith.mulf %438, %439 : vector<16x32xf32>
    %441 = vector.broadcast %420 : vector<1x32xf32> to vector<16x32xf32>
    %442 = arith.addf %440, %441 : vector<16x32xf32>
    %c1_288 = arith.constant 1 : index
    %c0_289 = arith.constant 0 : index
    %c0_290 = arith.constant 0 : index
    %443 = vector.load %arg12[%c1_288, %c0_289, %c0_290] : memref<2x32x64xf32, #tpu.memory_space<vmem>>, vector<1x32x64xf32>
    %444 = vector.shape_cast %443 : vector<1x32x64xf32> to vector<32x64xf32>
    %cst_291 = arith.constant dense<0.000000e+00> : vector<16x64xf32>
    %445 = tpu.matmul %442, %444, %cst_291 {dimension_numbers = #tpu.dot_dimension_numbers<[1], [0], [0], [1], [0, 0, 1, 1], [], []>} : vector<16x32xf32>, vector<32x64xf32>, vector<16x64xf32> -> vector<16x64xf32>
    %c1_292 = arith.constant 1 : index
    %c0_293 = arith.constant 0 : index
    %c0_294 = arith.constant 0 : index
    %446 = vector.load %arg13[%c1_292, %c0_293, %c0_294] : memref<2x1x64xf32, #tpu.memory_space<vmem>>, vector<1x1x64xf32>
    %447 = vector.shape_cast %446 : vector<1x1x64xf32> to vector<1x64xf32>
    %448 = vector.broadcast %447 : vector<1x64xf32> to vector<16x64xf32>
    %449 = arith.addf %445, %448 : vector<16x64xf32>
    %cst_295 = arith.constant 0.000000e+00 : f32
    %450 = vector.broadcast %cst_295 : f32 to vector<16x64xf32>
    %451 = arith.maximumf %449, %450 : vector<16x64xf32>
    %c1_296 = arith.constant 1 : index
    %c0_297 = arith.constant 0 : index
    %c0_298 = arith.constant 0 : index
    %452 = vector.load %arg14[%c1_296, %c0_297, %c0_298] : memref<2x64x32xf32, #tpu.memory_space<vmem>>, vector<1x64x32xf32>
    %453 = vector.shape_cast %452 : vector<1x64x32xf32> to vector<64x32xf32>
    %cst_299 = arith.constant dense<0.000000e+00> : vector<16x32xf32>
    %454 = tpu.matmul %451, %453, %cst_299 {dimension_numbers = #tpu.dot_dimension_numbers<[1], [0], [0], [1], [0, 0, 1, 1], [], []>} : vector<16x64xf32>, vector<64x32xf32>, vector<16x32xf32> -> vector<16x32xf32>
    %c1_300 = arith.constant 1 : index
    %c0_301 = arith.constant 0 : index
    %c0_302 = arith.constant 0 : index
    %455 = vector.load %arg15[%c1_300, %c0_301, %c0_302] : memref<2x1x32xf32, #tpu.memory_space<vmem>>, vector<1x1x32xf32>
    %456 = vector.shape_cast %455 : vector<1x1x32xf32> to vector<1x32xf32>
    %457 = vector.broadcast %456 : vector<1x32xf32> to vector<16x32xf32>
    %458 = arith.addf %454, %457 : vector<16x32xf32>
    %459 = arith.addf %442, %458 : vector<16x32xf32>
    %c1_303 = arith.constant 1 : index
    %c0_304 = arith.constant 0 : index
    %c0_305 = arith.constant 0 : index
    %460 = vector.load %arg18[%c1_303, %c0_304, %c0_305] : memref<2x1x32xf32, #tpu.memory_space<vmem>>, vector<1x1x32xf32>
    %461 = vector.shape_cast %460 : vector<1x1x32xf32> to vector<1x32xf32>
    %c1_306 = arith.constant 1 : index
    %c0_307 = arith.constant 0 : index
    %c0_308 = arith.constant 0 : index
    %462 = vector.load %arg19[%c1_306, %c0_307, %c0_308] : memref<2x1x32xf32, #tpu.memory_space<vmem>>, vector<1x1x32xf32>
    %463 = vector.shape_cast %462 : vector<1x1x32xf32> to vector<1x32xf32>
    %cst_309 = arith.constant dense<0.000000e+00> : vector<16xf32>
    %464 = vector.multi_reduction <add>, %459, %cst_309 [1] : vector<16x32xf32> to vector<16xf32>
    %465 = vector.shape_cast %464 : vector<16xf32> to vector<16x1xf32>
    %cst_310 = arith.constant 3.200000e+01 : f32
    %466 = vector.broadcast %cst_310 : f32 to vector<16x1xf32>
    %467 = arith.divf %465, %466 : vector<16x1xf32>
    %468 = vector.broadcast %467 : vector<16x1xf32> to vector<16x32xf32>
    %469 = arith.subf %459, %468 : vector<16x32xf32>
    %470 = arith.mulf %469, %469 : vector<16x32xf32>
    %cst_311 = arith.constant dense<0.000000e+00> : vector<16xf32>
    %471 = vector.multi_reduction <add>, %470, %cst_311 [1] : vector<16x32xf32> to vector<16xf32>
    %472 = vector.shape_cast %471 : vector<16xf32> to vector<16x1xf32>
    %cst_312 = arith.constant 3.200000e+01 : f32
    %473 = vector.broadcast %cst_312 : f32 to vector<16x1xf32>
    %474 = arith.divf %472, %473 : vector<16x1xf32>
    %475 = vector.broadcast %467 : vector<16x1xf32> to vector<16x32xf32>
    %476 = arith.subf %459, %475 : vector<16x32xf32>
    %cst_313 = arith.constant 9.99999974E-6 : f32
    %477 = vector.broadcast %cst_313 : f32 to vector<16x1xf32>
    %478 = arith.addf %474, %477 : vector<16x1xf32>
    %479 = math.rsqrt %478 : vector<16x1xf32>
    %480 = vector.broadcast %479 : vector<16x1xf32> to vector<16x32xf32>
    %481 = arith.mulf %476, %480 : vector<16x32xf32>
    %482 = vector.broadcast %461 : vector<1x32xf32> to vector<16x32xf32>
    %483 = arith.mulf %481, %482 : vector<16x32xf32>
    %484 = vector.broadcast %463 : vector<1x32xf32> to vector<16x32xf32>
    %485 = arith.addf %483, %484 : vector<16x32xf32>
    %cst_314 = arith.constant 0.000000e+00 : f32
    %486 = vector.broadcast %cst_314 : f32 to vector<2x16xf32>
    %c0_315 = arith.constant 0 : index
    %c0_316 = arith.constant 0 : index
    %c0_317 = arith.constant 0 : index
    %487 = vector.load %arg20[%c0_315, %c0_316, %c0_317] : memref<8x2x16xf32, #tpu.memory_space<vmem>>, vector<1x2x16xf32>
    %488 = vector.shape_cast %487 : vector<1x2x16xf32> to vector<2x16xf32>
    %cst_318 = arith.constant dense<0.000000e+00> : vector<2x32xf32>
    %489 = tpu.matmul %488, %485, %cst_318 {dimension_numbers = #tpu.dot_dimension_numbers<[1], [0], [0], [1], [0, 0, 1, 1], [], []>} : vector<2x16xf32>, vector<16x32xf32>, vector<2x32xf32> -> vector<2x32xf32>
    %c0_319 = arith.constant 0 : index
    %c0_320 = arith.constant 0 : index
    %c0_321 = arith.constant 0 : index
    %490 = vector.load %arg21[%c0_319, %c0_320, %c0_321] : memref<8x32x16xf32, #tpu.memory_space<vmem>>, vector<1x32x16xf32>
    %491 = vector.shape_cast %490 : vector<1x32x16xf32> to vector<32x16xf32>
    %cst_322 = arith.constant dense<0.000000e+00> : vector<2x16xf32>
    %492 = tpu.matmul %489, %491, %cst_322 {dimension_numbers = #tpu.dot_dimension_numbers<[1], [0], [0], [1], [0, 0, 1, 1], [], []>} : vector<2x32xf32>, vector<32x16xf32>, vector<2x16xf32> -> vector<2x16xf32>
    %493 = arith.addf %486, %492 : vector<2x16xf32>
    %c1_323 = arith.constant 1 : index
    %c0_324 = arith.constant 0 : index
    %c0_325 = arith.constant 0 : index
    %494 = vector.load %arg20[%c1_323, %c0_324, %c0_325] : memref<8x2x16xf32, #tpu.memory_space<vmem>>, vector<1x2x16xf32>
    %495 = vector.shape_cast %494 : vector<1x2x16xf32> to vector<2x16xf32>
    %cst_326 = arith.constant dense<0.000000e+00> : vector<2x32xf32>
    %496 = tpu.matmul %495, %485, %cst_326 {dimension_numbers = #tpu.dot_dimension_numbers<[1], [0], [0], [1], [0, 0, 1, 1], [], []>} : vector<2x16xf32>, vector<16x32xf32>, vector<2x32xf32> -> vector<2x32xf32>
    %c1_327 = arith.constant 1 : index
    %c0_328 = arith.constant 0 : index
    %c0_329 = arith.constant 0 : index
    %497 = vector.load %arg21[%c1_327, %c0_328, %c0_329] : memref<8x32x16xf32, #tpu.memory_space<vmem>>, vector<1x32x16xf32>
    %498 = vector.shape_cast %497 : vector<1x32x16xf32> to vector<32x16xf32>
    %cst_330 = arith.constant dense<0.000000e+00> : vector<2x16xf32>
    %499 = tpu.matmul %496, %498, %cst_330 {dimension_numbers = #tpu.dot_dimension_numbers<[1], [0], [0], [1], [0, 0, 1, 1], [], []>} : vector<2x32xf32>, vector<32x16xf32>, vector<2x16xf32> -> vector<2x16xf32>
    %500 = arith.addf %493, %499 : vector<2x16xf32>
    %c2_331 = arith.constant 2 : index
    %c0_332 = arith.constant 0 : index
    %c0_333 = arith.constant 0 : index
    %501 = vector.load %arg20[%c2_331, %c0_332, %c0_333] : memref<8x2x16xf32, #tpu.memory_space<vmem>>, vector<1x2x16xf32>
    %502 = vector.shape_cast %501 : vector<1x2x16xf32> to vector<2x16xf32>
    %cst_334 = arith.constant dense<0.000000e+00> : vector<2x32xf32>
    %503 = tpu.matmul %502, %485, %cst_334 {dimension_numbers = #tpu.dot_dimension_numbers<[1], [0], [0], [1], [0, 0, 1, 1], [], []>} : vector<2x16xf32>, vector<16x32xf32>, vector<2x32xf32> -> vector<2x32xf32>
    %c2_335 = arith.constant 2 : index
    %c0_336 = arith.constant 0 : index
    %c0_337 = arith.constant 0 : index
    %504 = vector.load %arg21[%c2_335, %c0_336, %c0_337] : memref<8x32x16xf32, #tpu.memory_space<vmem>>, vector<1x32x16xf32>
    %505 = vector.shape_cast %504 : vector<1x32x16xf32> to vector<32x16xf32>
    %cst_338 = arith.constant dense<0.000000e+00> : vector<2x16xf32>
    %506 = tpu.matmul %503, %505, %cst_338 {dimension_numbers = #tpu.dot_dimension_numbers<[1], [0], [0], [1], [0, 0, 1, 1], [], []>} : vector<2x32xf32>, vector<32x16xf32>, vector<2x16xf32> -> vector<2x16xf32>
    %507 = arith.addf %500, %506 : vector<2x16xf32>
    %c3_339 = arith.constant 3 : index
    %c0_340 = arith.constant 0 : index
    %c0_341 = arith.constant 0 : index
    %508 = vector.load %arg20[%c3_339, %c0_340, %c0_341] : memref<8x2x16xf32, #tpu.memory_space<vmem>>, vector<1x2x16xf32>
    %509 = vector.shape_cast %508 : vector<1x2x16xf32> to vector<2x16xf32>
    %cst_342 = arith.constant dense<0.000000e+00> : vector<2x32xf32>
    %510 = tpu.matmul %509, %485, %cst_342 {dimension_numbers = #tpu.dot_dimension_numbers<[1], [0], [0], [1], [0, 0, 1, 1], [], []>} : vector<2x16xf32>, vector<16x32xf32>, vector<2x32xf32> -> vector<2x32xf32>
    %c3_343 = arith.constant 3 : index
    %c0_344 = arith.constant 0 : index
    %c0_345 = arith.constant 0 : index
    %511 = vector.load %arg21[%c3_343, %c0_344, %c0_345] : memref<8x32x16xf32, #tpu.memory_space<vmem>>, vector<1x32x16xf32>
    %512 = vector.shape_cast %511 : vector<1x32x16xf32> to vector<32x16xf32>
    %cst_346 = arith.constant dense<0.000000e+00> : vector<2x16xf32>
    %513 = tpu.matmul %510, %512, %cst_346 {dimension_numbers = #tpu.dot_dimension_numbers<[1], [0], [0], [1], [0, 0, 1, 1], [], []>} : vector<2x32xf32>, vector<32x16xf32>, vector<2x16xf32> -> vector<2x16xf32>
    %514 = arith.addf %507, %513 : vector<2x16xf32>
    %c4_347 = arith.constant 4 : index
    %c0_348 = arith.constant 0 : index
    %c0_349 = arith.constant 0 : index
    %515 = vector.load %arg20[%c4_347, %c0_348, %c0_349] : memref<8x2x16xf32, #tpu.memory_space<vmem>>, vector<1x2x16xf32>
    %516 = vector.shape_cast %515 : vector<1x2x16xf32> to vector<2x16xf32>
    %cst_350 = arith.constant dense<0.000000e+00> : vector<2x32xf32>
    %517 = tpu.matmul %516, %485, %cst_350 {dimension_numbers = #tpu.dot_dimension_numbers<[1], [0], [0], [1], [0, 0, 1, 1], [], []>} : vector<2x16xf32>, vector<16x32xf32>, vector<2x32xf32> -> vector<2x32xf32>
    %c4_351 = arith.constant 4 : index
    %c0_352 = arith.constant 0 : index
    %c0_353 = arith.constant 0 : index
    %518 = vector.load %arg21[%c4_351, %c0_352, %c0_353] : memref<8x32x16xf32, #tpu.memory_space<vmem>>, vector<1x32x16xf32>
    %519 = vector.shape_cast %518 : vector<1x32x16xf32> to vector<32x16xf32>
    %cst_354 = arith.constant dense<0.000000e+00> : vector<2x16xf32>
    %520 = tpu.matmul %517, %519, %cst_354 {dimension_numbers = #tpu.dot_dimension_numbers<[1], [0], [0], [1], [0, 0, 1, 1], [], []>} : vector<2x32xf32>, vector<32x16xf32>, vector<2x16xf32> -> vector<2x16xf32>
    %521 = arith.addf %514, %520 : vector<2x16xf32>
    %c5_355 = arith.constant 5 : index
    %c0_356 = arith.constant 0 : index
    %c0_357 = arith.constant 0 : index
    %522 = vector.load %arg20[%c5_355, %c0_356, %c0_357] : memref<8x2x16xf32, #tpu.memory_space<vmem>>, vector<1x2x16xf32>
    %523 = vector.shape_cast %522 : vector<1x2x16xf32> to vector<2x16xf32>
    %cst_358 = arith.constant dense<0.000000e+00> : vector<2x32xf32>
    %524 = tpu.matmul %523, %485, %cst_358 {dimension_numbers = #tpu.dot_dimension_numbers<[1], [0], [0], [1], [0, 0, 1, 1], [], []>} : vector<2x16xf32>, vector<16x32xf32>, vector<2x32xf32> -> vector<2x32xf32>
    %c5_359 = arith.constant 5 : index
    %c0_360 = arith.constant 0 : index
    %c0_361 = arith.constant 0 : index
    %525 = vector.load %arg21[%c5_359, %c0_360, %c0_361] : memref<8x32x16xf32, #tpu.memory_space<vmem>>, vector<1x32x16xf32>
    %526 = vector.shape_cast %525 : vector<1x32x16xf32> to vector<32x16xf32>
    %cst_362 = arith.constant dense<0.000000e+00> : vector<2x16xf32>
    %527 = tpu.matmul %524, %526, %cst_362 {dimension_numbers = #tpu.dot_dimension_numbers<[1], [0], [0], [1], [0, 0, 1, 1], [], []>} : vector<2x32xf32>, vector<32x16xf32>, vector<2x16xf32> -> vector<2x16xf32>
    %528 = arith.addf %521, %527 : vector<2x16xf32>
    %c6_363 = arith.constant 6 : index
    %c0_364 = arith.constant 0 : index
    %c0_365 = arith.constant 0 : index
    %529 = vector.load %arg20[%c6_363, %c0_364, %c0_365] : memref<8x2x16xf32, #tpu.memory_space<vmem>>, vector<1x2x16xf32>
    %530 = vector.shape_cast %529 : vector<1x2x16xf32> to vector<2x16xf32>
    %cst_366 = arith.constant dense<0.000000e+00> : vector<2x32xf32>
    %531 = tpu.matmul %530, %485, %cst_366 {dimension_numbers = #tpu.dot_dimension_numbers<[1], [0], [0], [1], [0, 0, 1, 1], [], []>} : vector<2x16xf32>, vector<16x32xf32>, vector<2x32xf32> -> vector<2x32xf32>
    %c6_367 = arith.constant 6 : index
    %c0_368 = arith.constant 0 : index
    %c0_369 = arith.constant 0 : index
    %532 = vector.load %arg21[%c6_367, %c0_368, %c0_369] : memref<8x32x16xf32, #tpu.memory_space<vmem>>, vector<1x32x16xf32>
    %533 = vector.shape_cast %532 : vector<1x32x16xf32> to vector<32x16xf32>
    %cst_370 = arith.constant dense<0.000000e+00> : vector<2x16xf32>
    %534 = tpu.matmul %531, %533, %cst_370 {dimension_numbers = #tpu.dot_dimension_numbers<[1], [0], [0], [1], [0, 0, 1, 1], [], []>} : vector<2x32xf32>, vector<32x16xf32>, vector<2x16xf32> -> vector<2x16xf32>
    %535 = arith.addf %528, %534 : vector<2x16xf32>
    %c7_371 = arith.constant 7 : index
    %c0_372 = arith.constant 0 : index
    %c0_373 = arith.constant 0 : index
    %536 = vector.load %arg20[%c7_371, %c0_372, %c0_373] : memref<8x2x16xf32, #tpu.memory_space<vmem>>, vector<1x2x16xf32>
    %537 = vector.shape_cast %536 : vector<1x2x16xf32> to vector<2x16xf32>
    %cst_374 = arith.constant dense<0.000000e+00> : vector<2x32xf32>
    %538 = tpu.matmul %537, %485, %cst_374 {dimension_numbers = #tpu.dot_dimension_numbers<[1], [0], [0], [1], [0, 0, 1, 1], [], []>} : vector<2x16xf32>, vector<16x32xf32>, vector<2x32xf32> -> vector<2x32xf32>
    %c7_375 = arith.constant 7 : index
    %c0_376 = arith.constant 0 : index
    %c0_377 = arith.constant 0 : index
    %539 = vector.load %arg21[%c7_375, %c0_376, %c0_377] : memref<8x32x16xf32, #tpu.memory_space<vmem>>, vector<1x32x16xf32>
    %540 = vector.shape_cast %539 : vector<1x32x16xf32> to vector<32x16xf32>
    %cst_378 = arith.constant dense<0.000000e+00> : vector<2x16xf32>
    %541 = tpu.matmul %538, %540, %cst_378 {dimension_numbers = #tpu.dot_dimension_numbers<[1], [0], [0], [1], [0, 0, 1, 1], [], []>} : vector<2x32xf32>, vector<32x16xf32>, vector<2x16xf32> -> vector<2x16xf32>
    %542 = arith.addf %535, %541 : vector<2x16xf32>
    %c0_379 = arith.constant 0 : index
    %c0_380 = arith.constant 0 : index
    %543 = vector.load %arg22[%c0_379, %c0_380] : memref<1x16xf32, #tpu.memory_space<vmem>>, vector<1x16xf32>
    %544 = vector.broadcast %543 : vector<1x16xf32> to vector<2x16xf32>
    %545 = arith.addf %542, %544 : vector<2x16xf32>
    %cst_381 = arith.constant 0.000000e+00 : f32
    %546 = vector.broadcast %cst_381 : f32 to vector<2x16xf32>
    %547 = arith.maximumf %545, %546 : vector<2x16xf32>
    %c0_382 = arith.constant 0 : index
    %c0_383 = arith.constant 0 : index
    %548 = vector.load %arg23[%c0_382, %c0_383] : memref<16x8xf32, #tpu.memory_space<vmem>>, vector<16x8xf32>
    %cst_384 = arith.constant dense<0.000000e+00> : vector<2x8xf32>
    %549 = tpu.matmul %547, %548, %cst_384 {dimension_numbers = #tpu.dot_dimension_numbers<[1], [0], [0], [1], [0, 0, 1, 1], [], []>} : vector<2x16xf32>, vector<16x8xf32>, vector<2x8xf32> -> vector<2x8xf32>
    %c0_385 = arith.constant 0 : index
    %c0_386 = arith.constant 0 : index
    %550 = vector.load %arg24[%c0_385, %c0_386] : memref<1x8xf32, #tpu.memory_space<vmem>>, vector<1x8xf32>
    %551 = vector.broadcast %550 : vector<1x8xf32> to vector<2x8xf32>
    %552 = arith.addf %549, %551 : vector<2x8xf32>
    %c0_387 = arith.constant 0 : index
    %c0_388 = arith.constant 0 : index
    %553 = vector.load %arg25[%c0_387, %c0_388] : memref<2x8xf32, #tpu.memory_space<vmem>>, vector<2x8xf32>
    tpu.vector_store %arg25[%c0_387, %c0_388], %552 {strides = array<i32>} : memref<2x8xf32, #tpu.memory_space<vmem>>, vector<2x8xf32>,
    return
  }
}

</mosaic_0001>

<llo_original>
// kernel: transformer_triplet_forward.1
$region0: #{transformer_triplet_forward.1}
  #allocation0 [shape = 'u32[]', space=smem, size = 0x4, offset = 0x4, fixed_abs, tag = 'smem constant byte address 0x4 - core index']
  #allocation1 [shape = 'u32[72,128]{1,0:T(1,128)}', space=vmem, size = 0x9000, scoped, tag = 'internal scratch']
  %s0 = inlined_call_operand.vmem [shape: f32[16,4], index: 0, kind: input, shape index: {}]
  %s1 = inlined_call_operand.vmem [shape: f32[4,32], index: 1, kind: input, shape index: {}]
  %s2 = inlined_call_operand.vmem [shape: f32[1,32], index: 2, kind: input, shape index: {}]
  %s3 = inlined_call_operand.vmem [shape: f32[16,32], index: 3, kind: input, shape index: {}]
  %s4 = inlined_call_operand.vmem [shape: f32[8,32,8], index: 4, kind: input, shape index: {}]
  %s5 = inlined_call_operand.vmem [shape: f32[8,1,8], index: 5, kind: input, shape index: {}]
  %s6 = inlined_call_operand.vmem [shape: f32[8,32,8], index: 6, kind: input, shape index: {}]
  %s7 = inlined_call_operand.vmem [shape: f32[8,1,8], index: 7, kind: input, shape index: {}]
  %s8 = inlined_call_operand.vmem [shape: f32[8,32,8], index: 8, kind: input, shape index: {}]
  %s9 = inlined_call_operand.vmem [shape: f32[8,1,8], index: 9, kind: input, shape index: {}]
  %s10 = inlined_call_operand.vmem [shape: f32[8,8,32], index: 10, kind: input, shape index: {}]
  %s11 = inlined_call_operand.vmem [shape: f32[2,1,32], index: 11, kind: input, shape index: {}]
  %s12 = inlined_call_operand.vmem [shape: f32[2,32,64], index: 12, kind: input, shape index: {}]
  %s13 = inlined_call_operand.vmem [shape: f32[2,1,64], index: 13, kind: input, shape index: {}]
  %s14 = inlined_call_operand.vmem [shape: f32[2,64,32], index: 14, kind: input, shape index: {}]
  %s15 = inlined_call_operand.vmem [shape: f32[2,1,32], index: 15, kind: input, shape index: {}]
  %s16 = inlined_call_operand.vmem [shape: f32[2,1,32], index: 16, kind: input, shape index: {}]
  %s17 = inlined_call_operand.vmem [shape: f32[2,1,32], index: 17, kind: input, shape index: {}]
  %s18 = inlined_call_operand.vmem [shape: f32[2,1,32], index: 18, kind: input, shape index: {}]
  %s19 = inlined_call_operand.vmem [shape: f32[2,1,32], index: 19, kind: input, shape index: {}]
  %s20 = inlined_call_operand.vmem [shape: f32[8,2,16], index: 20, kind: input, shape index: {}]
  %s21 = inlined_call_operand.vmem [shape: f32[8,32,16], index: 21, kind: input, shape index: {}]
  %s22 = inlined_call_operand.vmem [shape: f32[1,16], index: 22, kind: input, shape index: {}]
  %s23 = inlined_call_operand.vmem [shape: f32[16,8], index: 23, kind: input, shape index: {}]
  %s24 = inlined_call_operand.vmem [shape: f32[1,8], index: 24, kind: input, shape index: {}]
  %s25 = inlined_call_operand.hbm [shape: f32[2,8], index: 25, kind: output, shape index: {}]
  %s26 = sld [smem:[#allocation0]]
  $region110: #{transformer_triplet_forward.1} parent=0
    _
  %s28 = ssub.s32 1, %s26
  %s29 = scalar_select 0, %s28, %s26
  $region1: #{transformer_triplet_forward.1} parent=0
    #allocation2 [shape = 'u8[1024]{0}', space=vmem, size = 0x400, scoped, tag = 'output window, operand 0, single buffered']
    #allocation3 [shape = 's32[1]{0}', space=sflag, size = 0x4, scoped, tag = 'scoped memory for transformer_triplet_forward.1']
    %30 = vsyncpa [#allocation3], 0
    // Predicated region
    $region2: #{transformer_triplet_forward.1} parent=1 // pred_check
      _
    $region3: #{transformer_triplet_forward.1} parent=1 // pred_check_branch
      %32 = sbr.rel (0) target = $region5
    $region4: #{transformer_triplet_forward.1} parent=1 // pred_region
      _
    $region5: #{transformer_triplet_forward.1} parent=1 // pred_fallthru
      _
    // Predicated region
    $region6: #{transformer_triplet_forward.1} parent=1 // pred_check
      _
    $region7: #{transformer_triplet_forward.1} parent=1 // pred_check_branch
      %34 = sbr.rel (0) target = $region9
    $region8: #{transformer_triplet_forward.1} parent=1 // pred_region
      _
    $region9: #{transformer_triplet_forward.1} parent=1 // pred_fallthru
      _
    // Predicated region
    $region10: #{transformer_triplet_forward.1} parent=1 // pred_check
      _
    $region11: #{transformer_triplet_forward.1} parent=1 // pred_check_branch
      %36 = sbr.rel (0) target = $region13
    $region12: #{transformer_triplet_forward.1} parent=1 // pred_region
      _
    $region13: #{transformer_triplet_forward.1} parent=1 // pred_fallthru
      _
    // Predicated region
    $region14: #{transformer_triplet_forward.1} parent=1 // pred_check
      _
    $region15: #{transformer_triplet_forward.1} parent=1 // pred_check_branch
      %38 = sbr.rel (0) target = $region17
    $region16: #{transformer_triplet_forward.1} parent=1 // pred_region
      _
    $region17: #{transformer_triplet_forward.1} parent=1 // pred_fallthru
      _
    // Predicated region
    $region18: #{transformer_triplet_forward.1} parent=1 // pred_check
      _
    $region19: #{transformer_triplet_forward.1} parent=1 // pred_check_branch
      %40 = sbr.rel (0) target = $region21
    $region20: #{transformer_triplet_forward.1} parent=1 // pred_region
      _
    $region21: #{transformer_triplet_forward.1} parent=1 // pred_fallthru
      _
    // Predicated region
    $region22: #{transformer_triplet_forward.1} parent=1 // pred_check
      _
    $region23: #{transformer_triplet_forward.1} parent=1 // pred_check_branch
      %42 = sbr.rel (0) target = $region25
    $region24: #{transformer_triplet_forward.1} parent=1 // pred_region
      _
    $region25: #{transformer_triplet_forward.1} parent=1 // pred_fallthru
      _
    // Predicated region
    $region26: #{transformer_triplet_forward.1} parent=1 // pred_check
      _
    $region27: #{transformer_triplet_forward.1} parent=1 // pred_check_branch
      %44 = sbr.rel (0) target = $region29
    $region28: #{transformer_triplet_forward.1} parent=1 // pred_region
      _
    $region29: #{transformer_triplet_forward.1} parent=1 // pred_fallthru
      _
    // Predicated region
    $region30: #{transformer_triplet_forward.1} parent=1 // pred_check
      _
    $region31: #{transformer_triplet_forward.1} parent=1 // pred_check_branch
      %46 = sbr.rel (0) target = $region33
    $region32: #{transformer_triplet_forward.1} parent=1 // pred_region
      _
    $region33: #{transformer_triplet_forward.1} parent=1 // pred_fallthru
      _
    // Predicated region
    $region34: #{transformer_triplet_forward.1} parent=1 // pred_check
      _
    $region35: #{transformer_triplet_forward.1} parent=1 // pred_check_branch
      %48 = sbr.rel (0) target = $region37
    $region36: #{transformer_triplet_forward.1} parent=1 // pred_region
      _
    $region37: #{transformer_triplet_forward.1} parent=1 // pred_fallthru
      _
    // Predicated region
    $region38: #{transformer_triplet_forward.1} parent=1 // pred_check
      _
    $region39: #{transformer_triplet_forward.1} parent=1 // pred_check_branch
      %50 = sbr.rel (0) target = $region41
    $region40: #{transformer_triplet_forward.1} parent=1 // pred_region
      _
    $region41: #{transformer_triplet_forward.1} parent=1 // pred_fallthru
      _
    // Predicated region
    $region42: #{transformer_triplet_forward.1} parent=1 // pred_check
      _
    $region43: #{transformer_triplet_forward.1} parent=1 // pred_check_branch
      %52 = sbr.rel (0) target = $region45
    $region44: #{transformer_triplet_forward.1} parent=1 // pred_region
      _
    $region45: #{transformer_triplet_forward.1} parent=1 // pred_fallthru
      _
    // Predicated region
    $region46: #{transformer_triplet_forward.1} parent=1 // pred_check
      _
    $region47: #{transformer_triplet_forward.1} parent=1 // pred_check_branch
      %54 = sbr.rel (0) target = $region49
    $region48: #{transformer_triplet_forward.1} parent=1 // pred_region
      _
    $region49: #{transformer_triplet_forward.1} parent=1 // pred_fallthru
      _
    // Predicated region
    $region50: #{transformer_triplet_forward.1} parent=1 // pred_check
      _
    $region51: #{transformer_triplet_forward.1} parent=1 // pred_check_branch
      %56 = sbr.rel (0) target = $region53
    $region52: #{transformer_triplet_forward.1} parent=1 // pred_region
      _
    $region53: #{transformer_triplet_forward.1} parent=1 // pred_fallthru
      _
    // Predicated region
    $region54: #{transformer_triplet_forward.1} parent=1 // pred_check
      _
    $region55: #{transformer_triplet_forward.1} parent=1 // pred_check_branch
      %58 = sbr.rel (0) target = $region57
    $region56: #{transformer_triplet_forward.1} parent=1 // pred_region
      _
    $region57: #{transformer_triplet_forward.1} parent=1 // pred_fallthru
      _
    // Predicated region
    $region58: #{transformer_triplet_forward.1} parent=1 // pred_check
      _
    $region59: #{transformer_triplet_forward.1} parent=1 // pred_check_branch
      %60 = sbr.rel (0) target = $region61
    $region60: #{transformer_triplet_forward.1} parent=1 // pred_region
      _
    $region61: #{transformer_triplet_forward.1} parent=1 // pred_fallthru
      _
    // Predicated region
    $region62: #{transformer_triplet_forward.1} parent=1 // pred_check
      _
    $region63: #{transformer_triplet_forward.1} parent=1 // pred_check_branch
      %62 = sbr.rel (0) target = $region65
    $region64: #{transformer_triplet_forward.1} parent=1 // pred_region
      _
    $region65: #{transformer_triplet_forward.1} parent=1 // pred_fallthru
      _
    // Predicated region
    $region66: #{transformer_triplet_forward.1} parent=1 // pred_check
      _
    $region67: #{transformer_triplet_forward.1} parent=1 // pred_check_branch
      %64 = sbr.rel (0) target = $region69
    $region68: #{transformer_triplet_forward.1} parent=1 // pred_region
      _
    $region69: #{transformer_triplet_forward.1} parent=1 // pred_fallthru
      _
    // Predicated region
    $region70: #{transformer_triplet_forward.1} parent=1 // pred_check
      _
    $region71: #{transformer_triplet_forward.1} parent=1 // pred_check_branch
      %66 = sbr.rel (0) target = $region73
    $region72: #{transformer_triplet_forward.1} parent=1 // pred_region
      _
    $region73: #{transformer_triplet_forward.1} parent=1 // pred_fallthru
      _
    // Predicated region
    $region74: #{transformer_triplet_forward.1} parent=1 // pred_check
      _
    $region75: #{transformer_triplet_forward.1} parent=1 // pred_check_branch
      %68 = sbr.rel (0) target = $region77
    $region76: #{transformer_triplet_forward.1} parent=1 // pred_region
      _
    $region77: #{transformer_triplet_forward.1} parent=1 // pred_fallthru
      _
    // Predicated region
    $region78: #{transformer_triplet_forward.1} parent=1 // pred_check
      _
    $region79: #{transformer_triplet_forward.1} parent=1 // pred_check_branch
      %70 = sbr.rel (0) target = $region81
    $region80: #{transformer_triplet_forward.1} parent=1 // pred_region
      _
    $region81: #{transformer_triplet_forward.1} parent=1 // pred_fallthru
      _
    // Predicated region
    $region82: #{transformer_triplet_forward.1} parent=1 // pred_check
      _
    $region83: #{transformer_triplet_forward.1} parent=1 // pred_check_branch
      %72 = sbr.rel (0) target = $region85
    $region84: #{transformer_triplet_forward.1} parent=1 // pred_region
      _
    $region85: #{transformer_triplet_forward.1} parent=1 // pred_fallthru
      _
    // Predicated region
    $region86: #{transformer_triplet_forward.1} parent=1 // pred_check
      _
    $region87: #{transformer_triplet_forward.1} parent=1 // pred_check_branch
      %74 = sbr.rel (0) target = $region89
    $region88: #{transformer_triplet_forward.1} parent=1 // pred_region
      _
    $region89: #{transformer_triplet_forward.1} parent=1 // pred_fallthru
      _
    // Predicated region
    $region90: #{transformer_triplet_forward.1} parent=1 // pred_check
      _
    $region91: #{transformer_triplet_forward.1} parent=1 // pred_check_branch
      %76 = sbr.rel (0) target = $region93
    $region92: #{transformer_triplet_forward.1} parent=1 // pred_region
      _
    $region93: #{transformer_triplet_forward.1} parent=1 // pred_fallthru
      _
    // Predicated region
    $region94: #{transformer_triplet_forward.1} parent=1 // pred_check
      _
    $region95: #{transformer_triplet_forward.1} parent=1 // pred_check_branch
      %78 = sbr.rel (0) target = $region97
    $region96: #{transformer_triplet_forward.1} parent=1 // pred_region
      _
    $region97: #{transformer_triplet_forward.1} parent=1 // pred_fallthru
      _
    // Predicated region
    $region98: #{transformer_triplet_forward.1} parent=1 // pred_check
      _
    $region99: #{transformer_triplet_forward.1} parent=1 // pred_check_branch
      %80 = sbr.rel (0) target = $region101
    $region100: #{transformer_triplet_forward.1} parent=1 // pred_region
      _
    $region101: #{transformer_triplet_forward.1} parent=1 // pred_fallthru
      _
    %v81 = vld [vmem:[%s0] sm:$0xff]
    %v82 = vld [vmem:[%s0 + $0x8] sm:$0xff]
    %v83 = vld [vmem:[%s1] sm:$0xf]
    %v84 = vld [vmem:[%s2] sm:$0x1]
    %v86 = vperm.slane %v84, 0
    %vm88 = vcmask 31744
    %v90 = vsel %vm88, %v81, 0
    %v93 = vsel %vm88, %v82, 0
    %vm95 = vcmask 1043456
    %v97 = vsel %vm95, %v83, 0
    %99 = vmatpush.msra.mxu0 0.0
    %100 = vmatpush.msra.mxu0 0.0
    %101 = vmatpush.msra.mxu0 0.0
    %102 = vmatpush.msra.mxu0 0.0
    %103 = vmatpush.msra.mxu0 0.0
    %104 = vmatpush.msra.mxu0 0.0
    %105 = vmatpush.msra.mxu0 0.0
    %106 = vmatpush.msra.mxu0 0.0
    %107 = vmatpush.msra.mxu0 0.0
    %108 = vmatpush.msra.mxu0 0.0
    %109 = vmatpush.msra.mxu0 0.0
    %110 = vmatpush.msra.mxu0 0.0
    %111 = vmatpush.msra.mxu0 0.0
    %112 = vmatpush.msra.mxu0 0.0
    %113 = vmatpush.msra.mxu0 0.0
    %114 = vmatpush.msra.mxu0 %v97
    %115 = vmatmul.f32.gmra.mxu0 %v90
    %v116 = vpop.f32.mrf.mxu0
    %v117 = vadd.f32 %v86, %v116
    %118 = vmatmul.f32.gmra.mxu0 %v93
    %v119 = vpop.f32.mrf.mxu0
    %v120 = vadd.f32 %v86, %v119
    %121 = vdwg.mxu0
    %v122 = vld [vmem:[%s3] sm:$0xff]
    %v123 = vld [vmem:[%s3 + $0x8] sm:$0xff]
    %v124 = vadd.f32 %v117, %v122
    %v125 = vadd.f32 %v120, %v123
    %v126 = vld [vmem:[%s4] sm:$0xff]
    %v127 = vld [vmem:[%s4 + $0x8] sm:$0xff]
    %v128 = vld [vmem:[%s4 + $0x10] sm:$0xff]
    %v129 = vld [vmem:[%s4 + $0x18] sm:$0xff]
    %v130 = vld [vmem:[%s5] sm:$0x1]
    %v132 = vperm.slane %v130, 0
    %vm134 = vcmask 261120
    %v136 = vsel %vm134, %v124, 0
    %v139 = vsel %vm134, %v125, 0
    %141 = vmatpush.msra.mxu0 0.0
    %142 = vmatpush.msra.mxu0 0.0
    %143 = vmatpush.msra.mxu0 0.0
    %144 = vmatpush.msra.mxu0 0.0
    %145 = vmatpush.msra.mxu0 0.0
    %146 = vmatpush.msra.mxu0 0.0
    %147 = vmatpush.msra.mxu0 0.0
    %148 = vmatpush.msra.mxu0 0.0
    %149 = vmatpush.msra.mxu0 0.0
    %150 = vmatpush.msra.mxu0 0.0
    %151 = vmatpush.msra.mxu0 0.0
    %152 = vmatpush.msra.mxu0 0.0
    %153 = vmatpush.msra.mxu0 %v129
    %154 = vmatpush.msra.mxu0 %v128
    %155 = vmatpush.msra.mxu0 %v127
    %156 = vmatpush.msra.mxu0 %v126
    %157 = vmatmul.f32.gmra.mxu0 %v136
    %v158 = vpop.f32.mrf.mxu0
    %v159 = vadd.f32 %v132, %v158
    %160 = vmatmul.f32.gmra.mxu0 %v139
    %v161 = vpop.f32.mrf.mxu0
    %v162 = vadd.f32 %v132, %v161
    %163 = vdwg.mxu0
    %v164 = vld [vmem:[%s6] sm:$0xff]
    %v165 = vld [vmem:[%s6 + $0x8] sm:$0xff]
    %v166 = vld [vmem:[%s6 + $0x10] sm:$0xff]
    %v167 = vld [vmem:[%s6 + $0x18] sm:$0xff]
    %v168 = vld [vmem:[%s7] sm:$0x1]
    %v170 = vperm.slane %v168, 0
    %172 = vmatpush.msra.mxu0 0.0
    %173 = vmatpush.msra.mxu0 0.0
    %174 = vmatpush.msra.mxu0 0.0
    %175 = vmatpush.msra.mxu0 0.0
    %176 = vmatpush.msra.mxu0 0.0
    %177 = vmatpush.msra.mxu0 0.0
    %178 = vmatpush.msra.mxu0 0.0
    %179 = vmatpush.msra.mxu0 0.0
    %180 = vmatpush.msra.mxu0 0.0
    %181 = vmatpush.msra.mxu0 0.0
    %182 = vmatpush.msra.mxu0 0.0
    %183 = vmatpush.msra.mxu0 0.0
    %184 = vmatpush.msra.mxu0 %v167
    %185 = vmatpush.msra.mxu0 %v166
    %186 = vmatpush.msra.mxu0 %v165
    %187 = vmatpush.msra.mxu0 %v164
    %188 = vmatmul.f32.gmra.mxu0 %v136
    %v189 = vpop.f32.mrf.mxu0
    %v190 = vadd.f32 %v170, %v189
    %191 = vmatmul.f32.gmra.mxu0 %v139
    %v192 = vpop.f32.mrf.mxu0
    %v193 = vadd.f32 %v170, %v192
    %194 = vdwg.mxu0
    %v195 = vld [vmem:[%s8] sm:$0xff]
    %v196 = vld [vmem:[%s8 + $0x8] sm:$0xff]
    %v197 = vld [vmem:[%s8 + $0x10] sm:$0xff]
    %v198 = vld [vmem:[%s8 + $0x18] sm:$0xff]
    %v199 = vld [vmem:[%s9] sm:$0x1]
    %v201 = vperm.slane %v199, 0
    %203 = vmatpush.msra.mxu0 0.0
    %204 = vmatpush.msra.mxu0 0.0
    %205 = vmatpush.msra.mxu0 0.0
    %206 = vmatpush.msra.mxu0 0.0
    %207 = vmatpush.msra.mxu0 0.0
    %208 = vmatpush.msra.mxu0 0.0
    %209 = vmatpush.msra.mxu0 0.0
    %210 = vmatpush.msra.mxu0 0.0
    %211 = vmatpush.msra.mxu0 0.0
    %212 = vmatpush.msra.mxu0 0.0
    %213 = vmatpush.msra.mxu0 0.0
    %214 = vmatpush.msra.mxu0 0.0
    %215 = vmatpush.msra.mxu0 %v198
    %216 = vmatpush.msra.mxu0 %v197
    %217 = vmatpush.msra.mxu0 %v196
    %218 = vmatpush.msra.mxu0 %v195
    %219 = vmatmul.f32.gmra.mxu0 %v136
    %v220 = vpop.f32.mrf.mxu0
    %v221 = vadd.f32 %v201, %v220
    %222 = vmatmul.f32.gmra.mxu0 %v139
    %v223 = vpop.f32.mrf.mxu0
    %v224 = vadd.f32 %v201, %v223
    %225 = vdwg.mxu0
    %vm226 = vcmask 64512
    %v228 = vsel %vm226, %v159, 0
    %v231 = vsel %vm226, %v190, 0
    %233 = vmatpush.xpose.msra.mxu0 0.0
    %234 = vmatpush.xpose.msra.mxu0 0.0
    %235 = vmatpush.xpose.msra.mxu0 0.0
    %236 = vmatpush.xpose.msra.mxu0 0.0
    %237 = vmatpush.xpose.msra.mxu0 0.0
    %238 = vmatpush.xpose.msra.mxu0 0.0
    %239 = vmatpush.xpose.msra.mxu0 0.0
    %240 = vmatpush.xpose.msra.mxu0 0.0
    %241 = vmatpush.xpose.msra.mxu0 0.0
    %242 = vmatpush.xpose.msra.mxu0 0.0
    %243 = vmatpush.xpose.msra.mxu0 0.0
    %244 = vmatpush.xpose.msra.mxu0 0.0
    %245 = vmatpush.xpose.msra.mxu0 0.0
    %246 = vmatpush.xpose.msra.mxu0 0.0
    %247 = vmatpush.xpose.msra.mxu0 0.0
    %248 = vmatpush.xpose.msra.mxu0 %v231
    %249 = vmatmul.f32.gmra.mxu0 %v228
    %v250 = vpop.f32.mrf.mxu0
    %v251 = vadd.f32 0.0, %v250
    %252 = vdwg.mxu0
    %v254 = vsel %vm226, %v162, 0
    %v257 = vsel %vm226, %v193, 0
    %259 = vmatpush.xpose.msra.mxu0 0.0
    %260 = vmatpush.xpose.msra.mxu0 0.0
    %261 = vmatpush.xpose.msra.mxu0 0.0
    %262 = vmatpush.xpose.msra.mxu0 0.0
    %263 = vmatpush.xpose.msra.mxu0 0.0
    %264 = vmatpush.xpose.msra.mxu0 0.0
    %265 = vmatpush.xpose.msra.mxu0 0.0
    %266 = vmatpush.xpose.msra.mxu0 0.0
    %267 = vmatpush.xpose.msra.mxu0 0.0
    %268 = vmatpush.xpose.msra.mxu0 0.0
    %269 = vmatpush.xpose.msra.mxu0 0.0
    %270 = vmatpush.xpose.msra.mxu0 0.0
    %271 = vmatpush.xpose.msra.mxu0 0.0
    %272 = vmatpush.xpose.msra.mxu0 0.0
    %273 = vmatpush.xpose.msra.mxu0 0.0
    %274 = vmatpush.xpose.msra.mxu0 %v257
    %275 = vmatmul.f32.gmra.mxu0 %v254
    %v276 = vpop.f32.mrf.mxu0
    %v277 = vadd.f32 0.0, %v276
    %278 = vdwg.mxu0
    %v279 = vsel %vm226, %v251, -inf
    %280 = vmax.xlane.f32.xlu0 %v279
    %v281 = vpop.xlane.xlu0 %280
    %v282 = vsel %vm226, %v277, -inf
    %283 = vmax.xlane.f32.xlu0 %v282
    %v284 = vpop.xlane.xlu0 %283
    %v285 = vsub.f32 %v251, %v281
    %v286 = vsub.f32 %v277, %v284
    %v287 = vmul.f32 %v285, 1.442695
    %v288 = vpow.pop %v287
    %v289 = vmul.f32 %v286, 1.442695
    %v290 = vpow.pop %v289
    %v291 = vsel %vm226, %v288, 0.0
    %292 = vadd.xlane.f32.xlu0 %v291
    %v293 = vpop.xlane.xlu0 %292
    %v294 = vsel %vm226, %v290, 0.0
    %295 = vadd.xlane.f32.xlu0 %v294
    %v296 = vpop.xlane.xlu0 %295
    %v297 = vrcp.pop %v293
    %v298 = vrcp.pop %v296
    %v299 = vmul.f32 %v288, %v297
    %v300 = vmul.f32 %v290, %v298
    %v302 = vsel %vm226, %v299, 0
    %304 = vmatpush.msra.mxu0 0.0
    %305 = vmatpush.msra.mxu0 0.0
    %306 = vmatpush.msra.mxu0 0.0
    %307 = vmatpush.msra.mxu0 0.0
    %308 = vmatpush.msra.mxu0 0.0
    %309 = vmatpush.msra.mxu0 0.0
    %310 = vmatpush.msra.mxu0 0.0
    %311 = vmatpush.msra.mxu0 0.0
    %312 = vmatpush.msra.mxu0 0.0
    %313 = vmatpush.msra.mxu0 0.0
    %314 = vmatpush.msra.mxu0 0.0
    %315 = vmatpush.msra.mxu0 0.0
    %316 = vmatpush.msra.mxu0 0.0
    %317 = vmatpush.msra.mxu0 0.0
    %318 = vmatpush.msra.mxu0 0.0
    %319 = vmatpush.msra.mxu0 %v221
    %320 = vmatmul.f32.gmra.mxu0 %v302
    %v321 = vpop.f32.mrf.mxu0
    %v322 = vadd.f32 0.0, %v321
    %323 = vdwg.mxu0
    %v325 = vsel %vm226, %v300, 0
    %327 = vmatpush.msra.mxu0 0.0
    %328 = vmatpush.msra.mxu0 0.0
    %329 = vmatpush.msra.mxu0 0.0
    %330 = vmatpush.msra.mxu0 0.0
    %331 = vmatpush.msra.mxu0 0.0
    %332 = vmatpush.msra.mxu0 0.0
    %333 = vmatpush.msra.mxu0 0.0
    %334 = vmatpush.msra.mxu0 0.0
    %335 = vmatpush.msra.mxu0 0.0
    %336 = vmatpush.msra.mxu0 0.0
    %337 = vmatpush.msra.mxu0 0.0
    %338 = vmatpush.msra.mxu0 0.0
    %339 = vmatpush.msra.mxu0 0.0
    %340 = vmatpush.msra.mxu0 0.0
    %341 = vmatpush.msra.mxu0 0.0
    %342 = vmatpush.msra.mxu0 %v224
    %343 = vmatmul.f32.gmra.mxu0 %v325
    %v344 = vpop.f32.mrf.mxu0
    %v345 = vadd.f32 0.0, %v344
    %346 = vdwg.mxu0
    %v347 = vld [vmem:[%s10] sm:$0xff]
    %s348 = scalar_lea.vmem %s4, 32
    %v349 = vld [vmem:[%s348] sm:$0xff]
    %v350 = vld [vmem:[%s348 + $0x8] sm:$0xff]
    %v351 = vld [vmem:[%s348 + $0x10] sm:$0xff]
    %v352 = vld [vmem:[%s348 + $0x18] sm:$0xff]
    %s353 = scalar_lea.vmem %s5, 1
    %v354 = vld [vmem:[%s353] sm:$0x1]
    %v356 = vperm.slane %v354, 0
    %358 = vmatpush.msra.mxu0 0.0
    %359 = vmatpush.msra.mxu0 0.0
    %360 = vmatpush.msra.mxu0 0.0
    %361 = vmatpush.msra.mxu0 0.0
    %362 = vmatpush.msra.mxu0 0.0
    %363 = vmatpush.msra.mxu0 0.0
    %364 = vmatpush.msra.mxu0 0.0
    %365 = vmatpush.msra.mxu0 0.0
    %366 = vmatpush.msra.mxu0 0.0
    %367 = vmatpush.msra.mxu0 0.0
    %368 = vmatpush.msra.mxu0 0.0
    %369 = vmatpush.msra.mxu0 0.0
    %370 = vmatpush.msra.mxu0 %v352
    %371 = vmatpush.msra.mxu0 %v351
    %372 = vmatpush.msra.mxu0 %v350
    %373 = vmatpush.msra.mxu0 %v349
    %374 = vmatmul.f32.gmra.mxu0 %v136
    %v375 = vpop.f32.mrf.mxu0
    %v376 = vadd.f32 %v356, %v375
    %377 = vmatmul.f32.gmra.mxu0 %v139
    %v378 = vpop.f32.mrf.mxu0
    %v379 = vadd.f32 %v356, %v378
    %380 = vdwg.mxu0
    %s381 = scalar_lea.vmem %s6, 32
    %v382 = vld [vmem:[%s381] sm:$0xff]
    %v383 = vld [vmem:[%s381 + $0x8] sm:$0xff]
    %v384 = vld [vmem:[%s381 + $0x10] sm:$0xff]
    %v385 = vld [vmem:[%s381 + $0x18] sm:$0xff]
    %s386 = scalar_lea.vmem %s7, 1
    %v387 = vld [vmem:[%s386] sm:$0x1]
    %v389 = vperm.slane %v387, 0
    %391 = vmatpush.msra.mxu0 0.0
    %392 = vmatpush.msra.mxu0 0.0
    %393 = vmatpush.msra.mxu0 0.0
    %394 = vmatpush.msra.mxu0 0.0
    %395 = vmatpush.msra.mxu0 0.0
    %396 = vmatpush.msra.mxu0 0.0
    %397 = vmatpush.msra.mxu0 0.0
    %398 = vmatpush.msra.mxu0 0.0
    %399 = vmatpush.msra.mxu0 0.0
    %400 = vmatpush.msra.mxu0 0.0
    %401 = vmatpush.msra.mxu0 0.0
    %402 = vmatpush.msra.mxu0 0.0
    %403 = vmatpush.msra.mxu0 %v385
    %404 = vmatpush.msra.mxu0 %v384
    %405 = vmatpush.msra.mxu0 %v383
    %406 = vmatpush.msra.mxu0 %v382
    %407 = vmatmul.f32.gmra.mxu0 %v136
    %v408 = vpop.f32.mrf.mxu0
    %v409 = vadd.f32 %v389, %v408
    %410 = vmatmul.f32.gmra.mxu0 %v139
    %v411 = vpop.f32.mrf.mxu0
    %v412 = vadd.f32 %v389, %v411
    %413 = vdwg.mxu0
    %s414 = scalar_lea.vmem %s8, 32
    %v415 = vld [vmem:[%s414] sm:$0xff]
    %v416 = vld [vmem:[%s414 + $0x8] sm:$0xff]
    %v417 = vld [vmem:[%s414 + $0x10] sm:$0xff]
    %v418 = vld [vmem:[%s414 + $0x18] sm:$0xff]
    %s419 = scalar_lea.vmem %s9, 1
    %v420 = vld [vmem:[%s419] sm:$0x1]
    %v422 = vperm.slane %v420, 0
    %424 = vmatpush.msra.mxu0 0.0
    %425 = vmatpush.msra.mxu0 0.0
    %426 = vmatpush.msra.mxu0 0.0
    %427 = vmatpush.msra.mxu0 0.0
    %428 = vmatpush.msra.mxu0 0.0
    %429 = vmatpush.msra.mxu0 0.0
    %430 = vmatpush.msra.mxu0 0.0
    %431 = vmatpush.msra.mxu0 0.0
    %432 = vmatpush.msra.mxu0 0.0
    %433 = vmatpush.msra.mxu0 0.0
    %434 = vmatpush.msra.mxu0 0.0
    %435 = vmatpush.msra.mxu0 0.0
    %436 = vmatpush.msra.mxu0 %v418
    %437 = vmatpush.msra.mxu0 %v417
    %438 = vmatpush.msra.mxu0 %v416
    %439 = vmatpush.msra.mxu0 %v415
    %440 = vmatmul.f32.gmra.mxu0 %v136
    %v441 = vpop.f32.mrf.mxu0
    %v442 = vadd.f32 %v422, %v441
    %443 = vmatmul.f32.gmra.mxu0 %v139
    %v444 = vpop.f32.mrf.mxu0
    %v445 = vadd.f32 %v422, %v444
    %446 = vdwg.mxu0
    %v448 = vsel %vm226, %v376, 0
    %v451 = vsel %vm226, %v409, 0
    %453 = vmatpush.xpose.msra.mxu0 0.0
    %454 = vmatpush.xpose.msra.mxu0 0.0
    %455 = vmatpush.xpose.msra.mxu0 0.0
    %456 = vmatpush.xpose.msra.mxu0 0.0
    %457 = vmatpush.xpose.msra.mxu0 0.0
    %458 = vmatpush.xpose.msra.mxu0 0.0
    %459 = vmatpush.xpose.msra.mxu0 0.0
    %460 = vmatpush.xpose.msra.mxu0 0.0
    %461 = vmatpush.xpose.msra.mxu0 0.0
    %462 = vmatpush.xpose.msra.mxu0 0.0
    %463 = vmatpush.xpose.msra.mxu0 0.0
    %464 = vmatpush.xpose.msra.mxu0 0.0
    %465 = vmatpush.xpose.msra.mxu0 0.0
    %466 = vmatpush.xpose.msra.mxu0 0.0
    %467 = vmatpush.xpose.msra.mxu0 0.0
    %468 = vmatpush.xpose.msra.mxu0 %v451
    %469 = vmatmul.f32.gmra.mxu0 %v448
    %v470 = vpop.f32.mrf.mxu0
    %v471 = vadd.f32 0.0, %v470
    %472 = vdwg.mxu0
    %v474 = vsel %vm226, %v379, 0
    %v477 = vsel %vm226, %v412, 0
    %479 = vmatpush.xpose.msra.mxu0 0.0
    %480 = vmatpush.xpose.msra.mxu0 0.0
    %481 = vmatpush.xpose.msra.mxu0 0.0
    %482 = vmatpush.xpose.msra.mxu0 0.0
    %483 = vmatpush.xpose.msra.mxu0 0.0
    %484 = vmatpush.xpose.msra.mxu0 0.0
    %485 = vmatpush.xpose.msra.mxu0 0.0
    %486 = vmatpush.xpose.msra.mxu0 0.0
    %487 = vmatpush.xpose.msra.mxu0 0.0
    %488 = vmatpush.xpose.msra.mxu0 0.0
    %489 = vmatpush.xpose.msra.mxu0 0.0
    %490 = vmatpush.xpose.msra.mxu0 0.0
    %491 = vmatpush.xpose.msra.mxu0 0.0
    %492 = vmatpush.xpose.msra.mxu0 0.0
    %493 = vmatpush.xpose.msra.mxu0 0.0
    %494 = vmatpush.xpose.msra.mxu0 %v477
    %495 = vmatmul.f32.gmra.mxu0 %v474
    %v496 = vpop.f32.mrf.mxu0
    %v497 = vadd.f32 0.0, %v496
    %498 = vdwg.mxu0
    %v499 = vsel %vm226, %v471, -inf
    %500 = vmax.xlane.f32.xlu0 %v499
    %v501 = vpop.xlane.xlu0 %500
    %v502 = vsel %vm226, %v497, -inf
    %503 = vmax.xlane.f32.xlu0 %v502
    %v504 = vpop.xlane.xlu0 %503
    %v505 = vsub.f32 %v471, %v501
    %v506 = vsub.f32 %v497, %v504
    %v507 = vmul.f32 %v505, 1.442695
    %v508 = vpow.pop %v507
    %v509 = vmul.f32 %v506, 1.442695
    %v510 = vpow.pop %v509
    %v511 = vsel %vm226, %v508, 0.0
    %512 = vadd.xlane.f32.xlu0 %v511
    %v513 = vpop.xlane.xlu0 %512
    %v514 = vsel %vm226, %v510, 0.0
    %515 = vadd.xlane.f32.xlu0 %v514
    %v516 = vpop.xlane.xlu0 %515
    %v517 = vrcp.pop %v513
    %v518 = vrcp.pop %v516
    %v519 = vmul.f32 %v508, %v517
    %v520 = vmul.f32 %v510, %v518
    %v522 = vsel %vm226, %v519, 0
    %524 = vmatpush.msra.mxu0 0.0
    %525 = vmatpush.msra.mxu0 0.0
    %526 = vmatpush.msra.mxu0 0.0
    %527 = vmatpush.msra.mxu0 0.0
    %528 = vmatpush.msra.mxu0 0.0
    %529 = vmatpush.msra.mxu0 0.0
    %530 = vmatpush.msra.mxu0 0.0
    %531 = vmatpush.msra.mxu0 0.0
    %532 = vmatpush.msra.mxu0 0.0
    %533 = vmatpush.msra.mxu0 0.0
    %534 = vmatpush.msra.mxu0 0.0
    %535 = vmatpush.msra.mxu0 0.0
    %536 = vmatpush.msra.mxu0 0.0
    %537 = vmatpush.msra.mxu0 0.0
    %538 = vmatpush.msra.mxu0 0.0
    %539 = vmatpush.msra.mxu0 %v442
    %540 = vmatmul.f32.gmra.mxu0 %v522
    %v541 = vpop.f32.mrf.mxu0
    %v542 = vadd.f32 0.0, %v541
    %543 = vdwg.mxu0
    %v545 = vsel %vm226, %v520, 0
    %547 = vmatpush.msra.mxu0 0.0
    %548 = vmatpush.msra.mxu0 0.0
    %549 = vmatpush.msra.mxu0 0.0
    %550 = vmatpush.msra.mxu0 0.0
    %551 = vmatpush.msra.mxu0 0.0
    %552 = vmatpush.msra.mxu0 0.0
    %553 = vmatpush.msra.mxu0 0.0
    %554 = vmatpush.msra.mxu0 0.0
    %555 = vmatpush.msra.mxu0 0.0
    %556 = vmatpush.msra.mxu0 0.0
    %557 = vmatpush.msra.mxu0 0.0
    %558 = vmatpush.msra.mxu0 0.0
    %559 = vmatpush.msra.mxu0 0.0
    %560 = vmatpush.msra.mxu0 0.0
    %561 = vmatpush.msra.mxu0 0.0
    %562 = vmatpush.msra.mxu0 %v445
    %563 = vmatmul.f32.gmra.mxu0 %v545
    %v564 = vpop.f32.mrf.mxu0
    %v565 = vadd.f32 0.0, %v564
    %566 = vdwg.mxu0
    %s567 = scalar_lea.vmem %s10, 8
    %v568 = vld [vmem:[%s567] sm:$0xff]
    %v570 = vsel %vm226, %v542, 0
    %v573 = vsel %vm226, %v565, 0
    %575 = vmatpush.msra.mxu0 0.0
    %576 = vmatpush.msra.mxu0 0.0
    %577 = vmatpush.msra.mxu0 0.0
    %578 = vmatpush.msra.mxu0 0.0
    %579 = vmatpush.msra.mxu0 0.0
    %580 = vmatpush.msra.mxu0 0.0
    %581 = vmatpush.msra.mxu0 0.0
    %582 = vmatpush.msra.mxu0 0.0
    %583 = vmatpush.msra.mxu0 0.0
    %584 = vmatpush.msra.mxu0 0.0
    %585 = vmatpush.msra.mxu0 0.0
    %586 = vmatpush.msra.mxu0 0.0
    %587 = vmatpush.msra.mxu0 0.0
    %588 = vmatpush.msra.mxu0 0.0
    %589 = vmatpush.msra.mxu0 0.0
    %590 = vmatpush.msra.mxu0 %v568
    %591 = vmatmul.f32.gmra.mxu0 %v570
    %v592 = vpop.f32.mrf.mxu0
    %v593 = vadd.f32 0.0, %v592
    %594 = vmatmul.f32.gmra.mxu0 %v573
    %v595 = vpop.f32.mrf.mxu0
    %v596 = vadd.f32 0.0, %v595
    %597 = vdwg.mxu0
    %v599 = vsel %vm226, %v322, 0
    %v602 = vsel %vm226, %v345, 0
    %604 = vmatpush.msra.mxu0 0.0
    %605 = vmatpush.msra.mxu0 0.0
    %606 = vmatpush.msra.mxu0 0.0
    %607 = vmatpush.msra.mxu0 0.0
    %608 = vmatpush.msra.mxu0 0.0
    %609 = vmatpush.msra.mxu0 0.0
    %610 = vmatpush.msra.mxu0 0.0
    %611 = vmatpush.msra.mxu0 0.0
    %612 = vmatpush.msra.mxu0 0.0
    %613 = vmatpush.msra.mxu0 0.0
    %614 = vmatpush.msra.mxu0 0.0
    %615 = vmatpush.msra.mxu0 0.0
    %616 = vmatpush.msra.mxu0 0.0
    %617 = vmatpush.msra.mxu0 0.0
    %618 = vmatpush.msra.mxu0 0.0
    %619 = vmatpush.msra.mxu0 %v347
    %620 = vmatmul.f32.gmra.mxu0 %v599
    %v621 = vpop.f32.mrf.mxu0
    %v622 = vadd.f32 %v593, %v621
    %623 = vmatmul.f32.gmra.mxu0 %v602
    %v624 = vpop.f32.mrf.mxu0
    %v625 = vadd.f32 %v596, %v624
    %626 = vdwg.mxu0
    %s627 = scalar_lea.vmem %s4, 64
    %v628 = vld [vmem:[%s627] sm:$0xff]
    %v629 = vld [vmem:[%s627 + $0x8] sm:$0xff]
    %v630 = vld [vmem:[%s627 + $0x10] sm:$0xff]
    %v631 = vld [vmem:[%s627 + $0x18] sm:$0xff]
    %s632 = scalar_lea.vmem %s5, 2
    %v633 = vld [vmem:[%s632] sm:$0x1]
    %v635 = vperm.slane %v633, 0
    %637 = vmatpush.msra.mxu0 0.0
    %638 = vmatpush.msra.mxu0 0.0
    %639 = vmatpush.msra.mxu0 0.0
    %640 = vmatpush.msra.mxu0 0.0
    %641 = vmatpush.msra.mxu0 0.0
    %642 = vmatpush.msra.mxu0 0.0
    %643 = vmatpush.msra.mxu0 0.0
    %644 = vmatpush.msra.mxu0 0.0
    %645 = vmatpush.msra.mxu0 0.0
    %646 = vmatpush.msra.mxu0 0.0
    %647 = vmatpush.msra.mxu0 0.0
    %648 = vmatpush.msra.mxu0 0.0
    %649 = vmatpush.msra.mxu0 %v631
    %650 = vmatpush.msra.mxu0 %v630
    %651 = vmatpush.msra.mxu0 %v629
    %652 = vmatpush.msra.mxu0 %v628
    %653 = vmatmul.f32.gmra.mxu0 %v136
    %v654 = vpop.f32.mrf.mxu0
    %v655 = vadd.f32 %v635, %v654
    %656 = vmatmul.f32.gmra.mxu0 %v139
    %v657 = vpop.f32.mrf.mxu0
    %v658 = vadd.f32 %v635, %v657
    %659 = vdwg.mxu0
    %s660 = scalar_lea.vmem %s6, 64
    %v661 = vld [vmem:[%s660] sm:$0xff]
    %v662 = vld [vmem:[%s660 + $0x8] sm:$0xff]
    %v663 = vld [vmem:[%s660 + $0x10] sm:$0xff]
    %v664 = vld [vmem:[%s660 + $0x18] sm:$0xff]
    %s665 = scalar_lea.vmem %s7, 2
    %v666 = vld [vmem:[%s665] sm:$0x1]
    %v668 = vperm.slane %v666, 0
    %670 = vmatpush.msra.mxu0 0.0
    %671 = vmatpush.msra.mxu0 0.0
    %672 = vmatpush.msra.mxu0 0.0
    %673 = vmatpush.msra.mxu0 0.0
    %674 = vmatpush.msra.mxu0 0.0
    %675 = vmatpush.msra.mxu0 0.0
    %676 = vmatpush.msra.mxu0 0.0
    %677 = vmatpush.msra.mxu0 0.0
    %678 = vmatpush.msra.mxu0 0.0
    %679 = vmatpush.msra.mxu0 0.0
    %680 = vmatpush.msra.mxu0 0.0
    %681 = vmatpush.msra.mxu0 0.0
    %682 = vmatpush.msra.mxu0 %v664
    %683 = vmatpush.msra.mxu0 %v663
    %684 = vmatpush.msra.mxu0 %v662
    %685 = vmatpush.msra.mxu0 %v661
    %686 = vmatmul.f32.gmra.mxu0 %v136
    %v687 = vpop.f32.mrf.mxu0
    %v688 = vadd.f32 %v668, %v687
    %689 = vmatmul.f32.gmra.mxu0 %v139
    %v690 = vpop.f32.mrf.mxu0
    %v691 = vadd.f32 %v668, %v690
    %692 = vdwg.mxu0
    %s693 = scalar_lea.vmem %s8, 64
    %v694 = vld [vmem:[%s693] sm:$0xff]
    %v695 = vld [vmem:[%s693 + $0x8] sm:$0xff]
    %v696 = vld [vmem:[%s693 + $0x10] sm:$0xff]
    %v697 = vld [vmem:[%s693 + $0x18] sm:$0xff]
    %s698 = scalar_lea.vmem %s9, 2
    %v699 = vld [vmem:[%s698] sm:$0x1]
    %v701 = vperm.slane %v699, 0
    %703 = vmatpush.msra.mxu0 0.0
    %704 = vmatpush.msra.mxu0 0.0
    %705 = vmatpush.msra.mxu0 0.0
    %706 = vmatpush.msra.mxu0 0.0
    %707 = vmatpush.msra.mxu0 0.0
    %708 = vmatpush.msra.mxu0 0.0
    %709 = vmatpush.msra.mxu0 0.0
    %710 = vmatpush.msra.mxu0 0.0
    %711 = vmatpush.msra.mxu0 0.0
    %712 = vmatpush.msra.mxu0 0.0
    %713 = vmatpush.msra.mxu0 0.0
    %714 = vmatpush.msra.mxu0 0.0
    %715 = vmatpush.msra.mxu0 %v697
    %716 = vmatpush.msra.mxu0 %v696
    %717 = vmatpush.msra.mxu0 %v695
    %718 = vmatpush.msra.mxu0 %v694
    %719 = vmatmul.f32.gmra.mxu0 %v136
    %v720 = vpop.f32.mrf.mxu0
    %v721 = vadd.f32 %v701, %v720
    %722 = vmatmul.f32.gmra.mxu0 %v139
    %v723 = vpop.f32.mrf.mxu0
    %v724 = vadd.f32 %v701, %v723
    %725 = vdwg.mxu0
    %v727 = vsel %vm226, %v655, 0
    %v730 = vsel %vm226, %v688, 0
    %732 = vmatpush.xpose.msra.mxu0 0.0
    %733 = vmatpush.xpose.msra.mxu0 0.0
    %734 = vmatpush.xpose.msra.mxu0 0.0
    %735 = vmatpush.xpose.msra.mxu0 0.0
    %736 = vmatpush.xpose.msra.mxu0 0.0
    %737 = vmatpush.xpose.msra.mxu0 0.0
    %738 = vmatpush.xpose.msra.mxu0 0.0
    %739 = vmatpush.xpose.msra.mxu0 0.0
    %740 = vmatpush.xpose.msra.mxu0 0.0
    %741 = vmatpush.xpose.msra.mxu0 0.0
    %742 = vmatpush.xpose.msra.mxu0 0.0
    %743 = vmatpush.xpose.msra.mxu0 0.0
    %744 = vmatpush.xpose.msra.mxu0 0.0
    %745 = vmatpush.xpose.msra.mxu0 0.0
    %746 = vmatpush.xpose.msra.mxu0 0.0
    %747 = vmatpush.xpose.msra.mxu0 %v730
    %748 = vmatmul.f32.gmra.mxu0 %v727
    %v749 = vpop.f32.mrf.mxu0
    %v750 = vadd.f32 0.0, %v749
    %751 = vdwg.mxu0
    %v753 = vsel %vm226, %v658, 0
    %v756 = vsel %vm226, %v691, 0
    %758 = vmatpush.xpose.msra.mxu0 0.0
    %759 = vmatpush.xpose.msra.mxu0 0.0
    %760 = vmatpush.xpose.msra.mxu0 0.0
    %761 = vmatpush.xpose.msra.mxu0 0.0
    %762 = vmatpush.xpose.msra.mxu0 0.0
    %763 = vmatpush.xpose.msra.mxu0 0.0
    %764 = vmatpush.xpose.msra.mxu0 0.0
    %765 = vmatpush.xpose.msra.mxu0 0.0
    %766 = vmatpush.xpose.msra.mxu0 0.0
    %767 = vmatpush.xpose.msra.mxu0 0.0
    %768 = vmatpush.xpose.msra.mxu0 0.0
    %769 = vmatpush.xpose.msra.mxu0 0.0
    %770 = vmatpush.xpose.msra.mxu0 0.0
    %771 = vmatpush.xpose.msra.mxu0 0.0
    %772 = vmatpush.xpose.msra.mxu0 0.0
    %773 = vmatpush.xpose.msra.mxu0 %v756
    %774 = vmatmul.f32.gmra.mxu0 %v753
    %v775 = vpop.f32.mrf.mxu0
    %v776 = vadd.f32 0.0, %v775
    %777 = vdwg.mxu0
    %v778 = vsel %vm226, %v750, -inf
    %779 = vmax.xlane.f32.xlu0 %v778
    %v780 = vpop.xlane.xlu0 %779
    %v781 = vsel %vm226, %v776, -inf
    %782 = vmax.xlane.f32.xlu0 %v781
    %v783 = vpop.xlane.xlu0 %782
    %v784 = vsub.f32 %v750, %v780
    %v785 = vsub.f32 %v776, %v783
    %v786 = vmul.f32 %v784, 1.442695
    %v787 = vpow.pop %v786
    %v788 = vmul.f32 %v785, 1.442695
    %v789 = vpow.pop %v788
    %v790 = vsel %vm226, %v787, 0.0
    %791 = vadd.xlane.f32.xlu0 %v790
    %v792 = vpop.xlane.xlu0 %791
    %v793 = vsel %vm226, %v789, 0.0
    %794 = vadd.xlane.f32.xlu0 %v793
    %v795 = vpop.xlane.xlu0 %794
    %v796 = vrcp.pop %v792
    %v797 = vrcp.pop %v795
    %v798 = vmul.f32 %v787, %v796
    %v799 = vmul.f32 %v789, %v797
    %v801 = vsel %vm226, %v798, 0
    %803 = vmatpush.msra.mxu0 0.0
    %804 = vmatpush.msra.mxu0 0.0
    %805 = vmatpush.msra.mxu0 0.0
    %806 = vmatpush.msra.mxu0 0.0
    %807 = vmatpush.msra.mxu0 0.0
    %808 = vmatpush.msra.mxu0 0.0
    %809 = vmatpush.msra.mxu0 0.0
    %810 = vmatpush.msra.mxu0 0.0
    %811 = vmatpush.msra.mxu0 0.0
    %812 = vmatpush.msra.mxu0 0.0
    %813 = vmatpush.msra.mxu0 0.0
    %814 = vmatpush.msra.mxu0 0.0
    %815 = vmatpush.msra.mxu0 0.0
    %816 = vmatpush.msra.mxu0 0.0
    %817 = vmatpush.msra.mxu0 0.0
    %818 = vmatpush.msra.mxu0 %v721
    %819 = vmatmul.f32.gmra.mxu0 %v801
    %v820 = vpop.f32.mrf.mxu0
    %v821 = vadd.f32 0.0, %v820
    %822 = vdwg.mxu0
    %v824 = vsel %vm226, %v799, 0
    %826 = vmatpush.msra.mxu0 0.0
    %827 = vmatpush.msra.mxu0 0.0
    %828 = vmatpush.msra.mxu0 0.0
    %829 = vmatpush.msra.mxu0 0.0
    %830 = vmatpush.msra.mxu0 0.0
    %831 = vmatpush.msra.mxu0 0.0
    %832 = vmatpush.msra.mxu0 0.0
    %833 = vmatpush.msra.mxu0 0.0
    %834 = vmatpush.msra.mxu0 0.0
    %835 = vmatpush.msra.mxu0 0.0
    %836 = vmatpush.msra.mxu0 0.0
    %837 = vmatpush.msra.mxu0 0.0
    %838 = vmatpush.msra.mxu0 0.0
    %839 = vmatpush.msra.mxu0 0.0
    %840 = vmatpush.msra.mxu0 0.0
    %841 = vmatpush.msra.mxu0 %v724
    %842 = vmatmul.f32.gmra.mxu0 %v824
    %v843 = vpop.f32.mrf.mxu0
    %v844 = vadd.f32 0.0, %v843
    %845 = vdwg.mxu0
    %s846 = scalar_lea.vmem %s10, 16
    %v847 = vld [vmem:[%s846] sm:$0xff]
    %v849 = vsel %vm226, %v821, 0
    %v852 = vsel %vm226, %v844, 0
    %854 = vmatpush.msra.mxu0 0.0
    %855 = vmatpush.msra.mxu0 0.0
    %856 = vmatpush.msra.mxu0 0.0
    %857 = vmatpush.msra.mxu0 0.0
    %858 = vmatpush.msra.mxu0 0.0
    %859 = vmatpush.msra.mxu0 0.0
    %860 = vmatpush.msra.mxu0 0.0
    %861 = vmatpush.msra.mxu0 0.0
    %862 = vmatpush.msra.mxu0 0.0
    %863 = vmatpush.msra.mxu0 0.0
    %864 = vmatpush.msra.mxu0 0.0
    %865 = vmatpush.msra.mxu0 0.0
    %866 = vmatpush.msra.mxu0 0.0
    %867 = vmatpush.msra.mxu0 0.0
    %868 = vmatpush.msra.mxu0 0.0
    %869 = vmatpush.msra.mxu0 %v847
    %870 = vmatmul.f32.gmra.mxu0 %v849
    %v871 = vpop.f32.mrf.mxu0
    %v872 = vadd.f32 0.0, %v871
    %873 = vmatmul.f32.gmra.mxu0 %v852
    %v874 = vpop.f32.mrf.mxu0
    %v875 = vadd.f32 0.0, %v874
    %876 = vdwg.mxu0
    %v877 = vadd.f32 %v622, %v872
    %v878 = vadd.f32 %v625, %v875
    %s879 = scalar_lea.vmem %s4, 96
    %v880 = vld [vmem:[%s879] sm:$0xff]
    %v881 = vld [vmem:[%s879 + $0x8] sm:$0xff]
    %v882 = vld [vmem:[%s879 + $0x10] sm:$0xff]
    %v883 = vld [vmem:[%s879 + $0x18] sm:$0xff]
    %s884 = scalar_lea.vmem %s5, 3
    %v885 = vld [vmem:[%s884] sm:$0x1]
    %v887 = vperm.slane %v885, 0
    %889 = vmatpush.msra.mxu0 0.0
    %890 = vmatpush.msra.mxu0 0.0
    %891 = vmatpush.msra.mxu0 0.0
    %892 = vmatpush.msra.mxu0 0.0
    %893 = vmatpush.msra.mxu0 0.0
    %894 = vmatpush.msra.mxu0 0.0
    %895 = vmatpush.msra.mxu0 0.0
    %896 = vmatpush.msra.mxu0 0.0
    %897 = vmatpush.msra.mxu0 0.0
    %898 = vmatpush.msra.mxu0 0.0
    %899 = vmatpush.msra.mxu0 0.0
    %900 = vmatpush.msra.mxu0 0.0
    %901 = vmatpush.msra.mxu0 %v883
    %902 = vmatpush.msra.mxu0 %v882
    %903 = vmatpush.msra.mxu0 %v881
    %904 = vmatpush.msra.mxu0 %v880
    %905 = vmatmul.f32.gmra.mxu0 %v136
    %v906 = vpop.f32.mrf.mxu0
    %v907 = vadd.f32 %v887, %v906
    %908 = vmatmul.f32.gmra.mxu0 %v139
    %v909 = vpop.f32.mrf.mxu0
    %v910 = vadd.f32 %v887, %v909
    %911 = vdwg.mxu0
    %s912 = scalar_lea.vmem %s6, 96
    %v913 = vld [vmem:[%s912] sm:$0xff]
    %v914 = vld [vmem:[%s912 + $0x8] sm:$0xff]
    %v915 = vld [vmem:[%s912 + $0x10] sm:$0xff]
    %v916 = vld [vmem:[%s912 + $0x18] sm:$0xff]
    %s917 = scalar_lea.vmem %s7, 3
    %v918 = vld [vmem:[%s917] sm:$0x1]
    %v920 = vperm.slane %v918, 0
    %922 = vmatpush.msra.mxu0 0.0
    %923 = vmatpush.msra.mxu0 0.0
    %924 = vmatpush.msra.mxu0 0.0
    %925 = vmatpush.msra.mxu0 0.0
    %926 = vmatpush.msra.mxu0 0.0
    %927 = vmatpush.msra.mxu0 0.0
    %928 = vmatpush.msra.mxu0 0.0
    %929 = vmatpush.msra.mxu0 0.0
    %930 = vmatpush.msra.mxu0 0.0
    %931 = vmatpush.msra.mxu0 0.0
    %932 = vmatpush.msra.mxu0 0.0
    %933 = vmatpush.msra.mxu0 0.0
    %934 = vmatpush.msra.mxu0 %v916
    %935 = vmatpush.msra.mxu0 %v915
    %936 = vmatpush.msra.mxu0 %v914
    %937 = vmatpush.msra.mxu0 %v913
    %938 = vmatmul.f32.gmra.mxu0 %v136
    %v939 = vpop.f32.mrf.mxu0
    %v940 = vadd.f32 %v920, %v939
    %941 = vmatmul.f32.gmra.mxu0 %v139
    %v942 = vpop.f32.mrf.mxu0
    %v943 = vadd.f32 %v920, %v942
    %944 = vdwg.mxu0
    %s945 = scalar_lea.vmem %s8, 96
    %v946 = vld [vmem:[%s945] sm:$0xff]
    %v947 = vld [vmem:[%s945 + $0x8] sm:$0xff]
    %v948 = vld [vmem:[%s945 + $0x10] sm:$0xff]
    %v949 = vld [vmem:[%s945 + $0x18] sm:$0xff]
    %s950 = scalar_lea.vmem %s9, 3
    %v951 = vld [vmem:[%s950] sm:$0x1]
    %v953 = vperm.slane %v951, 0
    %955 = vmatpush.msra.mxu0 0.0
    %956 = vmatpush.msra.mxu0 0.0
    %957 = vmatpush.msra.mxu0 0.0
    %958 = vmatpush.msra.mxu0 0.0
    %959 = vmatpush.msra.mxu0 0.0
    %960 = vmatpush.msra.mxu0 0.0
    %961 = vmatpush.msra.mxu0 0.0
    %962 = vmatpush.msra.mxu0 0.0
    %963 = vmatpush.msra.mxu0 0.0
    %964 = vmatpush.msra.mxu0 0.0
    %965 = vmatpush.msra.mxu0 0.0
    %966 = vmatpush.msra.mxu0 0.0
    %967 = vmatpush.msra.mxu0 %v949
    %968 = vmatpush.msra.mxu0 %v948
    %969 = vmatpush.msra.mxu0 %v947
    %970 = vmatpush.msra.mxu0 %v946
    %971 = vmatmul.f32.gmra.mxu0 %v136
    %v972 = vpop.f32.mrf.mxu0
    %v973 = vadd.f32 %v953, %v972
    %974 = vmatmul.f32.gmra.mxu0 %v139
    %v975 = vpop.f32.mrf.mxu0
    %v976 = vadd.f32 %v953, %v975
    %977 = vdwg.mxu0
    %v979 = vsel %vm226, %v907, 0
    %v982 = vsel %vm226, %v940, 0
    %984 = vmatpush.xpose.msra.mxu0 0.0
    %985 = vmatpush.xpose.msra.mxu0 0.0
    %986 = vmatpush.xpose.msra.mxu0 0.0
    %987 = vmatpush.xpose.msra.mxu0 0.0
    %988 = vmatpush.xpose.msra.mxu0 0.0
    %989 = vmatpush.xpose.msra.mxu0 0.0
    %990 = vmatpush.xpose.msra.mxu0 0.0
    %991 = vmatpush.xpose.msra.mxu0 0.0
    %992 = vmatpush.xpose.msra.mxu0 0.0
    %993 = vmatpush.xpose.msra.mxu0 0.0
    %994 = vmatpush.xpose.msra.mxu0 0.0
    %995 = vmatpush.xpose.msra.mxu0 0.0
    %996 = vmatpush.xpose.msra.mxu0 0.0
    %997 = vmatpush.xpose.msra.mxu0 0.0
    %998 = vmatpush.xpose.msra.mxu0 0.0
    %999 = vmatpush.xpose.msra.mxu0 %v982
    %1000 = vmatmul.f32.gmra.mxu0 %v979
    %v1001 = vpop.f32.mrf.mxu0
    %v1002 = vadd.f32 0.0, %v1001
    %1003 = vdwg.mxu0
    %v1005 = vsel %vm226, %v910, 0
    %v1008 = vsel %vm226, %v943, 0
    %1010 = vmatpush.xpose.msra.mxu0 0.0
    %1011 = vmatpush.xpose.msra.mxu0 0.0
    %1012 = vmatpush.xpose.msra.mxu0 0.0
    %1013 = vmatpush.xpose.msra.mxu0 0.0
    %1014 = vmatpush.xpose.msra.mxu0 0.0
    %1015 = vmatpush.xpose.msra.mxu0 0.0
    %1016 = vmatpush.xpose.msra.mxu0 0.0
    %1017 = vmatpush.xpose.msra.mxu0 0.0
    %1018 = vmatpush.xpose.msra.mxu0 0.0
    %1019 = vmatpush.xpose.msra.mxu0 0.0
    %1020 = vmatpush.xpose.msra.mxu0 0.0
    %1021 = vmatpush.xpose.msra.mxu0 0.0
    %1022 = vmatpush.xpose.msra.mxu0 0.0
    %1023 = vmatpush.xpose.msra.mxu0 0.0
    %1024 = vmatpush.xpose.msra.mxu0 0.0
    %1025 = vmatpush.xpose.msra.mxu0 %v1008
    %1026 = vmatmul.f32.gmra.mxu0 %v1005
    %v1027 = vpop.f32.mrf.mxu0
    %v1028 = vadd.f32 0.0, %v1027
    %1029 = vdwg.mxu0
    %v1030 = vsel %vm226, %v1002, -inf
    %1031 = vmax.xlane.f32.xlu0 %v1030
    %v1032 = vpop.xlane.xlu0 %1031
    %v1033 = vsel %vm226, %v1028, -inf
    %1034 = vmax.xlane.f32.xlu0 %v1033
    %v1035 = vpop.xlane.xlu0 %1034
    %v1036 = vsub.f32 %v1002, %v1032
    %v1037 = vsub.f32 %v1028, %v1035
    %v1038 = vmul.f32 %v1036, 1.442695
    %v1039 = vpow.pop %v1038
    %v1040 = vmul.f32 %v1037, 1.442695
    %v1041 = vpow.pop %v1040
    %v1042 = vsel %vm226, %v1039, 0.0
    %1043 = vadd.xlane.f32.xlu0 %v1042
    %v1044 = vpop.xlane.xlu0 %1043
    %v1045 = vsel %vm226, %v1041, 0.0
    %1046 = vadd.xlane.f32.xlu0 %v1045
    %v1047 = vpop.xlane.xlu0 %1046
    %v1048 = vrcp.pop %v1044
    %v1049 = vrcp.pop %v1047
    %v1050 = vmul.f32 %v1039, %v1048
    %v1051 = vmul.f32 %v1041, %v1049
    %v1053 = vsel %vm226, %v1050, 0
    %1055 = vmatpush.msra.mxu0 0.0
    %1056 = vmatpush.msra.mxu0 0.0
    %1057 = vmatpush.msra.mxu0 0.0
    %1058 = vmatpush.msra.mxu0 0.0
    %1059 = vmatpush.msra.mxu0 0.0
    %1060 = vmatpush.msra.mxu0 0.0
    %1061 = vmatpush.msra.mxu0 0.0
    %1062 = vmatpush.msra.mxu0 0.0
    %1063 = vmatpush.msra.mxu0 0.0
    %1064 = vmatpush.msra.mxu0 0.0
    %1065 = vmatpush.msra.mxu0 0.0
    %1066 = vmatpush.msra.mxu0 0.0
    %1067 = vmatpush.msra.mxu0 0.0
    %1068 = vmatpush.msra.mxu0 0.0
    %1069 = vmatpush.msra.mxu0 0.0
    %1070 = vmatpush.msra.mxu0 %v973
    %1071 = vmatmul.f32.gmra.mxu0 %v1053
    %v1072 = vpop.f32.mrf.mxu0
    %v1073 = vadd.f32 0.0, %v1072
    %1074 = vdwg.mxu0
    %v1076 = vsel %vm226, %v1051, 0
    %1078 = vmatpush.msra.mxu0 0.0
    %1079 = vmatpush.msra.mxu0 0.0
    %1080 = vmatpush.msra.mxu0 0.0
    %1081 = vmatpush.msra.mxu0 0.0
    %1082 = vmatpush.msra.mxu0 0.0
    %1083 = vmatpush.msra.mxu0 0.0
    %1084 = vmatpush.msra.mxu0 0.0
    %1085 = vmatpush.msra.mxu0 0.0
    %1086 = vmatpush.msra.mxu0 0.0
    %1087 = vmatpush.msra.mxu0 0.0
    %1088 = vmatpush.msra.mxu0 0.0
    %1089 = vmatpush.msra.mxu0 0.0
    %1090 = vmatpush.msra.mxu0 0.0
    %1091 = vmatpush.msra.mxu0 0.0
    %1092 = vmatpush.msra.mxu0 0.0
    %1093 = vmatpush.msra.mxu0 %v976
    %1094 = vmatmul.f32.gmra.mxu0 %v1076
    %v1095 = vpop.f32.mrf.mxu0
    %v1096 = vadd.f32 0.0, %v1095
    %1097 = vdwg.mxu0
    %s1098 = scalar_lea.vmem %s10, 24
    %v1099 = vld [vmem:[%s1098] sm:$0xff]
    %v1101 = vsel %vm226, %v1073, 0
    %v1104 = vsel %vm226, %v1096, 0
    %1106 = vmatpush.msra.mxu0 0.0
    %1107 = vmatpush.msra.mxu0 0.0
    %1108 = vmatpush.msra.mxu0 0.0
    %1109 = vmatpush.msra.mxu0 0.0
    %1110 = vmatpush.msra.mxu0 0.0
    %1111 = vmatpush.msra.mxu0 0.0
    %1112 = vmatpush.msra.mxu0 0.0
    %1113 = vmatpush.msra.mxu0 0.0
    %1114 = vmatpush.msra.mxu0 0.0
    %1115 = vmatpush.msra.mxu0 0.0
    %1116 = vmatpush.msra.mxu0 0.0
    %1117 = vmatpush.msra.mxu0 0.0
    %1118 = vmatpush.msra.mxu0 0.0
    %1119 = vmatpush.msra.mxu0 0.0
    %1120 = vmatpush.msra.mxu0 0.0
    %1121 = vmatpush.msra.mxu0 %v1099
    %1122 = vmatmul.f32.gmra.mxu0 %v1101
    %v1123 = vpop.f32.mrf.mxu0
    %v1124 = vadd.f32 0.0, %v1123
    %1125 = vmatmul.f32.gmra.mxu0 %v1104
    %v1126 = vpop.f32.mrf.mxu0
    %v1127 = vadd.f32 0.0, %v1126
    %1128 = vdwg.mxu0
    %v1129 = vadd.f32 %v877, %v1124
    %v1130 = vadd.f32 %v878, %v1127
    %v1131 = vld [vmem:[%s11] sm:$0x1]
    %v1133 = vperm.slane %v1131, 0
    %v1135 = vadd.f32 %v1129, %v1133
    %v1136 = vadd.f32 %v1130, %v1133
    %v1137 = vadd.f32 %v124, %v1135
    %v1138 = vadd.f32 %v125, %v1136
    %v1139 = vld [vmem:[%s16] sm:$0x1]
    %v1140 = vld [vmem:[%s17] sm:$0x1]
    %v1141 = vsel %vm134, %v1137, 0.0
    %1142 = vadd.xlane.f32.xlu0 %v1141
    %v1143 = vpop.xlane.xlu0 %1142
    %v1144 = vsel %vm134, %v1138, 0.0
    %1145 = vadd.xlane.f32.xlu0 %v1144
    %v1146 = vpop.xlane.xlu0 %1145
    %v1147 = vrcp.pop 32.0
    %v1148 = vmul.f32 32.0, %v1147
    %v1149 = vsub.f32 1.0, %v1148
    %v1150 = vmul.f32 %v1147, %v1149
    %v1151 = vadd.f32 %v1147, %v1150
    %vm1152 = vweird.f32 %v1147
    %v1153 = vsel %vm1152, %v1147, %v1151
    %v1154 = vmul.f32 %v1143, %v1153
    %v1155 = vmul.f32 %v1146, %v1153
    %v1156 = vsub.f32 %v1137, %v1154
    %v1157 = vsub.f32 %v1138, %v1155
    %v1158 = vmul.f32 %v1156, %v1156
    %v1159 = vmul.f32 %v1157, %v1157
    %v1160 = vsel %vm134, %v1158, 0.0
    %1161 = vadd.xlane.f32.xlu0 %v1160
    %v1162 = vpop.xlane.xlu0 %1161
    %v1163 = vsel %vm134, %v1159, 0.0
    %1164 = vadd.xlane.f32.xlu0 %v1163
    %v1165 = vpop.xlane.xlu0 %1164
    %v1166 = vmul.f32 %v1162, %v1153
    %v1167 = vmul.f32 %v1165, %v1153
    %v1168 = vadd.f32 %v1166, 1e-05
    %v1169 = vadd.f32 %v1167, 1e-05
    %v1170 = vrsqrt.pop %v1168
    %v1171 = vmul.f32 %v1170, %v1168
    %v1172 = vmul.f32 %v1171, %v1170
    %v1173 = vmul.f32 0.5, %v1172
    %v1174 = vsub.f32 1.5, %v1173
    %v1175 = vmul.f32 %v1170, %v1174
    %vm1176 = vweird.f32 %v1168
    %vm1177 = vweird.f32 %v1170
    %vm1178 = vmor %vm1176, %vm1177
    %v1179 = vsel %vm1178, %v1170, %v1175
    %v1180 = vrsqrt.pop %v1169
    %v1181 = vmul.f32 %v1180, %v1169
    %v1182 = vmul.f32 %v1181, %v1180
    %v1183 = vmul.f32 0.5, %v1182
    %v1184 = vsub.f32 1.5, %v1183
    %v1185 = vmul.f32 %v1180, %v1184
    %vm1186 = vweird.f32 %v1169
    %vm1187 = vweird.f32 %v1180
    %vm1188 = vmor %vm1186, %vm1187
    %v1189 = vsel %vm1188, %v1180, %v1185
    %v1190 = vmul.f32 %v1156, %v1179
    %v1191 = vmul.f32 %v1157, %v1189
    %v1193 = vperm.slane %v1139, 0
    %v1195 = vmul.f32 %v1190, %v1193
    %v1196 = vmul.f32 %v1191, %v1193
    %v1198 = vperm.slane %v1140, 0
    %v1200 = vadd.f32 %v1195, %v1198
    %v1201 = vadd.f32 %v1196, %v1198
    %v1202 = vld [vmem:[%s12] sm:$0xff]
    %v1203 = vld [vmem:[%s12 + $0x8] sm:$0xff]
    %v1204 = vld [vmem:[%s12 + $0x10] sm:$0xff]
    %v1205 = vld [vmem:[%s12 + $0x18] sm:$0xff]
    %v1206 = vld [vmem:[%s13] sm:$0x1]
    %v1208 = vperm.slane %v1206, 0
    %v1211 = vsel %vm134, %v1200, 0
    %v1214 = vsel %vm134, %v1201, 0
    %1216 = vmatpush.msra.mxu0 0.0
    %1217 = vmatpush.msra.mxu0 0.0
    %1218 = vmatpush.msra.mxu0 0.0
    %1219 = vmatpush.msra.mxu0 0.0
    %1220 = vmatpush.msra.mxu0 0.0
    %1221 = vmatpush.msra.mxu0 0.0
    %1222 = vmatpush.msra.mxu0 0.0
    %1223 = vmatpush.msra.mxu0 0.0
    %1224 = vmatpush.msra.mxu0 0.0
    %1225 = vmatpush.msra.mxu0 0.0
    %1226 = vmatpush.msra.mxu0 0.0
    %1227 = vmatpush.msra.mxu0 0.0
    %1228 = vmatpush.msra.mxu0 %v1205
    %1229 = vmatpush.msra.mxu0 %v1204
    %1230 = vmatpush.msra.mxu0 %v1203
    %1231 = vmatpush.msra.mxu0 %v1202
    %1232 = vmatmul.f32.gmra.mxu0 %v1211
    %v1233 = vpop.f32.mrf.mxu0
    %v1234 = vadd.f32 %v1208, %v1233
    %1235 = vmatmul.f32.gmra.mxu0 %v1214
    %v1236 = vpop.f32.mrf.mxu0
    %v1237 = vadd.f32 %v1208, %v1236
    %1238 = vdwg.mxu0
    %v1239 = vmax.f32 %v1234, 0.0
    %v1240 = vmax.f32 %v1237, 0.0
    %v1241 = vld [vmem:[%s14] sm:$0xff]
    %v1242 = vld [vmem:[%s14 + $0x8] sm:$0xff]
    %v1243 = vld [vmem:[%s14 + $0x10] sm:$0xff]
    %v1244 = vld [vmem:[%s14 + $0x18] sm:$0xff]
    %v1245 = vld [vmem:[%s14 + $0x20] sm:$0xff]
    %v1246 = vld [vmem:[%s14 + $0x28] sm:$0xff]
    %v1247 = vld [vmem:[%s14 + $0x30] sm:$0xff]
    %v1248 = vld [vmem:[%s14 + $0x38] sm:$0xff]
    %v1249 = vld [vmem:[%s15] sm:$0x1]
    %v1251 = vperm.slane %v1249, 0
    %vm1253 = vcmask 523264
    %v1255 = vsel %vm1253, %v1239, 0
    %v1258 = vsel %vm1253, %v1240, 0
    %1260 = vmatpush.msra.mxu0 0.0
    %1261 = vmatpush.msra.mxu0 0.0
    %1262 = vmatpush.msra.mxu0 0.0
    %1263 = vmatpush.msra.mxu0 0.0
    %1264 = vmatpush.msra.mxu0 0.0
    %1265 = vmatpush.msra.mxu0 0.0
    %1266 = vmatpush.msra.mxu0 0.0
    %1267 = vmatpush.msra.mxu0 0.0
    %1268 = vmatpush.msra.mxu0 %v1248
    %1269 = vmatpush.msra.mxu0 %v1247
    %1270 = vmatpush.msra.mxu0 %v1246
    %1271 = vmatpush.msra.mxu0 %v1245
    %1272 = vmatpush.msra.mxu0 %v1244
    %1273 = vmatpush.msra.mxu0 %v1243
    %1274 = vmatpush.msra.mxu0 %v1242
    %1275 = vmatpush.msra.mxu0 %v1241
    %1276 = vmatmul.f32.gmra.mxu0 %v1255
    %v1277 = vpop.f32.mrf.mxu0
    %v1278 = vadd.f32 %v1251, %v1277
    %1279 = vmatmul.f32.gmra.mxu0 %v1258
    %v1280 = vpop.f32.mrf.mxu0
    %v1281 = vadd.f32 %v1251, %v1280
    %1282 = vdwg.mxu0
    %v1283 = vadd.f32 %v1200, %v1278
    %v1284 = vadd.f32 %v1201, %v1281
    %v1285 = vld [vmem:[%s18] sm:$0x1]
    %v1286 = vld [vmem:[%s19] sm:$0x1]
    %v1287 = vsel %vm134, %v1283, 0.0
    %1288 = vadd.xlane.f32.xlu0 %v1287
    %v1289 = vpop.xlane.xlu0 %1288
    %v1290 = vsel %vm134, %v1284, 0.0
    %1291 = vadd.xlane.f32.xlu0 %v1290
    %v1292 = vpop.xlane.xlu0 %1291
    %v1293 = vmul.f32 %v1289, %v1153
    %v1294 = vmul.f32 %v1292, %v1153
    %v1295 = vsub.f32 %v1283, %v1293
    %v1296 = vsub.f32 %v1284, %v1294
    %v1297 = vmul.f32 %v1295, %v1295
    %v1298 = vmul.f32 %v1296, %v1296
    %v1299 = vsel %vm134, %v1297, 0.0
    %1300 = vadd.xlane.f32.xlu0 %v1299
    %v1301 = vpop.xlane.xlu0 %1300
    %v1302 = vsel %vm134, %v1298, 0.0
    %1303 = vadd.xlane.f32.xlu0 %v1302
    %v1304 = vpop.xlane.xlu0 %1303
    %v1305 = vmul.f32 %v1301, %v1153
    %v1306 = vmul.f32 %v1304, %v1153
    %v1307 = vadd.f32 %v1305, 1e-05
    %v1308 = vadd.f32 %v1306, 1e-05
    %v1309 = vrsqrt.pop %v1307
    %v1310 = vmul.f32 %v1309, %v1307
    %v1311 = vmul.f32 %v1310, %v1309
    %v1312 = vmul.f32 0.5, %v1311
    %v1313 = vsub.f32 1.5, %v1312
    %v1314 = vmul.f32 %v1309, %v1313
    %vm1315 = vweird.f32 %v1307
    %vm1316 = vweird.f32 %v1309
    %vm1317 = vmor %vm1315, %vm1316
    %v1318 = vsel %vm1317, %v1309, %v1314
    %v1319 = vrsqrt.pop %v1308
    %v1320 = vmul.f32 %v1319, %v1308
    %v1321 = vmul.f32 %v1320, %v1319
    %v1322 = vmul.f32 0.5, %v1321
    %v1323 = vsub.f32 1.5, %v1322
    %v1324 = vmul.f32 %v1319, %v1323
    %vm1325 = vweird.f32 %v1308
    %vm1326 = vweird.f32 %v1319
    %vm1327 = vmor %vm1325, %vm1326
    %v1328 = vsel %vm1327, %v1319, %v1324
    %v1329 = vmul.f32 %v1295, %v1318
    %v1330 = vmul.f32 %v1296, %v1328
    %v1332 = vperm.slane %v1285, 0
    %v1334 = vmul.f32 %v1329, %v1332
    %v1335 = vmul.f32 %v1330, %v1332
    %v1337 = vperm.slane %v1286, 0
    %v1339 = vadd.f32 %v1334, %v1337
    %v1340 = vadd.f32 %v1335, %v1337
    %s1341 = scalar_lea.vmem %s4, 128
    %v1342 = vld [vmem:[%s1341] sm:$0xff]
    %v1343 = vld [vmem:[%s1341 + $0x8] sm:$0xff]
    %v1344 = vld [vmem:[%s1341 + $0x10] sm:$0xff]
    %v1345 = vld [vmem:[%s1341 + $0x18] sm:$0xff]
    %s1346 = scalar_lea.vmem %s5, 4
    %v1347 = vld [vmem:[%s1346] sm:$0x1]
    %v1349 = vperm.slane %v1347, 0
    %v1352 = vsel %vm134, %v1339, 0
    %v1355 = vsel %vm134, %v1340, 0
    %1357 = vmatpush.msra.mxu0 0.0
    %1358 = vmatpush.msra.mxu0 0.0
    %1359 = vmatpush.msra.mxu0 0.0
    %1360 = vmatpush.msra.mxu0 0.0
    %1361 = vmatpush.msra.mxu0 0.0
    %1362 = vmatpush.msra.mxu0 0.0
    %1363 = vmatpush.msra.mxu0 0.0
    %1364 = vmatpush.msra.mxu0 0.0
    %1365 = vmatpush.msra.mxu0 0.0
    %1366 = vmatpush.msra.mxu0 0.0
    %1367 = vmatpush.msra.mxu0 0.0
    %1368 = vmatpush.msra.mxu0 0.0
    %1369 = vmatpush.msra.mxu0 %v1345
    %1370 = vmatpush.msra.mxu0 %v1344
    %1371 = vmatpush.msra.mxu0 %v1343
    %1372 = vmatpush.msra.mxu0 %v1342
    %1373 = vmatmul.f32.gmra.mxu0 %v1352
    %v1374 = vpop.f32.mrf.mxu0
    %v1375 = vadd.f32 %v1349, %v1374
    %1376 = vmatmul.f32.gmra.mxu0 %v1355
    %v1377 = vpop.f32.mrf.mxu0
    %v1378 = vadd.f32 %v1349, %v1377
    %1379 = vdwg.mxu0
    %s1380 = scalar_lea.vmem %s6, 128
    %v1381 = vld [vmem:[%s1380] sm:$0xff]
    %v1382 = vld [vmem:[%s1380 + $0x8] sm:$0xff]
    %v1383 = vld [vmem:[%s1380 + $0x10] sm:$0xff]
    %v1384 = vld [vmem:[%s1380 + $0x18] sm:$0xff]
    %s1385 = scalar_lea.vmem %s7, 4
    %v1386 = vld [vmem:[%s1385] sm:$0x1]
    %v1388 = vperm.slane %v1386, 0
    %1390 = vmatpush.msra.mxu0 0.0
    %1391 = vmatpush.msra.mxu0 0.0
    %1392 = vmatpush.msra.mxu0 0.0
    %1393 = vmatpush.msra.mxu0 0.0
    %1394 = vmatpush.msra.mxu0 0.0
    %1395 = vmatpush.msra.mxu0 0.0
    %1396 = vmatpush.msra.mxu0 0.0
    %1397 = vmatpush.msra.mxu0 0.0
    %1398 = vmatpush.msra.mxu0 0.0
    %1399 = vmatpush.msra.mxu0 0.0
    %1400 = vmatpush.msra.mxu0 0.0
    %1401 = vmatpush.msra.mxu0 0.0
    %1402 = vmatpush.msra.mxu0 %v1384
    %1403 = vmatpush.msra.mxu0 %v1383
    %1404 = vmatpush.msra.mxu0 %v1382
    %1405 = vmatpush.msra.mxu0 %v1381
    %1406 = vmatmul.f32.gmra.mxu0 %v1352
    %v1407 = vpop.f32.mrf.mxu0
    %v1408 = vadd.f32 %v1388, %v1407
    %1409 = vmatmul.f32.gmra.mxu0 %v1355
    %v1410 = vpop.f32.mrf.mxu0
    %v1411 = vadd.f32 %v1388, %v1410
    %1412 = vdwg.mxu0
    %s1413 = scalar_lea.vmem %s8, 128
    %v1414 = vld [vmem:[%s1413] sm:$0xff]
    %v1415 = vld [vmem:[%s1413 + $0x8] sm:$0xff]
    %v1416 = vld [vmem:[%s1413 + $0x10] sm:$0xff]
    %v1417 = vld [vmem:[%s1413 + $0x18] sm:$0xff]
    %s1418 = scalar_lea.vmem %s9, 4
    %v1419 = vld [vmem:[%s1418] sm:$0x1]
    %v1421 = vperm.slane %v1419, 0
    %1423 = vmatpush.msra.mxu0 0.0
    %1424 = vmatpush.msra.mxu0 0.0
    %1425 = vmatpush.msra.mxu0 0.0
    %1426 = vmatpush.msra.mxu0 0.0
    %1427 = vmatpush.msra.mxu0 0.0
    %1428 = vmatpush.msra.mxu0 0.0
    %1429 = vmatpush.msra.mxu0 0.0
    %1430 = vmatpush.msra.mxu0 0.0
    %1431 = vmatpush.msra.mxu0 0.0
    %1432 = vmatpush.msra.mxu0 0.0
    %1433 = vmatpush.msra.mxu0 0.0
    %1434 = vmatpush.msra.mxu0 0.0
    %1435 = vmatpush.msra.mxu0 %v1417
    %1436 = vmatpush.msra.mxu0 %v1416
    %1437 = vmatpush.msra.mxu0 %v1415
    %1438 = vmatpush.msra.mxu0 %v1414
    %1439 = vmatmul.f32.gmra.mxu0 %v1352
    %v1440 = vpop.f32.mrf.mxu0
    %v1441 = vadd.f32 %v1421, %v1440
    %1442 = vmatmul.f32.gmra.mxu0 %v1355
    %v1443 = vpop.f32.mrf.mxu0
    %v1444 = vadd.f32 %v1421, %v1443
    %1445 = vdwg.mxu0
    %v1447 = vsel %vm226, %v1375, 0
    %v1450 = vsel %vm226, %v1408, 0
    %1452 = vmatpush.xpose.msra.mxu0 0.0
    %1453 = vmatpush.xpose.msra.mxu0 0.0
    %1454 = vmatpush.xpose.msra.mxu0 0.0
    %1455 = vmatpush.xpose.msra.mxu0 0.0
    %1456 = vmatpush.xpose.msra.mxu0 0.0
    %1457 = vmatpush.xpose.msra.mxu0 0.0
    %1458 = vmatpush.xpose.msra.mxu0 0.0
    %1459 = vmatpush.xpose.msra.mxu0 0.0
    %1460 = vmatpush.xpose.msra.mxu0 0.0
    %1461 = vmatpush.xpose.msra.mxu0 0.0
    %1462 = vmatpush.xpose.msra.mxu0 0.0
    %1463 = vmatpush.xpose.msra.mxu0 0.0
    %1464 = vmatpush.xpose.msra.mxu0 0.0
    %1465 = vmatpush.xpose.msra.mxu0 0.0
    %1466 = vmatpush.xpose.msra.mxu0 0.0
    %1467 = vmatpush.xpose.msra.mxu0 %v1450
    %1468 = vmatmul.f32.gmra.mxu0 %v1447
    %v1469 = vpop.f32.mrf.mxu0
    %v1470 = vadd.f32 0.0, %v1469
    %1471 = vdwg.mxu0
    %v1473 = vsel %vm226, %v1378, 0
    %v1476 = vsel %vm226, %v1411, 0
    %1478 = vmatpush.xpose.msra.mxu0 0.0
    %1479 = vmatpush.xpose.msra.mxu0 0.0
    %1480 = vmatpush.xpose.msra.mxu0 0.0
    %1481 = vmatpush.xpose.msra.mxu0 0.0
    %1482 = vmatpush.xpose.msra.mxu0 0.0
    %1483 = vmatpush.xpose.msra.mxu0 0.0
    %1484 = vmatpush.xpose.msra.mxu0 0.0
    %1485 = vmatpush.xpose.msra.mxu0 0.0
    %1486 = vmatpush.xpose.msra.mxu0 0.0
    %1487 = vmatpush.xpose.msra.mxu0 0.0
    %1488 = vmatpush.xpose.msra.mxu0 0.0
    %1489 = vmatpush.xpose.msra.mxu0 0.0
    %1490 = vmatpush.xpose.msra.mxu0 0.0
    %1491 = vmatpush.xpose.msra.mxu0 0.0
    %1492 = vmatpush.xpose.msra.mxu0 0.0
    %1493 = vmatpush.xpose.msra.mxu0 %v1476
    %1494 = vmatmul.f32.gmra.mxu0 %v1473
    %v1495 = vpop.f32.mrf.mxu0
    %v1496 = vadd.f32 0.0, %v1495
    %1497 = vdwg.mxu0
    %v1498 = vsel %vm226, %v1470, -inf
    %1499 = vmax.xlane.f32.xlu0 %v1498
    %v1500 = vpop.xlane.xlu0 %1499
    %v1501 = vsel %vm226, %v1496, -inf
    %1502 = vmax.xlane.f32.xlu0 %v1501
    %v1503 = vpop.xlane.xlu0 %1502
    %v1504 = vsub.f32 %v1470, %v1500
    %v1505 = vsub.f32 %v1496, %v1503
    %v1506 = vmul.f32 %v1504, 1.442695
    %v1507 = vpow.pop %v1506
    %v1508 = vmul.f32 %v1505, 1.442695
    %v1509 = vpow.pop %v1508
    %v1510 = vsel %vm226, %v1507, 0.0
    %1511 = vadd.xlane.f32.xlu0 %v1510
    %v1512 = vpop.xlane.xlu0 %1511
    %v1513 = vsel %vm226, %v1509, 0.0
    %1514 = vadd.xlane.f32.xlu0 %v1513
    %v1515 = vpop.xlane.xlu0 %1514
    %v1516 = vrcp.pop %v1512
    %v1517 = vrcp.pop %v1515
    %v1518 = vmul.f32 %v1507, %v1516
    %v1519 = vmul.f32 %v1509, %v1517
    %v1521 = vsel %vm226, %v1518, 0
    %1523 = vmatpush.msra.mxu0 0.0
    %1524 = vmatpush.msra.mxu0 0.0
    %1525 = vmatpush.msra.mxu0 0.0
    %1526 = vmatpush.msra.mxu0 0.0
    %1527 = vmatpush.msra.mxu0 0.0
    %1528 = vmatpush.msra.mxu0 0.0
    %1529 = vmatpush.msra.mxu0 0.0
    %1530 = vmatpush.msra.mxu0 0.0
    %1531 = vmatpush.msra.mxu0 0.0
    %1532 = vmatpush.msra.mxu0 0.0
    %1533 = vmatpush.msra.mxu0 0.0
    %1534 = vmatpush.msra.mxu0 0.0
    %1535 = vmatpush.msra.mxu0 0.0
    %1536 = vmatpush.msra.mxu0 0.0
    %1537 = vmatpush.msra.mxu0 0.0
    %1538 = vmatpush.msra.mxu0 %v1441
    %1539 = vmatmul.f32.gmra.mxu0 %v1521
    %v1540 = vpop.f32.mrf.mxu0
    %v1541 = vadd.f32 0.0, %v1540
    %1542 = vdwg.mxu0
    %v1544 = vsel %vm226, %v1519, 0
    %1546 = vmatpush.msra.mxu0 0.0
    %1547 = vmatpush.msra.mxu0 0.0
    %1548 = vmatpush.msra.mxu0 0.0
    %1549 = vmatpush.msra.mxu0 0.0
    %1550 = vmatpush.msra.mxu0 0.0
    %1551 = vmatpush.msra.mxu0 0.0
    %1552 = vmatpush.msra.mxu0 0.0
    %1553 = vmatpush.msra.mxu0 0.0
    %1554 = vmatpush.msra.mxu0 0.0
    %1555 = vmatpush.msra.mxu0 0.0
    %1556 = vmatpush.msra.mxu0 0.0
    %1557 = vmatpush.msra.mxu0 0.0
    %1558 = vmatpush.msra.mxu0 0.0
    %1559 = vmatpush.msra.mxu0 0.0
    %1560 = vmatpush.msra.mxu0 0.0
    %1561 = vmatpush.msra.mxu0 %v1444
    %1562 = vmatmul.f32.gmra.mxu0 %v1544
    %v1563 = vpop.f32.mrf.mxu0
    %v1564 = vadd.f32 0.0, %v1563
    %1565 = vdwg.mxu0
    %s1566 = scalar_lea.vmem %s10, 32
    %v1567 = vld [vmem:[%s1566] sm:$0xff]
    %s1568 = scalar_lea.vmem %s4, 160
    %v1569 = vld [vmem:[%s1568] sm:$0xff]
    %v1570 = vld [vmem:[%s1568 + $0x8] sm:$0xff]
    %v1571 = vld [vmem:[%s1568 + $0x10] sm:$0xff]
    %v1572 = vld [vmem:[%s1568 + $0x18] sm:$0xff]
    %s1573 = scalar_lea.vmem %s5, 5
    %v1574 = vld [vmem:[%s1573] sm:$0x1]
    %v1576 = vperm.slane %v1574, 0
    %1578 = vmatpush.msra.mxu0 0.0
    %1579 = vmatpush.msra.mxu0 0.0
    %1580 = vmatpush.msra.mxu0 0.0
    %1581 = vmatpush.msra.mxu0 0.0
    %1582 = vmatpush.msra.mxu0 0.0
    %1583 = vmatpush.msra.mxu0 0.0
    %1584 = vmatpush.msra.mxu0 0.0
    %1585 = vmatpush.msra.mxu0 0.0
    %1586 = vmatpush.msra.mxu0 0.0
    %1587 = vmatpush.msra.mxu0 0.0
    %1588 = vmatpush.msra.mxu0 0.0
    %1589 = vmatpush.msra.mxu0 0.0
    %1590 = vmatpush.msra.mxu0 %v1572
    %1591 = vmatpush.msra.mxu0 %v1571
    %1592 = vmatpush.msra.mxu0 %v1570
    %1593 = vmatpush.msra.mxu0 %v1569
    %1594 = vmatmul.f32.gmra.mxu0 %v1352
    %v1595 = vpop.f32.mrf.mxu0
    %v1596 = vadd.f32 %v1576, %v1595
    %1597 = vmatmul.f32.gmra.mxu0 %v1355
    %v1598 = vpop.f32.mrf.mxu0
    %v1599 = vadd.f32 %v1576, %v1598
    %1600 = vdwg.mxu0
    %s1601 = scalar_lea.vmem %s6, 160
    %v1602 = vld [vmem:[%s1601] sm:$0xff]
    %v1603 = vld [vmem:[%s1601 + $0x8] sm:$0xff]
    %v1604 = vld [vmem:[%s1601 + $0x10] sm:$0xff]
    %v1605 = vld [vmem:[%s1601 + $0x18] sm:$0xff]
    %s1606 = scalar_lea.vmem %s7, 5
    %v1607 = vld [vmem:[%s1606] sm:$0x1]
    %v1609 = vperm.slane %v1607, 0
    %1611 = vmatpush.msra.mxu0 0.0
    %1612 = vmatpush.msra.mxu0 0.0
    %1613 = vmatpush.msra.mxu0 0.0
    %1614 = vmatpush.msra.mxu0 0.0
    %1615 = vmatpush.msra.mxu0 0.0
    %1616 = vmatpush.msra.mxu0 0.0
    %1617 = vmatpush.msra.mxu0 0.0
    %1618 = vmatpush.msra.mxu0 0.0
    %1619 = vmatpush.msra.mxu0 0.0
    %1620 = vmatpush.msra.mxu0 0.0
    %1621 = vmatpush.msra.mxu0 0.0
    %1622 = vmatpush.msra.mxu0 0.0
    %1623 = vmatpush.msra.mxu0 %v1605
    %1624 = vmatpush.msra.mxu0 %v1604
    %1625 = vmatpush.msra.mxu0 %v1603
    %1626 = vmatpush.msra.mxu0 %v1602
    %1627 = vmatmul.f32.gmra.mxu0 %v1352
    %v1628 = vpop.f32.mrf.mxu0
    %v1629 = vadd.f32 %v1609, %v1628
    %1630 = vmatmul.f32.gmra.mxu0 %v1355
    %v1631 = vpop.f32.mrf.mxu0
    %v1632 = vadd.f32 %v1609, %v1631
    %1633 = vdwg.mxu0
    %s1634 = scalar_lea.vmem %s8, 160
    %v1635 = vld [vmem:[%s1634] sm:$0xff]
    %v1636 = vld [vmem:[%s1634 + $0x8] sm:$0xff]
    %v1637 = vld [vmem:[%s1634 + $0x10] sm:$0xff]
    %v1638 = vld [vmem:[%s1634 + $0x18] sm:$0xff]
    %s1639 = scalar_lea.vmem %s9, 5
    %v1640 = vld [vmem:[%s1639] sm:$0x1]
    %v1642 = vperm.slane %v1640, 0
    %1644 = vmatpush.msra.mxu0 0.0
    %1645 = vmatpush.msra.mxu0 0.0
    %1646 = vmatpush.msra.mxu0 0.0
    %1647 = vmatpush.msra.mxu0 0.0
    %1648 = vmatpush.msra.mxu0 0.0
    %1649 = vmatpush.msra.mxu0 0.0
    %1650 = vmatpush.msra.mxu0 0.0
    %1651 = vmatpush.msra.mxu0 0.0
    %1652 = vmatpush.msra.mxu0 0.0
    %1653 = vmatpush.msra.mxu0 0.0
    %1654 = vmatpush.msra.mxu0 0.0
    %1655 = vmatpush.msra.mxu0 0.0
    %1656 = vmatpush.msra.mxu0 %v1638
    %1657 = vmatpush.msra.mxu0 %v1637
    %1658 = vmatpush.msra.mxu0 %v1636
    %1659 = vmatpush.msra.mxu0 %v1635
    %1660 = vmatmul.f32.gmra.mxu0 %v1352
    %v1661 = vpop.f32.mrf.mxu0
    %v1662 = vadd.f32 %v1642, %v1661
    %1663 = vmatmul.f32.gmra.mxu0 %v1355
    %v1664 = vpop.f32.mrf.mxu0
    %v1665 = vadd.f32 %v1642, %v1664
    %1666 = vdwg.mxu0
    %v1668 = vsel %vm226, %v1596, 0
    %v1671 = vsel %vm226, %v1629, 0
    %1673 = vmatpush.xpose.msra.mxu0 0.0
    %1674 = vmatpush.xpose.msra.mxu0 0.0
    %1675 = vmatpush.xpose.msra.mxu0 0.0
    %1676 = vmatpush.xpose.msra.mxu0 0.0
    %1677 = vmatpush.xpose.msra.mxu0 0.0
    %1678 = vmatpush.xpose.msra.mxu0 0.0
    %1679 = vmatpush.xpose.msra.mxu0 0.0
    %1680 = vmatpush.xpose.msra.mxu0 0.0
    %1681 = vmatpush.xpose.msra.mxu0 0.0
    %1682 = vmatpush.xpose.msra.mxu0 0.0
    %1683 = vmatpush.xpose.msra.mxu0 0.0
    %1684 = vmatpush.xpose.msra.mxu0 0.0
    %1685 = vmatpush.xpose.msra.mxu0 0.0
    %1686 = vmatpush.xpose.msra.mxu0 0.0
    %1687 = vmatpush.xpose.msra.mxu0 0.0
    %1688 = vmatpush.xpose.msra.mxu0 %v1671
    %1689 = vmatmul.f32.gmra.mxu0 %v1668
    %v1690 = vpop.f32.mrf.mxu0
    %v1691 = vadd.f32 0.0, %v1690
    %1692 = vdwg.mxu0
    %v1694 = vsel %vm226, %v1599, 0
    %v1697 = vsel %vm226, %v1632, 0
    %1699 = vmatpush.xpose.msra.mxu0 0.0
    %1700 = vmatpush.xpose.msra.mxu0 0.0
    %1701 = vmatpush.xpose.msra.mxu0 0.0
    %1702 = vmatpush.xpose.msra.mxu0 0.0
    %1703 = vmatpush.xpose.msra.mxu0 0.0
    %1704 = vmatpush.xpose.msra.mxu0 0.0
    %1705 = vmatpush.xpose.msra.mxu0 0.0
    %1706 = vmatpush.xpose.msra.mxu0 0.0
    %1707 = vmatpush.xpose.msra.mxu0 0.0
    %1708 = vmatpush.xpose.msra.mxu0 0.0
    %1709 = vmatpush.xpose.msra.mxu0 0.0
    %1710 = vmatpush.xpose.msra.mxu0 0.0
    %1711 = vmatpush.xpose.msra.mxu0 0.0
    %1712 = vmatpush.xpose.msra.mxu0 0.0
    %1713 = vmatpush.xpose.msra.mxu0 0.0
    %1714 = vmatpush.xpose.msra.mxu0 %v1697
    %1715 = vmatmul.f32.gmra.mxu0 %v1694
    %v1716 = vpop.f32.mrf.mxu0
    %v1717 = vadd.f32 0.0, %v1716
    %1718 = vdwg.mxu0
    %v1719 = vsel %vm226, %v1691, -inf
    %1720 = vmax.xlane.f32.xlu0 %v1719
    %v1721 = vpop.xlane.xlu0 %1720
    %v1722 = vsel %vm226, %v1717, -inf
    %1723 = vmax.xlane.f32.xlu0 %v1722
    %v1724 = vpop.xlane.xlu0 %1723
    %v1725 = vsub.f32 %v1691, %v1721
    %v1726 = vsub.f32 %v1717, %v1724
    %v1727 = vmul.f32 %v1725, 1.442695
    %v1728 = vpow.pop %v1727
    %v1729 = vmul.f32 %v1726, 1.442695
    %v1730 = vpow.pop %v1729
    %v1731 = vsel %vm226, %v1728, 0.0
    %1732 = vadd.xlane.f32.xlu0 %v1731
    %v1733 = vpop.xlane.xlu0 %1732
    %v1734 = vsel %vm226, %v1730, 0.0
    %1735 = vadd.xlane.f32.xlu0 %v1734
    %v1736 = vpop.xlane.xlu0 %1735
    %v1737 = vrcp.pop %v1733
    %v1738 = vrcp.pop %v1736
    %v1739 = vmul.f32 %v1728, %v1737
    %v1740 = vmul.f32 %v1730, %v1738
    %v1742 = vsel %vm226, %v1739, 0
    %1744 = vmatpush.msra.mxu0 0.0
    %1745 = vmatpush.msra.mxu0 0.0
    %1746 = vmatpush.msra.mxu0 0.0
    %1747 = vmatpush.msra.mxu0 0.0
    %1748 = vmatpush.msra.mxu0 0.0
    %1749 = vmatpush.msra.mxu0 0.0
    %1750 = vmatpush.msra.mxu0 0.0
    %1751 = vmatpush.msra.mxu0 0.0
    %1752 = vmatpush.msra.mxu0 0.0
    %1753 = vmatpush.msra.mxu0 0.0
    %1754 = vmatpush.msra.mxu0 0.0
    %1755 = vmatpush.msra.mxu0 0.0
    %1756 = vmatpush.msra.mxu0 0.0
    %1757 = vmatpush.msra.mxu0 0.0
    %1758 = vmatpush.msra.mxu0 0.0
    %1759 = vmatpush.msra.mxu0 %v1662
    %1760 = vmatmul.f32.gmra.mxu0 %v1742
    %v1761 = vpop.f32.mrf.mxu0
    %v1762 = vadd.f32 0.0, %v1761
    %1763 = vdwg.mxu0
    %v1765 = vsel %vm226, %v1740, 0
    %1767 = vmatpush.msra.mxu0 0.0
    %1768 = vmatpush.msra.mxu0 0.0
    %1769 = vmatpush.msra.mxu0 0.0
    %1770 = vmatpush.msra.mxu0 0.0
    %1771 = vmatpush.msra.mxu0 0.0
    %1772 = vmatpush.msra.mxu0 0.0
    %1773 = vmatpush.msra.mxu0 0.0
    %1774 = vmatpush.msra.mxu0 0.0
    %1775 = vmatpush.msra.mxu0 0.0
    %1776 = vmatpush.msra.mxu0 0.0
    %1777 = vmatpush.msra.mxu0 0.0
    %1778 = vmatpush.msra.mxu0 0.0
    %1779 = vmatpush.msra.mxu0 0.0
    %1780 = vmatpush.msra.mxu0 0.0
    %1781 = vmatpush.msra.mxu0 0.0
    %1782 = vmatpush.msra.mxu0 %v1665
    %1783 = vmatmul.f32.gmra.mxu0 %v1765
    %v1784 = vpop.f32.mrf.mxu0
    %v1785 = vadd.f32 0.0, %v1784
    %1786 = vdwg.mxu0
    %s1787 = scalar_lea.vmem %s10, 40
    %v1788 = vld [vmem:[%s1787] sm:$0xff]
    %v1790 = vsel %vm226, %v1762, 0
    %v1793 = vsel %vm226, %v1785, 0
    %1795 = vmatpush.msra.mxu0 0.0
    %1796 = vmatpush.msra.mxu0 0.0
    %1797 = vmatpush.msra.mxu0 0.0
    %1798 = vmatpush.msra.mxu0 0.0
    %1799 = vmatpush.msra.mxu0 0.0
    %1800 = vmatpush.msra.mxu0 0.0
    %1801 = vmatpush.msra.mxu0 0.0
    %1802 = vmatpush.msra.mxu0 0.0
    %1803 = vmatpush.msra.mxu0 0.0
    %1804 = vmatpush.msra.mxu0 0.0
    %1805 = vmatpush.msra.mxu0 0.0
    %1806 = vmatpush.msra.mxu0 0.0
    %1807 = vmatpush.msra.mxu0 0.0
    %1808 = vmatpush.msra.mxu0 0.0
    %1809 = vmatpush.msra.mxu0 0.0
    %1810 = vmatpush.msra.mxu0 %v1788
    %1811 = vmatmul.f32.gmra.mxu0 %v1790
    %v1812 = vpop.f32.mrf.mxu0
    %v1813 = vadd.f32 0.0, %v1812
    %1814 = vmatmul.f32.gmra.mxu0 %v1793
    %v1815 = vpop.f32.mrf.mxu0
    %v1816 = vadd.f32 0.0, %v1815
    %1817 = vdwg.mxu0
    %v1819 = vsel %vm226, %v1541, 0
    %v1822 = vsel %vm226, %v1564, 0
    %1824 = vmatpush.msra.mxu0 0.0
    %1825 = vmatpush.msra.mxu0 0.0
    %1826 = vmatpush.msra.mxu0 0.0
    %1827 = vmatpush.msra.mxu0 0.0
    %1828 = vmatpush.msra.mxu0 0.0
    %1829 = vmatpush.msra.mxu0 0.0
    %1830 = vmatpush.msra.mxu0 0.0
    %1831 = vmatpush.msra.mxu0 0.0
    %1832 = vmatpush.msra.mxu0 0.0
    %1833 = vmatpush.msra.mxu0 0.0
    %1834 = vmatpush.msra.mxu0 0.0
    %1835 = vmatpush.msra.mxu0 0.0
    %1836 = vmatpush.msra.mxu0 0.0
    %1837 = vmatpush.msra.mxu0 0.0
    %1838 = vmatpush.msra.mxu0 0.0
    %1839 = vmatpush.msra.mxu0 %v1567
    %1840 = vmatmul.f32.gmra.mxu0 %v1819
    %v1841 = vpop.f32.mrf.mxu0
    %v1842 = vadd.f32 %v1813, %v1841
    %1843 = vmatmul.f32.gmra.mxu0 %v1822
    %v1844 = vpop.f32.mrf.mxu0
    %v1845 = vadd.f32 %v1816, %v1844
    %1846 = vdwg.mxu0
    %s1847 = scalar_lea.vmem %s4, 192
    %v1848 = vld [vmem:[%s1847] sm:$0xff]
    %v1849 = vld [vmem:[%s1847 + $0x8] sm:$0xff]
    %v1850 = vld [vmem:[%s1847 + $0x10] sm:$0xff]
    %v1851 = vld [vmem:[%s1847 + $0x18] sm:$0xff]
    %s1852 = scalar_lea.vmem %s5, 6
    %v1853 = vld [vmem:[%s1852] sm:$0x1]
    %v1855 = vperm.slane %v1853, 0
    %1857 = vmatpush.msra.mxu0 0.0
    %1858 = vmatpush.msra.mxu0 0.0
    %1859 = vmatpush.msra.mxu0 0.0
    %1860 = vmatpush.msra.mxu0 0.0
    %1861 = vmatpush.msra.mxu0 0.0
    %1862 = vmatpush.msra.mxu0 0.0
    %1863 = vmatpush.msra.mxu0 0.0
    %1864 = vmatpush.msra.mxu0 0.0
    %1865 = vmatpush.msra.mxu0 0.0
    %1866 = vmatpush.msra.mxu0 0.0
    %1867 = vmatpush.msra.mxu0 0.0
    %1868 = vmatpush.msra.mxu0 0.0
    %1869 = vmatpush.msra.mxu0 %v1851
    %1870 = vmatpush.msra.mxu0 %v1850
    %1871 = vmatpush.msra.mxu0 %v1849
    %1872 = vmatpush.msra.mxu0 %v1848
    %1873 = vmatmul.f32.gmra.mxu0 %v1352
    %v1874 = vpop.f32.mrf.mxu0
    %v1875 = vadd.f32 %v1855, %v1874
    %1876 = vmatmul.f32.gmra.mxu0 %v1355
    %v1877 = vpop.f32.mrf.mxu0
    %v1878 = vadd.f32 %v1855, %v1877
    %1879 = vdwg.mxu0
    %s1880 = scalar_lea.vmem %s6, 192
    %v1881 = vld [vmem:[%s1880] sm:$0xff]
    %v1882 = vld [vmem:[%s1880 + $0x8] sm:$0xff]
    %v1883 = vld [vmem:[%s1880 + $0x10] sm:$0xff]
    %v1884 = vld [vmem:[%s1880 + $0x18] sm:$0xff]
    %s1885 = scalar_lea.vmem %s7, 6
    %v1886 = vld [vmem:[%s1885] sm:$0x1]
    %v1888 = vperm.slane %v1886, 0
    %1890 = vmatpush.msra.mxu0 0.0
    %1891 = vmatpush.msra.mxu0 0.0
    %1892 = vmatpush.msra.mxu0 0.0
    %1893 = vmatpush.msra.mxu0 0.0
    %1894 = vmatpush.msra.mxu0 0.0
    %1895 = vmatpush.msra.mxu0 0.0
    %1896 = vmatpush.msra.mxu0 0.0
    %1897 = vmatpush.msra.mxu0 0.0
    %1898 = vmatpush.msra.mxu0 0.0
    %1899 = vmatpush.msra.mxu0 0.0
    %1900 = vmatpush.msra.mxu0 0.0
    %1901 = vmatpush.msra.mxu0 0.0
    %1902 = vmatpush.msra.mxu0 %v1884
    %1903 = vmatpush.msra.mxu0 %v1883
    %1904 = vmatpush.msra.mxu0 %v1882
    %1905 = vmatpush.msra.mxu0 %v1881
    %1906 = vmatmul.f32.gmra.mxu0 %v1352
    %v1907 = vpop.f32.mrf.mxu0
    %v1908 = vadd.f32 %v1888, %v1907
    %1909 = vmatmul.f32.gmra.mxu0 %v1355
    %v1910 = vpop.f32.mrf.mxu0
    %v1911 = vadd.f32 %v1888, %v1910
    %1912 = vdwg.mxu0
    %s1913 = scalar_lea.vmem %s8, 192
    %v1914 = vld [vmem:[%s1913] sm:$0xff]
    %v1915 = vld [vmem:[%s1913 + $0x8] sm:$0xff]
    %v1916 = vld [vmem:[%s1913 + $0x10] sm:$0xff]
    %v1917 = vld [vmem:[%s1913 + $0x18] sm:$0xff]
    %s1918 = scalar_lea.vmem %s9, 6
    %v1919 = vld [vmem:[%s1918] sm:$0x1]
    %v1921 = vperm.slane %v1919, 0
    %1923 = vmatpush.msra.mxu0 0.0
    %1924 = vmatpush.msra.mxu0 0.0
    %1925 = vmatpush.msra.mxu0 0.0
    %1926 = vmatpush.msra.mxu0 0.0
    %1927 = vmatpush.msra.mxu0 0.0
    %1928 = vmatpush.msra.mxu0 0.0
    %1929 = vmatpush.msra.mxu0 0.0
    %1930 = vmatpush.msra.mxu0 0.0
    %1931 = vmatpush.msra.mxu0 0.0
    %1932 = vmatpush.msra.mxu0 0.0
    %1933 = vmatpush.msra.mxu0 0.0
    %1934 = vmatpush.msra.mxu0 0.0
    %1935 = vmatpush.msra.mxu0 %v1917
    %1936 = vmatpush.msra.mxu0 %v1916
    %1937 = vmatpush.msra.mxu0 %v1915
    %1938 = vmatpush.msra.mxu0 %v1914
    %1939 = vmatmul.f32.gmra.mxu0 %v1352
    %v1940 = vpop.f32.mrf.mxu0
    %v1941 = vadd.f32 %v1921, %v1940
    %1942 = vmatmul.f32.gmra.mxu0 %v1355
    %v1943 = vpop.f32.mrf.mxu0
    %v1944 = vadd.f32 %v1921, %v1943
    %1945 = vdwg.mxu0
    %v1947 = vsel %vm226, %v1875, 0
    %v1950 = vsel %vm226, %v1908, 0
    %1952 = vmatpush.xpose.msra.mxu0 0.0
    %1953 = vmatpush.xpose.msra.mxu0 0.0
    %1954 = vmatpush.xpose.msra.mxu0 0.0
    %1955 = vmatpush.xpose.msra.mxu0 0.0
    %1956 = vmatpush.xpose.msra.mxu0 0.0
    %1957 = vmatpush.xpose.msra.mxu0 0.0
    %1958 = vmatpush.xpose.msra.mxu0 0.0
    %1959 = vmatpush.xpose.msra.mxu0 0.0
    %1960 = vmatpush.xpose.msra.mxu0 0.0
    %1961 = vmatpush.xpose.msra.mxu0 0.0
    %1962 = vmatpush.xpose.msra.mxu0 0.0
    %1963 = vmatpush.xpose.msra.mxu0 0.0
    %1964 = vmatpush.xpose.msra.mxu0 0.0
    %1965 = vmatpush.xpose.msra.mxu0 0.0
    %1966 = vmatpush.xpose.msra.mxu0 0.0
    %1967 = vmatpush.xpose.msra.mxu0 %v1950
    %1968 = vmatmul.f32.gmra.mxu0 %v1947
    %v1969 = vpop.f32.mrf.mxu0
    %v1970 = vadd.f32 0.0, %v1969
    %1971 = vdwg.mxu0
    %v1973 = vsel %vm226, %v1878, 0
    %v1976 = vsel %vm226, %v1911, 0
    %1978 = vmatpush.xpose.msra.mxu0 0.0
    %1979 = vmatpush.xpose.msra.mxu0 0.0
    %1980 = vmatpush.xpose.msra.mxu0 0.0
    %1981 = vmatpush.xpose.msra.mxu0 0.0
    %1982 = vmatpush.xpose.msra.mxu0 0.0
    %1983 = vmatpush.xpose.msra.mxu0 0.0
    %1984 = vmatpush.xpose.msra.mxu0 0.0
    %1985 = vmatpush.xpose.msra.mxu0 0.0
    %1986 = vmatpush.xpose.msra.mxu0 0.0
    %1987 = vmatpush.xpose.msra.mxu0 0.0
    %1988 = vmatpush.xpose.msra.mxu0 0.0
    %1989 = vmatpush.xpose.msra.mxu0 0.0
    %1990 = vmatpush.xpose.msra.mxu0 0.0
    %1991 = vmatpush.xpose.msra.mxu0 0.0
    %1992 = vmatpush.xpose.msra.mxu0 0.0
    %1993 = vmatpush.xpose.msra.mxu0 %v1976
    %1994 = vmatmul.f32.gmra.mxu0 %v1973
    %v1995 = vpop.f32.mrf.mxu0
    %v1996 = vadd.f32 0.0, %v1995
    %1997 = vdwg.mxu0
    %v1998 = vsel %vm226, %v1970, -inf
    %1999 = vmax.xlane.f32.xlu0 %v1998
    %v2000 = vpop.xlane.xlu0 %1999
    %v2001 = vsel %vm226, %v1996, -inf
    %2002 = vmax.xlane.f32.xlu0 %v2001
    %v2003 = vpop.xlane.xlu0 %2002
    %v2004 = vsub.f32 %v1970, %v2000
    %v2005 = vsub.f32 %v1996, %v2003
    %v2006 = vmul.f32 %v2004, 1.442695
    %v2007 = vpow.pop %v2006
    %v2008 = vmul.f32 %v2005, 1.442695
    %v2009 = vpow.pop %v2008
    %v2010 = vsel %vm226, %v2007, 0.0
    %2011 = vadd.xlane.f32.xlu0 %v2010
    %v2012 = vpop.xlane.xlu0 %2011
    %v2013 = vsel %vm226, %v2009, 0.0
    %2014 = vadd.xlane.f32.xlu0 %v2013
    %v2015 = vpop.xlane.xlu0 %2014
    %v2016 = vrcp.pop %v2012
    %v2017 = vrcp.pop %v2015
    %v2018 = vmul.f32 %v2007, %v2016
    %v2019 = vmul.f32 %v2009, %v2017
    %v2021 = vsel %vm226, %v2018, 0
    %2023 = vmatpush.msra.mxu0 0.0
    %2024 = vmatpush.msra.mxu0 0.0
    %2025 = vmatpush.msra.mxu0 0.0
    %2026 = vmatpush.msra.mxu0 0.0
    %2027 = vmatpush.msra.mxu0 0.0
    %2028 = vmatpush.msra.mxu0 0.0
    %2029 = vmatpush.msra.mxu0 0.0
    %2030 = vmatpush.msra.mxu0 0.0
    %2031 = vmatpush.msra.mxu0 0.0
    %2032 = vmatpush.msra.mxu0 0.0
    %2033 = vmatpush.msra.mxu0 0.0
    %2034 = vmatpush.msra.mxu0 0.0
    %2035 = vmatpush.msra.mxu0 0.0
    %2036 = vmatpush.msra.mxu0 0.0
    %2037 = vmatpush.msra.mxu0 0.0
    %2038 = vmatpush.msra.mxu0 %v1941
    %2039 = vmatmul.f32.gmra.mxu0 %v2021
    %v2040 = vpop.f32.mrf.mxu0
    %v2041 = vadd.f32 0.0, %v2040
    %2042 = vdwg.mxu0
    %v2044 = vsel %vm226, %v2019, 0
    %2046 = vmatpush.msra.mxu0 0.0
    %2047 = vmatpush.msra.mxu0 0.0
    %2048 = vmatpush.msra.mxu0 0.0
    %2049 = vmatpush.msra.mxu0 0.0
    %2050 = vmatpush.msra.mxu0 0.0
    %2051 = vmatpush.msra.mxu0 0.0
    %2052 = vmatpush.msra.mxu0 0.0
    %2053 = vmatpush.msra.mxu0 0.0
    %2054 = vmatpush.msra.mxu0 0.0
    %2055 = vmatpush.msra.mxu0 0.0
    %2056 = vmatpush.msra.mxu0 0.0
    %2057 = vmatpush.msra.mxu0 0.0
    %2058 = vmatpush.msra.mxu0 0.0
    %2059 = vmatpush.msra.mxu0 0.0
    %2060 = vmatpush.msra.mxu0 0.0
    %2061 = vmatpush.msra.mxu0 %v1944
    %2062 = vmatmul.f32.gmra.mxu0 %v2044
    %v2063 = vpop.f32.mrf.mxu0
    %v2064 = vadd.f32 0.0, %v2063
    %2065 = vdwg.mxu0
    %s2066 = scalar_lea.vmem %s10, 48
    %v2067 = vld [vmem:[%s2066] sm:$0xff]
    %v2069 = vsel %vm226, %v2041, 0
    %v2072 = vsel %vm226, %v2064, 0
    %2074 = vmatpush.msra.mxu0 0.0
    %2075 = vmatpush.msra.mxu0 0.0
    %2076 = vmatpush.msra.mxu0 0.0
    %2077 = vmatpush.msra.mxu0 0.0
    %2078 = vmatpush.msra.mxu0 0.0
    %2079 = vmatpush.msra.mxu0 0.0
    %2080 = vmatpush.msra.mxu0 0.0
    %2081 = vmatpush.msra.mxu0 0.0
    %2082 = vmatpush.msra.mxu0 0.0
    %2083 = vmatpush.msra.mxu0 0.0
    %2084 = vmatpush.msra.mxu0 0.0
    %2085 = vmatpush.msra.mxu0 0.0
    %2086 = vmatpush.msra.mxu0 0.0
    %2087 = vmatpush.msra.mxu0 0.0
    %2088 = vmatpush.msra.mxu0 0.0
    %2089 = vmatpush.msra.mxu0 %v2067
    %2090 = vmatmul.f32.gmra.mxu0 %v2069
    %v2091 = vpop.f32.mrf.mxu0
    %v2092 = vadd.f32 0.0, %v2091
    %2093 = vmatmul.f32.gmra.mxu0 %v2072
    %v2094 = vpop.f32.mrf.mxu0
    %v2095 = vadd.f32 0.0, %v2094
    %2096 = vdwg.mxu0
    %v2097 = vadd.f32 %v1842, %v2092
    %v2098 = vadd.f32 %v1845, %v2095
    %s2099 = scalar_lea.vmem %s4, 224
    %v2100 = vld [vmem:[%s2099] sm:$0xff]
    %v2101 = vld [vmem:[%s2099 + $0x8] sm:$0xff]
    %v2102 = vld [vmem:[%s2099 + $0x10] sm:$0xff]
    %v2103 = vld [vmem:[%s2099 + $0x18] sm:$0xff]
    %s2104 = scalar_lea.vmem %s5, 7
    %v2105 = vld [vmem:[%s2104] sm:$0x1]
    %v2107 = vperm.slane %v2105, 0
    %2109 = vmatpush.msra.mxu0 0.0
    %2110 = vmatpush.msra.mxu0 0.0
    %2111 = vmatpush.msra.mxu0 0.0
    %2112 = vmatpush.msra.mxu0 0.0
    %2113 = vmatpush.msra.mxu0 0.0
    %2114 = vmatpush.msra.mxu0 0.0
    %2115 = vmatpush.msra.mxu0 0.0
    %2116 = vmatpush.msra.mxu0 0.0
    %2117 = vmatpush.msra.mxu0 0.0
    %2118 = vmatpush.msra.mxu0 0.0
    %2119 = vmatpush.msra.mxu0 0.0
    %2120 = vmatpush.msra.mxu0 0.0
    %2121 = vmatpush.msra.mxu0 %v2103
    %2122 = vmatpush.msra.mxu0 %v2102
    %2123 = vmatpush.msra.mxu0 %v2101
    %2124 = vmatpush.msra.mxu0 %v2100
    %2125 = vmatmul.f32.gmra.mxu0 %v1352
    %v2126 = vpop.f32.mrf.mxu0
    %v2127 = vadd.f32 %v2107, %v2126
    %2128 = vmatmul.f32.gmra.mxu0 %v1355
    %v2129 = vpop.f32.mrf.mxu0
    %v2130 = vadd.f32 %v2107, %v2129
    %2131 = vdwg.mxu0
    %s2132 = scalar_lea.vmem %s6, 224
    %v2133 = vld [vmem:[%s2132] sm:$0xff]
    %v2134 = vld [vmem:[%s2132 + $0x8] sm:$0xff]
    %v2135 = vld [vmem:[%s2132 + $0x10] sm:$0xff]
    %v2136 = vld [vmem:[%s2132 + $0x18] sm:$0xff]
    %s2137 = scalar_lea.vmem %s7, 7
    %v2138 = vld [vmem:[%s2137] sm:$0x1]
    %v2140 = vperm.slane %v2138, 0
    %2142 = vmatpush.msra.mxu0 0.0
    %2143 = vmatpush.msra.mxu0 0.0
    %2144 = vmatpush.msra.mxu0 0.0
    %2145 = vmatpush.msra.mxu0 0.0
    %2146 = vmatpush.msra.mxu0 0.0
    %2147 = vmatpush.msra.mxu0 0.0
    %2148 = vmatpush.msra.mxu0 0.0
    %2149 = vmatpush.msra.mxu0 0.0
    %2150 = vmatpush.msra.mxu0 0.0
    %2151 = vmatpush.msra.mxu0 0.0
    %2152 = vmatpush.msra.mxu0 0.0
    %2153 = vmatpush.msra.mxu0 0.0
    %2154 = vmatpush.msra.mxu0 %v2136
    %2155 = vmatpush.msra.mxu0 %v2135
    %2156 = vmatpush.msra.mxu0 %v2134
    %2157 = vmatpush.msra.mxu0 %v2133
    %2158 = vmatmul.f32.gmra.mxu0 %v1352
    %v2159 = vpop.f32.mrf.mxu0
    %v2160 = vadd.f32 %v2140, %v2159
    %2161 = vmatmul.f32.gmra.mxu0 %v1355
    %v2162 = vpop.f32.mrf.mxu0
    %v2163 = vadd.f32 %v2140, %v2162
    %2164 = vdwg.mxu0
    %s2165 = scalar_lea.vmem %s8, 224
    %v2166 = vld [vmem:[%s2165] sm:$0xff]
    %v2167 = vld [vmem:[%s2165 + $0x8] sm:$0xff]
    %v2168 = vld [vmem:[%s2165 + $0x10] sm:$0xff]
    %v2169 = vld [vmem:[%s2165 + $0x18] sm:$0xff]
    %s2170 = scalar_lea.vmem %s9, 7
    %v2171 = vld [vmem:[%s2170] sm:$0x1]
    %v2173 = vperm.slane %v2171, 0
    %2175 = vmatpush.msra.mxu0 0.0
    %2176 = vmatpush.msra.mxu0 0.0
    %2177 = vmatpush.msra.mxu0 0.0
    %2178 = vmatpush.msra.mxu0 0.0
    %2179 = vmatpush.msra.mxu0 0.0
    %2180 = vmatpush.msra.mxu0 0.0
    %2181 = vmatpush.msra.mxu0 0.0
    %2182 = vmatpush.msra.mxu0 0.0
    %2183 = vmatpush.msra.mxu0 0.0
    %2184 = vmatpush.msra.mxu0 0.0
    %2185 = vmatpush.msra.mxu0 0.0
    %2186 = vmatpush.msra.mxu0 0.0
    %2187 = vmatpush.msra.mxu0 %v2169
    %2188 = vmatpush.msra.mxu0 %v2168
    %2189 = vmatpush.msra.mxu0 %v2167
    %2190 = vmatpush.msra.mxu0 %v2166
    %2191 = vmatmul.f32.gmra.mxu0 %v1352
    %v2192 = vpop.f32.mrf.mxu0
    %v2193 = vadd.f32 %v2173, %v2192
    %2194 = vmatmul.f32.gmra.mxu0 %v1355
    %v2195 = vpop.f32.mrf.mxu0
    %v2196 = vadd.f32 %v2173, %v2195
    %2197 = vdwg.mxu0
    %v2199 = vsel %vm226, %v2127, 0
    %v2202 = vsel %vm226, %v2160, 0
    %2204 = vmatpush.xpose.msra.mxu0 0.0
    %2205 = vmatpush.xpose.msra.mxu0 0.0
    %2206 = vmatpush.xpose.msra.mxu0 0.0
    %2207 = vmatpush.xpose.msra.mxu0 0.0
    %2208 = vmatpush.xpose.msra.mxu0 0.0
    %2209 = vmatpush.xpose.msra.mxu0 0.0
    %2210 = vmatpush.xpose.msra.mxu0 0.0
    %2211 = vmatpush.xpose.msra.mxu0 0.0
    %2212 = vmatpush.xpose.msra.mxu0 0.0
    %2213 = vmatpush.xpose.msra.mxu0 0.0
    %2214 = vmatpush.xpose.msra.mxu0 0.0
    %2215 = vmatpush.xpose.msra.mxu0 0.0
    %2216 = vmatpush.xpose.msra.mxu0 0.0
    %2217 = vmatpush.xpose.msra.mxu0 0.0
    %2218 = vmatpush.xpose.msra.mxu0 0.0
    %2219 = vmatpush.xpose.msra.mxu0 %v2202
    %2220 = vmatmul.f32.gmra.mxu0 %v2199
    %v2221 = vpop.f32.mrf.mxu0
    %v2222 = vadd.f32 0.0, %v2221
    %2223 = vdwg.mxu0
    %v2225 = vsel %vm226, %v2130, 0
    %v2228 = vsel %vm226, %v2163, 0
    %2230 = vmatpush.xpose.msra.mxu0 0.0
    %2231 = vmatpush.xpose.msra.mxu0 0.0
    %2232 = vmatpush.xpose.msra.mxu0 0.0
    %2233 = vmatpush.xpose.msra.mxu0 0.0
    %2234 = vmatpush.xpose.msra.mxu0 0.0
    %2235 = vmatpush.xpose.msra.mxu0 0.0
    %2236 = vmatpush.xpose.msra.mxu0 0.0
    %2237 = vmatpush.xpose.msra.mxu0 0.0
    %2238 = vmatpush.xpose.msra.mxu0 0.0
    %2239 = vmatpush.xpose.msra.mxu0 0.0
    %2240 = vmatpush.xpose.msra.mxu0 0.0
    %2241 = vmatpush.xpose.msra.mxu0 0.0
    %2242 = vmatpush.xpose.msra.mxu0 0.0
    %2243 = vmatpush.xpose.msra.mxu0 0.0
    %2244 = vmatpush.xpose.msra.mxu0 0.0
    %2245 = vmatpush.xpose.msra.mxu0 %v2228
    %2246 = vmatmul.f32.gmra.mxu0 %v2225
    %v2247 = vpop.f32.mrf.mxu0
    %v2248 = vadd.f32 0.0, %v2247
    %2249 = vdwg.mxu0
    %v2250 = vsel %vm226, %v2222, -inf
    %2251 = vmax.xlane.f32.xlu0 %v2250
    %v2252 = vpop.xlane.xlu0 %2251
    %v2253 = vsel %vm226, %v2248, -inf
    %2254 = vmax.xlane.f32.xlu0 %v2253
    %v2255 = vpop.xlane.xlu0 %2254
    %v2256 = vsub.f32 %v2222, %v2252
    %v2257 = vsub.f32 %v2248, %v2255
    %v2258 = vmul.f32 %v2256, 1.442695
    %v2259 = vpow.pop %v2258
    %v2260 = vmul.f32 %v2257, 1.442695
    %v2261 = vpow.pop %v2260
    %v2262 = vsel %vm226, %v2259, 0.0
    %2263 = vadd.xlane.f32.xlu0 %v2262
    %v2264 = vpop.xlane.xlu0 %2263
    %v2265 = vsel %vm226, %v2261, 0.0
    %2266 = vadd.xlane.f32.xlu0 %v2265
    %v2267 = vpop.xlane.xlu0 %2266
    %v2268 = vrcp.pop %v2264
    %v2269 = vrcp.pop %v2267
    %v2270 = vmul.f32 %v2259, %v2268
    %v2271 = vmul.f32 %v2261, %v2269
    %v2273 = vsel %vm226, %v2270, 0
    %2275 = vmatpush.msra.mxu0 0.0
    %2276 = vmatpush.msra.mxu0 0.0
    %2277 = vmatpush.msra.mxu0 0.0
    %2278 = vmatpush.msra.mxu0 0.0
    %2279 = vmatpush.msra.mxu0 0.0
    %2280 = vmatpush.msra.mxu0 0.0
    %2281 = vmatpush.msra.mxu0 0.0
    %2282 = vmatpush.msra.mxu0 0.0
    %2283 = vmatpush.msra.mxu0 0.0
    %2284 = vmatpush.msra.mxu0 0.0
    %2285 = vmatpush.msra.mxu0 0.0
    %2286 = vmatpush.msra.mxu0 0.0
    %2287 = vmatpush.msra.mxu0 0.0
    %2288 = vmatpush.msra.mxu0 0.0
    %2289 = vmatpush.msra.mxu0 0.0
    %2290 = vmatpush.msra.mxu0 %v2193
    %2291 = vmatmul.f32.gmra.mxu0 %v2273
    %v2292 = vpop.f32.mrf.mxu0
    %v2293 = vadd.f32 0.0, %v2292
    %2294 = vdwg.mxu0
    %v2296 = vsel %vm226, %v2271, 0
    %2298 = vmatpush.msra.mxu0 0.0
    %2299 = vmatpush.msra.mxu0 0.0
    %2300 = vmatpush.msra.mxu0 0.0
    %2301 = vmatpush.msra.mxu0 0.0
    %2302 = vmatpush.msra.mxu0 0.0
    %2303 = vmatpush.msra.mxu0 0.0
    %2304 = vmatpush.msra.mxu0 0.0
    %2305 = vmatpush.msra.mxu0 0.0
    %2306 = vmatpush.msra.mxu0 0.0
    %2307 = vmatpush.msra.mxu0 0.0
    %2308 = vmatpush.msra.mxu0 0.0
    %2309 = vmatpush.msra.mxu0 0.0
    %2310 = vmatpush.msra.mxu0 0.0
    %2311 = vmatpush.msra.mxu0 0.0
    %2312 = vmatpush.msra.mxu0 0.0
    %2313 = vmatpush.msra.mxu0 %v2196
    %2314 = vmatmul.f32.gmra.mxu0 %v2296
    %v2315 = vpop.f32.mrf.mxu0
    %v2316 = vadd.f32 0.0, %v2315
    %2317 = vdwg.mxu0
    %s2318 = scalar_lea.vmem %s10, 56
    %v2319 = vld [vmem:[%s2318] sm:$0xff]
    %v2321 = vsel %vm226, %v2293, 0
    %v2324 = vsel %vm226, %v2316, 0
    %2326 = vmatpush.msra.mxu0 0.0
    %2327 = vmatpush.msra.mxu0 0.0
    %2328 = vmatpush.msra.mxu0 0.0
    %2329 = vmatpush.msra.mxu0 0.0
    %2330 = vmatpush.msra.mxu0 0.0
    %2331 = vmatpush.msra.mxu0 0.0
    %2332 = vmatpush.msra.mxu0 0.0
    %2333 = vmatpush.msra.mxu0 0.0
    %2334 = vmatpush.msra.mxu0 0.0
    %2335 = vmatpush.msra.mxu0 0.0
    %2336 = vmatpush.msra.mxu0 0.0
    %2337 = vmatpush.msra.mxu0 0.0
    %2338 = vmatpush.msra.mxu0 0.0
    %2339 = vmatpush.msra.mxu0 0.0
    %2340 = vmatpush.msra.mxu0 0.0
    %2341 = vmatpush.msra.mxu0 %v2319
    %2342 = vmatmul.f32.gmra.mxu0 %v2321
    %v2343 = vpop.f32.mrf.mxu0
    %v2344 = vadd.f32 0.0, %v2343
    %2345 = vmatmul.f32.gmra.mxu0 %v2324
    %v2346 = vpop.f32.mrf.mxu0
    %v2347 = vadd.f32 0.0, %v2346
    %2348 = vdwg.mxu0
    %v2349 = vadd.f32 %v2097, %v2344
    %v2350 = vadd.f32 %v2098, %v2347
    %s2351 = scalar_lea.vmem %s11, 1
    %v2352 = vld [vmem:[%s2351] sm:$0x1]
    %v2354 = vperm.slane %v2352, 0
    %v2356 = vadd.f32 %v2349, %v2354
    %v2357 = vadd.f32 %v2350, %v2354
    %v2358 = vadd.f32 %v1339, %v2356
    %v2359 = vadd.f32 %v1340, %v2357
    %s2360 = scalar_lea.vmem %s16, 1
    %v2361 = vld [vmem:[%s2360] sm:$0x1]
    %s2362 = scalar_lea.vmem %s17, 1
    %v2363 = vld [vmem:[%s2362] sm:$0x1]
    %v2364 = vsel %vm134, %v2358, 0.0
    %2365 = vadd.xlane.f32.xlu0 %v2364
    %v2366 = vpop.xlane.xlu0 %2365
    %v2367 = vsel %vm134, %v2359, 0.0
    %2368 = vadd.xlane.f32.xlu0 %v2367
    %v2369 = vpop.xlane.xlu0 %2368
    %v2370 = vmul.f32 %v2366, %v1153
    %v2371 = vmul.f32 %v2369, %v1153
    %v2372 = vsub.f32 %v2358, %v2370
    %v2373 = vsub.f32 %v2359, %v2371
    %v2374 = vmul.f32 %v2372, %v2372
    %v2375 = vmul.f32 %v2373, %v2373
    %v2376 = vsel %vm134, %v2374, 0.0
    %2377 = vadd.xlane.f32.xlu0 %v2376
    %v2378 = vpop.xlane.xlu0 %2377
    %v2379 = vsel %vm134, %v2375, 0.0
    %2380 = vadd.xlane.f32.xlu0 %v2379
    %v2381 = vpop.xlane.xlu0 %2380
    %v2382 = vmul.f32 %v2378, %v1153
    %v2383 = vmul.f32 %v2381, %v1153
    %v2384 = vadd.f32 %v2382, 1e-05
    %v2385 = vadd.f32 %v2383, 1e-05
    %v2386 = vrsqrt.pop %v2384
    %v2387 = vmul.f32 %v2386, %v2384
    %v2388 = vmul.f32 %v2387, %v2386
    %v2389 = vmul.f32 0.5, %v2388
    %v2390 = vsub.f32 1.5, %v2389
    %v2391 = vmul.f32 %v2386, %v2390
    %vm2392 = vweird.f32 %v2384
    %vm2393 = vweird.f32 %v2386
    %vm2394 = vmor %vm2392, %vm2393
    %v2395 = vsel %vm2394, %v2386, %v2391
    %v2396 = vrsqrt.pop %v2385
    %v2397 = vmul.f32 %v2396, %v2385
    %v2398 = vmul.f32 %v2397, %v2396
    %v2399 = vmul.f32 0.5, %v2398
    %v2400 = vsub.f32 1.5, %v2399
    %v2401 = vmul.f32 %v2396, %v2400
    %vm2402 = vweird.f32 %v2385
    %vm2403 = vweird.f32 %v2396
    %vm2404 = vmor %vm2402, %vm2403
    %v2405 = vsel %vm2404, %v2396, %v2401
    %v2406 = vmul.f32 %v2372, %v2395
    %v2407 = vmul.f32 %v2373, %v2405
    %v2409 = vperm.slane %v2361, 0
    %v2411 = vmul.f32 %v2406, %v2409
    %v2412 = vmul.f32 %v2407, %v2409
    %v2414 = vperm.slane %v2363, 0
    %v2416 = vadd.f32 %v2411, %v2414
    %v2417 = vadd.f32 %v2412, %v2414
    %s2418 = scalar_lea.vmem %s12, 32
    %v2419 = vld [vmem:[%s2418] sm:$0xff]
    %v2420 = vld [vmem:[%s2418 + $0x8] sm:$0xff]
    %v2421 = vld [vmem:[%s2418 + $0x10] sm:$0xff]
    %v2422 = vld [vmem:[%s2418 + $0x18] sm:$0xff]
    %s2423 = scalar_lea.vmem %s13, 1
    %v2424 = vld [vmem:[%s2423] sm:$0x1]
    %v2426 = vperm.slane %v2424, 0
    %v2429 = vsel %vm134, %v2416, 0
    %v2432 = vsel %vm134, %v2417, 0
    %2434 = vmatpush.msra.mxu0 0.0
    %2435 = vmatpush.msra.mxu0 0.0
    %2436 = vmatpush.msra.mxu0 0.0
    %2437 = vmatpush.msra.mxu0 0.0
    %2438 = vmatpush.msra.mxu0 0.0
    %2439 = vmatpush.msra.mxu0 0.0
    %2440 = vmatpush.msra.mxu0 0.0
    %2441 = vmatpush.msra.mxu0 0.0
    %2442 = vmatpush.msra.mxu0 0.0
    %2443 = vmatpush.msra.mxu0 0.0
    %2444 = vmatpush.msra.mxu0 0.0
    %2445 = vmatpush.msra.mxu0 0.0
    %2446 = vmatpush.msra.mxu0 %v2422
    %2447 = vmatpush.msra.mxu0 %v2421
    %2448 = vmatpush.msra.mxu0 %v2420
    %2449 = vmatpush.msra.mxu0 %v2419
    %2450 = vmatmul.f32.gmra.mxu0 %v2429
    %v2451 = vpop.f32.mrf.mxu0
    %v2452 = vadd.f32 %v2426, %v2451
    %2453 = vmatmul.f32.gmra.mxu0 %v2432
    %v2454 = vpop.f32.mrf.mxu0
    %v2455 = vadd.f32 %v2426, %v2454
    %2456 = vdwg.mxu0
    %v2457 = vmax.f32 %v2452, 0.0
    %v2458 = vmax.f32 %v2455, 0.0
    %s2459 = scalar_lea.vmem %s14, 64
    %v2460 = vld [vmem:[%s2459] sm:$0xff]
    %v2461 = vld [vmem:[%s2459 + $0x8] sm:$0xff]
    %v2462 = vld [vmem:[%s2459 + $0x10] sm:$0xff]
    %v2463 = vld [vmem:[%s2459 + $0x18] sm:$0xff]
    %v2464 = vld [vmem:[%s2459 + $0x20] sm:$0xff]
    %v2465 = vld [vmem:[%s2459 + $0x28] sm:$0xff]
    %v2466 = vld [vmem:[%s2459 + $0x30] sm:$0xff]
    %v2467 = vld [vmem:[%s2459 + $0x38] sm:$0xff]
    %s2468 = scalar_lea.vmem %s15, 1
    %v2469 = vld [vmem:[%s2468] sm:$0x1]
    %v2471 = vperm.slane %v2469, 0
    %v2474 = vsel %vm1253, %v2457, 0
    %v2477 = vsel %vm1253, %v2458, 0
    %2479 = vmatpush.msra.mxu0 0.0
    %2480 = vmatpush.msra.mxu0 0.0
    %2481 = vmatpush.msra.mxu0 0.0
    %2482 = vmatpush.msra.mxu0 0.0
    %2483 = vmatpush.msra.mxu0 0.0
    %2484 = vmatpush.msra.mxu0 0.0
    %2485 = vmatpush.msra.mxu0 0.0
    %2486 = vmatpush.msra.mxu0 0.0
    %2487 = vmatpush.msra.mxu0 %v2467
    %2488 = vmatpush.msra.mxu0 %v2466
    %2489 = vmatpush.msra.mxu0 %v2465
    %2490 = vmatpush.msra.mxu0 %v2464
    %2491 = vmatpush.msra.mxu0 %v2463
    %2492 = vmatpush.msra.mxu0 %v2462
    %2493 = vmatpush.msra.mxu0 %v2461
    %2494 = vmatpush.msra.mxu0 %v2460
    %2495 = vmatmul.f32.gmra.mxu0 %v2474
    %v2496 = vpop.f32.mrf.mxu0
    %v2497 = vadd.f32 %v2471, %v2496
    %2498 = vmatmul.f32.gmra.mxu0 %v2477
    %v2499 = vpop.f32.mrf.mxu0
    %v2500 = vadd.f32 %v2471, %v2499
    %2501 = vdwg.mxu0
    %v2502 = vadd.f32 %v2416, %v2497
    %v2503 = vadd.f32 %v2417, %v2500
    %s2504 = scalar_lea.vmem %s18, 1
    %v2505 = vld [vmem:[%s2504] sm:$0x1]
    %s2506 = scalar_lea.vmem %s19, 1
    %v2507 = vld [vmem:[%s2506] sm:$0x1]
    %v2508 = vsel %vm134, %v2502, 0.0
    %2509 = vadd.xlane.f32.xlu0 %v2508
    %v2510 = vpop.xlane.xlu0 %2509
    %v2511 = vsel %vm134, %v2503, 0.0
    %2512 = vadd.xlane.f32.xlu0 %v2511
    %v2513 = vpop.xlane.xlu0 %2512
    %v2514 = vmul.f32 %v2510, %v1153
    %v2515 = vmul.f32 %v2513, %v1153
    %v2516 = vsub.f32 %v2502, %v2514
    %v2517 = vsub.f32 %v2503, %v2515
    %v2518 = vmul.f32 %v2516, %v2516
    %v2519 = vmul.f32 %v2517, %v2517
    %v2520 = vsel %vm134, %v2518, 0.0
    %2521 = vadd.xlane.f32.xlu0 %v2520
    %v2522 = vpop.xlane.xlu0 %2521
    %v2523 = vsel %vm134, %v2519, 0.0
    %2524 = vadd.xlane.f32.xlu0 %v2523
    %v2525 = vpop.xlane.xlu0 %2524
    %v2526 = vmul.f32 %v2522, %v1153
    %v2527 = vmul.f32 %v2525, %v1153
    %v2528 = vadd.f32 %v2526, 1e-05
    %v2529 = vadd.f32 %v2527, 1e-05
    %v2530 = vrsqrt.pop %v2528
    %v2531 = vmul.f32 %v2530, %v2528
    %v2532 = vmul.f32 %v2531, %v2530
    %v2533 = vmul.f32 0.5, %v2532
    %v2534 = vsub.f32 1.5, %v2533
    %v2535 = vmul.f32 %v2530, %v2534
    %vm2536 = vweird.f32 %v2528
    %vm2537 = vweird.f32 %v2530
    %vm2538 = vmor %vm2536, %vm2537
    %v2539 = vsel %vm2538, %v2530, %v2535
    %v2540 = vrsqrt.pop %v2529
    %v2541 = vmul.f32 %v2540, %v2529
    %v2542 = vmul.f32 %v2541, %v2540
    %v2543 = vmul.f32 0.5, %v2542
    %v2544 = vsub.f32 1.5, %v2543
    %v2545 = vmul.f32 %v2540, %v2544
    %vm2546 = vweird.f32 %v2529
    %vm2547 = vweird.f32 %v2540
    %vm2548 = vmor %vm2546, %vm2547
    %v2549 = vsel %vm2548, %v2540, %v2545
    %v2550 = vmul.f32 %v2516, %v2539
    %v2551 = vmul.f32 %v2517, %v2549
    %v2553 = vperm.slane %v2505, 0
    %v2555 = vmul.f32 %v2550, %v2553
    %v2556 = vmul.f32 %v2551, %v2553
    %v2558 = vperm.slane %v2507, 0
    %v2560 = vadd.f32 %v2555, %v2558
    %v2561 = vadd.f32 %v2556, %v2558
    %v2562 = vld [vmem:[%s20] sm:$0x3]
    %vm2563 = vcmask 130048
    %v2565 = vsel %vm2563, %v2562, 0
    %2567 = vmatpush.msra.mxu0 0.0
    %2568 = vmatpush.msra.mxu0 0.0
    %2569 = vmatpush.msra.mxu0 0.0
    %2570 = vmatpush.msra.mxu0 0.0
    %2571 = vmatpush.msra.mxu0 0.0
    %2572 = vmatpush.msra.mxu0 0.0
    %2573 = vmatpush.msra.mxu0 0.0
    %2574 = vmatpush.msra.mxu0 0.0
    %2575 = vmatpush.msra.mxu0 0.0
    %2576 = vmatpush.msra.mxu0 0.0
    %2577 = vmatpush.msra.mxu0 0.0
    %2578 = vmatpush.msra.mxu0 0.0
    %2579 = vmatpush.msra.mxu0 0.0
    %2580 = vmatpush.msra.mxu0 0.0
    %2581 = vmatpush.msra.mxu0 %v2561
    %2582 = vmatpush.msra.mxu0 %v2560
    %2583 = vmatmul.f32.gmra.mxu0 %v2565
    %v2584 = vpop.f32.mrf.mxu0
    %v2585 = vadd.f32 0.0, %v2584
    %2586 = vdwg.mxu0
    %v2587 = vld [vmem:[%s21] sm:$0xff]
    %v2588 = vld [vmem:[%s21 + $0x8] sm:$0xff]
    %v2589 = vld [vmem:[%s21 + $0x10] sm:$0xff]
    %v2590 = vld [vmem:[%s21 + $0x18] sm:$0xff]
    %s2591 = scalar_lea.vmem %s20, 2
    %v2592 = vld [vmem:[%s2591] sm:$0x3]
    %v2594 = vsel %vm2563, %v2592, 0
    %2596 = vmatpush.msra.mxu0 0.0
    %2597 = vmatpush.msra.mxu0 0.0
    %2598 = vmatpush.msra.mxu0 0.0
    %2599 = vmatpush.msra.mxu0 0.0
    %2600 = vmatpush.msra.mxu0 0.0
    %2601 = vmatpush.msra.mxu0 0.0
    %2602 = vmatpush.msra.mxu0 0.0
    %2603 = vmatpush.msra.mxu0 0.0
    %2604 = vmatpush.msra.mxu0 0.0
    %2605 = vmatpush.msra.mxu0 0.0
    %2606 = vmatpush.msra.mxu0 0.0
    %2607 = vmatpush.msra.mxu0 0.0
    %2608 = vmatpush.msra.mxu0 0.0
    %2609 = vmatpush.msra.mxu0 0.0
    %2610 = vmatpush.msra.mxu0 %v2561
    %2611 = vmatpush.msra.mxu0 %v2560
    %2612 = vmatmul.f32.gmra.mxu0 %v2594
    %v2613 = vpop.f32.mrf.mxu0
    %v2614 = vadd.f32 0.0, %v2613
    %2615 = vdwg.mxu0
    %s2616 = scalar_lea.vmem %s21, 32
    %v2617 = vld [vmem:[%s2616] sm:$0xff]
    %v2618 = vld [vmem:[%s2616 + $0x8] sm:$0xff]
    %v2619 = vld [vmem:[%s2616 + $0x10] sm:$0xff]
    %v2620 = vld [vmem:[%s2616 + $0x18] sm:$0xff]
    %v2622 = vsel %vm134, %v2614, 0
    %2624 = vmatpush.msra.mxu0 0.0
    %2625 = vmatpush.msra.mxu0 0.0
    %2626 = vmatpush.msra.mxu0 0.0
    %2627 = vmatpush.msra.mxu0 0.0
    %2628 = vmatpush.msra.mxu0 0.0
    %2629 = vmatpush.msra.mxu0 0.0
    %2630 = vmatpush.msra.mxu0 0.0
    %2631 = vmatpush.msra.mxu0 0.0
    %2632 = vmatpush.msra.mxu0 0.0
    %2633 = vmatpush.msra.mxu0 0.0
    %2634 = vmatpush.msra.mxu0 0.0
    %2635 = vmatpush.msra.mxu0 0.0
    %2636 = vmatpush.msra.mxu0 %v2620
    %2637 = vmatpush.msra.mxu0 %v2619
    %2638 = vmatpush.msra.mxu0 %v2618
    %2639 = vmatpush.msra.mxu0 %v2617
    %2640 = vmatmul.f32.gmra.mxu0 %v2622
    %v2641 = vpop.f32.mrf.mxu0
    %v2642 = vadd.f32 0.0, %v2641
    %2643 = vdwg.mxu0
    %v2645 = vsel %vm134, %v2585, 0
    %2647 = vmatpush.msra.mxu0 0.0
    %2648 = vmatpush.msra.mxu0 0.0
    %2649 = vmatpush.msra.mxu0 0.0
    %2650 = vmatpush.msra.mxu0 0.0
    %2651 = vmatpush.msra.mxu0 0.0
    %2652 = vmatpush.msra.mxu0 0.0
    %2653 = vmatpush.msra.mxu0 0.0
    %2654 = vmatpush.msra.mxu0 0.0
    %2655 = vmatpush.msra.mxu0 0.0
    %2656 = vmatpush.msra.mxu0 0.0
    %2657 = vmatpush.msra.mxu0 0.0
    %2658 = vmatpush.msra.mxu0 0.0
    %2659 = vmatpush.msra.mxu0 %v2590
    %2660 = vmatpush.msra.mxu0 %v2589
    %2661 = vmatpush.msra.mxu0 %v2588
    %2662 = vmatpush.msra.mxu0 %v2587
    %2663 = vmatmul.f32.gmra.mxu0 %v2645
    %v2664 = vpop.f32.mrf.mxu0
    %v2665 = vadd.f32 %v2642, %v2664
    %2666 = vdwg.mxu0
    %s2667 = scalar_lea.vmem %s20, 4
    %v2668 = vld [vmem:[%s2667] sm:$0x3]
    %v2670 = vsel %vm2563, %v2668, 0
    %2672 = vmatpush.msra.mxu0 0.0
    %2673 = vmatpush.msra.mxu0 0.0
    %2674 = vmatpush.msra.mxu0 0.0
    %2675 = vmatpush.msra.mxu0 0.0
    %2676 = vmatpush.msra.mxu0 0.0
    %2677 = vmatpush.msra.mxu0 0.0
    %2678 = vmatpush.msra.mxu0 0.0
    %2679 = vmatpush.msra.mxu0 0.0
    %2680 = vmatpush.msra.mxu0 0.0
    %2681 = vmatpush.msra.mxu0 0.0
    %2682 = vmatpush.msra.mxu0 0.0
    %2683 = vmatpush.msra.mxu0 0.0
    %2684 = vmatpush.msra.mxu0 0.0
    %2685 = vmatpush.msra.mxu0 0.0
    %2686 = vmatpush.msra.mxu0 %v2561
    %2687 = vmatpush.msra.mxu0 %v2560
    %2688 = vmatmul.f32.gmra.mxu0 %v2670
    %v2689 = vpop.f32.mrf.mxu0
    %v2690 = vadd.f32 0.0, %v2689
    %2691 = vdwg.mxu0
    %s2692 = scalar_lea.vmem %s21, 64
    %v2693 = vld [vmem:[%s2692] sm:$0xff]
    %v2694 = vld [vmem:[%s2692 + $0x8] sm:$0xff]
    %v2695 = vld [vmem:[%s2692 + $0x10] sm:$0xff]
    %v2696 = vld [vmem:[%s2692 + $0x18] sm:$0xff]
    %v2698 = vsel %vm134, %v2690, 0
    %2700 = vmatpush.msra.mxu0 0.0
    %2701 = vmatpush.msra.mxu0 0.0
    %2702 = vmatpush.msra.mxu0 0.0
    %2703 = vmatpush.msra.mxu0 0.0
    %2704 = vmatpush.msra.mxu0 0.0
    %2705 = vmatpush.msra.mxu0 0.0
    %2706 = vmatpush.msra.mxu0 0.0
    %2707 = vmatpush.msra.mxu0 0.0
    %2708 = vmatpush.msra.mxu0 0.0
    %2709 = vmatpush.msra.mxu0 0.0
    %2710 = vmatpush.msra.mxu0 0.0
    %2711 = vmatpush.msra.mxu0 0.0
    %2712 = vmatpush.msra.mxu0 %v2696
    %2713 = vmatpush.msra.mxu0 %v2695
    %2714 = vmatpush.msra.mxu0 %v2694
    %2715 = vmatpush.msra.mxu0 %v2693
    %2716 = vmatmul.f32.gmra.mxu0 %v2698
    %v2717 = vpop.f32.mrf.mxu0
    %v2718 = vadd.f32 0.0, %v2717
    %2719 = vdwg.mxu0
    %v2720 = vadd.f32 %v2665, %v2718
    %s2721 = scalar_lea.vmem %s20, 6
    %v2722 = vld [vmem:[%s2721] sm:$0x3]
    %v2724 = vsel %vm2563, %v2722, 0
    %2726 = vmatpush.msra.mxu0 0.0
    %2727 = vmatpush.msra.mxu0 0.0
    %2728 = vmatpush.msra.mxu0 0.0
    %2729 = vmatpush.msra.mxu0 0.0
    %2730 = vmatpush.msra.mxu0 0.0
    %2731 = vmatpush.msra.mxu0 0.0
    %2732 = vmatpush.msra.mxu0 0.0
    %2733 = vmatpush.msra.mxu0 0.0
    %2734 = vmatpush.msra.mxu0 0.0
    %2735 = vmatpush.msra.mxu0 0.0
    %2736 = vmatpush.msra.mxu0 0.0
    %2737 = vmatpush.msra.mxu0 0.0
    %2738 = vmatpush.msra.mxu0 0.0
    %2739 = vmatpush.msra.mxu0 0.0
    %2740 = vmatpush.msra.mxu0 %v2561
    %2741 = vmatpush.msra.mxu0 %v2560
    %2742 = vmatmul.f32.gmra.mxu0 %v2724
    %v2743 = vpop.f32.mrf.mxu0
    %v2744 = vadd.f32 0.0, %v2743
    %2745 = vdwg.mxu0
    %s2746 = scalar_lea.vmem %s21, 96
    %v2747 = vld [vmem:[%s2746] sm:$0xff]
    %v2748 = vld [vmem:[%s2746 + $0x8] sm:$0xff]
    %v2749 = vld [vmem:[%s2746 + $0x10] sm:$0xff]
    %v2750 = vld [vmem:[%s2746 + $0x18] sm:$0xff]
    %v2752 = vsel %vm134, %v2744, 0
    %2754 = vmatpush.msra.mxu0 0.0
    %2755 = vmatpush.msra.mxu0 0.0
    %2756 = vmatpush.msra.mxu0 0.0
    %2757 = vmatpush.msra.mxu0 0.0
    %2758 = vmatpush.msra.mxu0 0.0
    %2759 = vmatpush.msra.mxu0 0.0
    %2760 = vmatpush.msra.mxu0 0.0
    %2761 = vmatpush.msra.mxu0 0.0
    %2762 = vmatpush.msra.mxu0 0.0
    %2763 = vmatpush.msra.mxu0 0.0
    %2764 = vmatpush.msra.mxu0 0.0
    %2765 = vmatpush.msra.mxu0 0.0
    %2766 = vmatpush.msra.mxu0 %v2750
    %2767 = vmatpush.msra.mxu0 %v2749
    %2768 = vmatpush.msra.mxu0 %v2748
    %2769 = vmatpush.msra.mxu0 %v2747
    %2770 = vmatmul.f32.gmra.mxu0 %v2752
    %v2771 = vpop.f32.mrf.mxu0
    %v2772 = vadd.f32 0.0, %v2771
    %2773 = vdwg.mxu0
    %v2774 = vadd.f32 %v2720, %v2772
    %s2775 = scalar_lea.vmem %s20, 8
    %v2776 = vld [vmem:[%s2775] sm:$0x3]
    %v2778 = vsel %vm2563, %v2776, 0
    %2780 = vmatpush.msra.mxu0 0.0
    %2781 = vmatpush.msra.mxu0 0.0
    %2782 = vmatpush.msra.mxu0 0.0
    %2783 = vmatpush.msra.mxu0 0.0
    %2784 = vmatpush.msra.mxu0 0.0
    %2785 = vmatpush.msra.mxu0 0.0
    %2786 = vmatpush.msra.mxu0 0.0
    %2787 = vmatpush.msra.mxu0 0.0
    %2788 = vmatpush.msra.mxu0 0.0
    %2789 = vmatpush.msra.mxu0 0.0
    %2790 = vmatpush.msra.mxu0 0.0
    %2791 = vmatpush.msra.mxu0 0.0
    %2792 = vmatpush.msra.mxu0 0.0
    %2793 = vmatpush.msra.mxu0 0.0
    %2794 = vmatpush.msra.mxu0 %v2561
    %2795 = vmatpush.msra.mxu0 %v2560
    %2796 = vmatmul.f32.gmra.mxu0 %v2778
    %v2797 = vpop.f32.mrf.mxu0
    %v2798 = vadd.f32 0.0, %v2797
    %2799 = vdwg.mxu0
    %s2800 = scalar_lea.vmem %s21, 128
    %v2801 = vld [vmem:[%s2800] sm:$0xff]
    %v2802 = vld [vmem:[%s2800 + $0x8] sm:$0xff]
    %v2803 = vld [vmem:[%s2800 + $0x10] sm:$0xff]
    %v2804 = vld [vmem:[%s2800 + $0x18] sm:$0xff]
    %v2806 = vsel %vm134, %v2798, 0
    %2808 = vmatpush.msra.mxu0 0.0
    %2809 = vmatpush.msra.mxu0 0.0
    %2810 = vmatpush.msra.mxu0 0.0
    %2811 = vmatpush.msra.mxu0 0.0
    %2812 = vmatpush.msra.mxu0 0.0
    %2813 = vmatpush.msra.mxu0 0.0
    %2814 = vmatpush.msra.mxu0 0.0
    %2815 = vmatpush.msra.mxu0 0.0
    %2816 = vmatpush.msra.mxu0 0.0
    %2817 = vmatpush.msra.mxu0 0.0
    %2818 = vmatpush.msra.mxu0 0.0
    %2819 = vmatpush.msra.mxu0 0.0
    %2820 = vmatpush.msra.mxu0 %v2804
    %2821 = vmatpush.msra.mxu0 %v2803
    %2822 = vmatpush.msra.mxu0 %v2802
    %2823 = vmatpush.msra.mxu0 %v2801
    %2824 = vmatmul.f32.gmra.mxu0 %v2806
    %v2825 = vpop.f32.mrf.mxu0
    %v2826 = vadd.f32 0.0, %v2825
    %2827 = vdwg.mxu0
    %v2828 = vadd.f32 %v2774, %v2826
    %s2829 = scalar_lea.vmem %s20, 10
    %v2830 = vld [vmem:[%s2829] sm:$0x3]
    %v2832 = vsel %vm2563, %v2830, 0
    %2834 = vmatpush.msra.mxu0 0.0
    %2835 = vmatpush.msra.mxu0 0.0
    %2836 = vmatpush.msra.mxu0 0.0
    %2837 = vmatpush.msra.mxu0 0.0
    %2838 = vmatpush.msra.mxu0 0.0
    %2839 = vmatpush.msra.mxu0 0.0
    %2840 = vmatpush.msra.mxu0 0.0
    %2841 = vmatpush.msra.mxu0 0.0
    %2842 = vmatpush.msra.mxu0 0.0
    %2843 = vmatpush.msra.mxu0 0.0
    %2844 = vmatpush.msra.mxu0 0.0
    %2845 = vmatpush.msra.mxu0 0.0
    %2846 = vmatpush.msra.mxu0 0.0
    %2847 = vmatpush.msra.mxu0 0.0
    %2848 = vmatpush.msra.mxu0 %v2561
    %2849 = vmatpush.msra.mxu0 %v2560
    %2850 = vmatmul.f32.gmra.mxu0 %v2832
    %v2851 = vpop.f32.mrf.mxu0
    %v2852 = vadd.f32 0.0, %v2851
    %2853 = vdwg.mxu0
    %s2854 = scalar_lea.vmem %s21, 160
    %v2855 = vld [vmem:[%s2854] sm:$0xff]
    %v2856 = vld [vmem:[%s2854 + $0x8] sm:$0xff]
    %v2857 = vld [vmem:[%s2854 + $0x10] sm:$0xff]
    %v2858 = vld [vmem:[%s2854 + $0x18] sm:$0xff]
    %v2860 = vsel %vm134, %v2852, 0
    %2862 = vmatpush.msra.mxu0 0.0
    %2863 = vmatpush.msra.mxu0 0.0
    %2864 = vmatpush.msra.mxu0 0.0
    %2865 = vmatpush.msra.mxu0 0.0
    %2866 = vmatpush.msra.mxu0 0.0
    %2867 = vmatpush.msra.mxu0 0.0
    %2868 = vmatpush.msra.mxu0 0.0
    %2869 = vmatpush.msra.mxu0 0.0
    %2870 = vmatpush.msra.mxu0 0.0
    %2871 = vmatpush.msra.mxu0 0.0
    %2872 = vmatpush.msra.mxu0 0.0
    %2873 = vmatpush.msra.mxu0 0.0
    %2874 = vmatpush.msra.mxu0 %v2858
    %2875 = vmatpush.msra.mxu0 %v2857
    %2876 = vmatpush.msra.mxu0 %v2856
    %2877 = vmatpush.msra.mxu0 %v2855
    %2878 = vmatmul.f32.gmra.mxu0 %v2860
    %v2879 = vpop.f32.mrf.mxu0
    %v2880 = vadd.f32 0.0, %v2879
    %2881 = vdwg.mxu0
    %v2882 = vadd.f32 %v2828, %v2880
    %s2883 = scalar_lea.vmem %s20, 12
    %v2884 = vld [vmem:[%s2883] sm:$0x3]
    %v2886 = vsel %vm2563, %v2884, 0
    %2888 = vmatpush.msra.mxu0 0.0
    %2889 = vmatpush.msra.mxu0 0.0
    %2890 = vmatpush.msra.mxu0 0.0
    %2891 = vmatpush.msra.mxu0 0.0
    %2892 = vmatpush.msra.mxu0 0.0
    %2893 = vmatpush.msra.mxu0 0.0
    %2894 = vmatpush.msra.mxu0 0.0
    %2895 = vmatpush.msra.mxu0 0.0
    %2896 = vmatpush.msra.mxu0 0.0
    %2897 = vmatpush.msra.mxu0 0.0
    %2898 = vmatpush.msra.mxu0 0.0
    %2899 = vmatpush.msra.mxu0 0.0
    %2900 = vmatpush.msra.mxu0 0.0
    %2901 = vmatpush.msra.mxu0 0.0
    %2902 = vmatpush.msra.mxu0 %v2561
    %2903 = vmatpush.msra.mxu0 %v2560
    %2904 = vmatmul.f32.gmra.mxu0 %v2886
    %v2905 = vpop.f32.mrf.mxu0
    %v2906 = vadd.f32 0.0, %v2905
    %2907 = vdwg.mxu0
    %s2908 = scalar_lea.vmem %s21, 192
    %v2909 = vld [vmem:[%s2908] sm:$0xff]
    %v2910 = vld [vmem:[%s2908 + $0x8] sm:$0xff]
    %v2911 = vld [vmem:[%s2908 + $0x10] sm:$0xff]
    %v2912 = vld [vmem:[%s2908 + $0x18] sm:$0xff]
    %v2914 = vsel %vm134, %v2906, 0
    %2916 = vmatpush.msra.mxu0 0.0
    %2917 = vmatpush.msra.mxu0 0.0
    %2918 = vmatpush.msra.mxu0 0.0
    %2919 = vmatpush.msra.mxu0 0.0
    %2920 = vmatpush.msra.mxu0 0.0
    %2921 = vmatpush.msra.mxu0 0.0
    %2922 = vmatpush.msra.mxu0 0.0
    %2923 = vmatpush.msra.mxu0 0.0
    %2924 = vmatpush.msra.mxu0 0.0
    %2925 = vmatpush.msra.mxu0 0.0
    %2926 = vmatpush.msra.mxu0 0.0
    %2927 = vmatpush.msra.mxu0 0.0
    %2928 = vmatpush.msra.mxu0 %v2912
    %2929 = vmatpush.msra.mxu0 %v2911
    %2930 = vmatpush.msra.mxu0 %v2910
    %2931 = vmatpush.msra.mxu0 %v2909
    %2932 = vmatmul.f32.gmra.mxu0 %v2914
    %v2933 = vpop.f32.mrf.mxu0
    %v2934 = vadd.f32 0.0, %v2933
    %2935 = vdwg.mxu0
    %v2936 = vadd.f32 %v2882, %v2934
    %s2937 = scalar_lea.vmem %s20, 14
    %v2938 = vld [vmem:[%s2937] sm:$0x3]
    %v2940 = vsel %vm2563, %v2938, 0
    %2942 = vmatpush.msra.mxu0 0.0
    %2943 = vmatpush.msra.mxu0 0.0
    %2944 = vmatpush.msra.mxu0 0.0
    %2945 = vmatpush.msra.mxu0 0.0
    %2946 = vmatpush.msra.mxu0 0.0
    %2947 = vmatpush.msra.mxu0 0.0
    %2948 = vmatpush.msra.mxu0 0.0
    %2949 = vmatpush.msra.mxu0 0.0
    %2950 = vmatpush.msra.mxu0 0.0
    %2951 = vmatpush.msra.mxu0 0.0
    %2952 = vmatpush.msra.mxu0 0.0
    %2953 = vmatpush.msra.mxu0 0.0
    %2954 = vmatpush.msra.mxu0 0.0
    %2955 = vmatpush.msra.mxu0 0.0
    %2956 = vmatpush.msra.mxu0 %v2561
    %2957 = vmatpush.msra.mxu0 %v2560
    %2958 = vmatmul.f32.gmra.mxu0 %v2940
    %v2959 = vpop.f32.mrf.mxu0
    %v2960 = vadd.f32 0.0, %v2959
    %2961 = vdwg.mxu0
    %s2962 = scalar_lea.vmem %s21, 224
    %v2963 = vld [vmem:[%s2962] sm:$0xff]
    %v2964 = vld [vmem:[%s2962 + $0x8] sm:$0xff]
    %v2965 = vld [vmem:[%s2962 + $0x10] sm:$0xff]
    %v2966 = vld [vmem:[%s2962 + $0x18] sm:$0xff]
    %v2968 = vsel %vm134, %v2960, 0
    %2970 = vmatpush.msra.mxu0 0.0
    %2971 = vmatpush.msra.mxu0 0.0
    %2972 = vmatpush.msra.mxu0 0.0
    %2973 = vmatpush.msra.mxu0 0.0
    %2974 = vmatpush.msra.mxu0 0.0
    %2975 = vmatpush.msra.mxu0 0.0
    %2976 = vmatpush.msra.mxu0 0.0
    %2977 = vmatpush.msra.mxu0 0.0
    %2978 = vmatpush.msra.mxu0 0.0
    %2979 = vmatpush.msra.mxu0 0.0
    %2980 = vmatpush.msra.mxu0 0.0
    %2981 = vmatpush.msra.mxu0 0.0
    %2982 = vmatpush.msra.mxu0 %v2966
    %2983 = vmatpush.msra.mxu0 %v2965
    %2984 = vmatpush.msra.mxu0 %v2964
    %2985 = vmatpush.msra.mxu0 %v2963
    %2986 = vmatmul.f32.gmra.mxu0 %v2968
    %v2987 = vpop.f32.mrf.mxu0
    %v2988 = vadd.f32 0.0, %v2987
    %2989 = vdwg.mxu0
    %v2990 = vadd.f32 %v2936, %v2988
    %v2991 = vld [vmem:[%s22] sm:$0x1]
    %v2993 = vperm.slane %v2991, 0
    %v2995 = vadd.f32 %v2990, %v2993
    %v2996 = vmax.f32 %v2995, 0.0
    %v2997 = vld [vmem:[%s23] sm:$0xff]
    %v2998 = vld [vmem:[%s23 + $0x8] sm:$0xff]
    %v2999 = vld [vmem:[%s24] sm:$0x1]
    %v3001 = vperm.slane %v2999, 0
    %v3004 = vsel %vm2563, %v2996, 0
    %3006 = vmatpush.msra.mxu0 0.0
    %3007 = vmatpush.msra.mxu0 0.0
    %3008 = vmatpush.msra.mxu0 0.0
    %3009 = vmatpush.msra.mxu0 0.0
    %3010 = vmatpush.msra.mxu0 0.0
    %3011 = vmatpush.msra.mxu0 0.0
    %3012 = vmatpush.msra.mxu0 0.0
    %3013 = vmatpush.msra.mxu0 0.0
    %3014 = vmatpush.msra.mxu0 0.0
    %3015 = vmatpush.msra.mxu0 0.0
    %3016 = vmatpush.msra.mxu0 0.0
    %3017 = vmatpush.msra.mxu0 0.0
    %3018 = vmatpush.msra.mxu0 0.0
    %3019 = vmatpush.msra.mxu0 0.0
    %3020 = vmatpush.msra.mxu0 %v2998
    %3021 = vmatpush.msra.mxu0 %v2997
    %3022 = vmatmul.f32.gmra.mxu0 %v3004
    %v3023 = vpop.f32.mrf.mxu0
    %v3024 = vadd.f32 %v3001, %v3023
    %3025 = vdwg.mxu0
    %vm3026 = vcmask 58368
    %3027 = vst.msk [vmem:[#allocation2] sm:$0x3] %vm3026, %v3024
    // Predicated region
    $region102: #{transformer_triplet_forward.1} parent=1 // pred_check
      _
    $region103: #{transformer_triplet_forward.1} parent=1 // pred_check_branch
      %3029 = sbr.rel (0) target = $region105
    $region104: #{transformer_triplet_forward.1} parent=1 // pred_region
      %3031 = vsyncadd [#allocation3], 0
      %s3033 = sshll.u32 [#allocation2], 4
      %s3034 = int_to_ptr.vmem [resolvable:$true] %s3033
      %s3035 = sshll.u32 %s25, 4
      %s3036 = int_to_ptr.hbm [resolvable:$true] %s3035
      %3038 = dma.vmem_to_hbm [thread:$0]  %s3034, 32, %s3036, [#allocation3]
    $region105: #{transformer_triplet_forward.1} parent=1 // pred_fallthru
      _
    // Predicated region
    $region106: #{transformer_triplet_forward.1} parent=1 // pred_check
      _
    $region107: #{transformer_triplet_forward.1} parent=1 // pred_check_branch
      %3040 = sbr.rel (0) target = $region109
    $region108: #{transformer_triplet_forward.1} parent=1 // pred_region
      %3042 = dma.done [#allocation3], 32
    $region109: #{transformer_triplet_forward.1} parent=1 // pred_fallthru
      _
    %3043 = vsyncpa [#allocation3], 1

</llo_original>
